<compile_context>
chip_gen: v7x
topology: tpu7x:2x2x1
jax: 0.10.0
libtpu: 0.0.40
codegen_flags: <defaults>
</compile_context>

<pallas_src>
import jax
import jax.numpy as jnp
from jax.experimental import pallas as pl
from jax.experimental.pallas import tpu as pltpu

# Problem sizes.
G = 10            # groups
CG = 16           # channels per group (in == out per group)
C = G * CG        # 160 total channels
H = W = 14        # spatial
KH = KW = 3       # kernel taps
NTAP = KH * KW    # 9

SPH = SPW = 16    # spatial after the 1-ring zero pad
QL = SPH * SPW    # 256 flattened padded positions -> lane dim (2 full vregs)

NSPLIT = 2        # the 10 groups split into two halves of 80 channels (5 groups each)
CH = C // NSPLIT  # 80 channels per half (group-boundary aligned: 5 * 16)
KTOT = NTAP * CH  # 720 = K-concat contraction depth


def relu_gconv_kernel(x_ref, w_ref, o_ref, xs_ref):
    # x_ref : [C, QL]            flattened zero-padded input (all 160 channels)
    # w_ref : [NSPLIT, CH, KTOT] per-half K-concatenated block-diagonal weights
    # o_ref : [C, QL]            conv output over the padded window (lane-dense)
    # xs_ref: [KTOT, QL]         VMEM scratch holding the 9 rolled copies of one half
    for h in range(NSPLIT):
        # ReLU once per half; padding zeros stay zero.
        xh = jnp.maximum(x_ref[h * CH:(h + 1) * CH, :], 0.0)
        for t in range(NTAP):
            kh, kw = t // KW, t % KW
            # tap (kh,kw) reads padded pixel (a+kh-1, b+kw-1) for output pixel (a,b):
            # in flat coords that is p + delta -> lane roll by -delta.  Wrap-around only
            # hits the padded border, which the wrapper slices off.
            delta = (kh - 1) * SPW + (kw - 1)
            xs_ref[t * CH:(t + 1) * CH, :] = (
                xh if delta == 0 else pltpu.roll(xh, shift=(-delta) % QL, axis=1)
            )
        # Single MXU matmul per half: [80, 720] @ [720, 256].
        o_ref[h * CH:(h + 1) * CH, :] = jnp.dot(
            w_ref[h], xs_ref[...], preferred_element_type=jnp.float32
        ).astype(o_ref.dtype)


def prepare_weights(weight):
    """One-time (outside jit) weight prep.

    weight: [160, 16, 3, 3] torch grouped-OIHW layout.
    Returns [NSPLIT, CH, NTAP*CH]: for each 80-channel half, the 9 per-tap 80x80
    block-diagonal matrices concatenated along the contraction axis.
    """
    w5 = weight.reshape(G, CG, CG, KH, KW)                 # [g, co_g, ci_g, kh, kw]
    eye = jnp.eye(G, dtype=weight.dtype)
    bd = jnp.einsum('gochw,gk->hwgokc', w5, eye)           # [kh, kw, g, co_g, g', ci_g]
    bd = bd.reshape(NTAP, C, C)                            # [9, 160, 160] block-diag
    halves = []
    for h in range(NSPLIT):
        bh = bd[:, h * CH:(h + 1) * CH, h * CH:(h + 1) * CH]   # [9, 80, 80]
        # K-concat: w_half[co, t*CH + ci] = bh[t, co, ci]
        halves.append(jnp.transpose(bh, (1, 0, 2)).reshape(CH, KTOT))
    return jnp.stack(halves)                               # [2, 80, 720]


@jax.jit
def relu_grouped_conv2d(x_nchw, wk):
    """x_nchw: [1, 160, 14, 14]; wk: prepare_weights(weight). Returns [1, 160, 14, 14]."""
    # Single pad, no transposes: [1,160,14,14] -> [160,16,16] -> [160,256].
    xp = jnp.pad(x_nchw.reshape(C, H, W), ((0, 0), (1, 1), (1, 1)))
    xf = xp.reshape(C, QL)

    out = pl.pallas_call(
        relu_gconv_kernel,
        out_shape=jax.ShapeDtypeStruct((C, QL), x_nchw.dtype),
        grid=(1,),
        in_specs=[
            pl.BlockSpec((C, QL), lambda i: (0, 0)),
            pl.BlockSpec((NSPLIT, CH, KTOT), lambda i: (0, 0, 0)),
        ],
        out_specs=pl.BlockSpec((C, QL), lambda i: (0, 0)),
        scratch_shapes=[pltpu.VMEM((KTOT, QL), jnp.float32)],
        compiler_params=pltpu.CompilerParams(
            dimension_semantics=("arbitrary",),
        ),
    )(xf, wk)

    # Slice the 14x14 interior of the padded window back out.
    y = out.reshape(C, SPH, SPW)[:, 1:1 + H, 1:1 + W]
    return y.reshape(1, C, H, W)


def _reference(x_nchw, weight):
    """Pure-JAX reference: ReLU then grouped conv via lax.conv_general_dilated."""
    x = jnp.maximum(x_nchw, 0.0)
    return jax.lax.conv_general_dilated(
        x, weight,
        window_strides=(1, 1),
        padding=((1, 1), (1, 1)),
        dimension_numbers=("NCHW", "OIHW", "NCHW"),
        feature_group_count=G,
    )


if __name__ == "__main__":
    key = jax.random.PRNGKey(0)
    kx, kwt = jax.random.split(key)
    x = jax.random.normal(kx, (1, C, H, W), dtype=jnp.float32)
    # deterministic "Conv2d(160, 160, 3, groups=10, bias=False)" weight: [160, 16, 3, 3]
    weight = jax.random.normal(kwt, (C, CG, KH, KW), dtype=jnp.float32) * 0.1

    # Weight prep is hoisted out of the hot path: done once, outside jit.
    wk = jax.block_until_ready(prepare_weights(weight))

    y = jax.block_until_ready(relu_grouped_conv2d(x, wk))
    y_ref = _reference(x, weight)
    assert y.shape == (1, 160, 14, 14)
    assert jnp.allclose(y, y_ref, atol=1e-4, rtol=1e-4)
    print("KERNEL_OK")
</pallas_src>

<mosaic_0001>
module attributes {stable_mosaic.version = 11 : i64} {
  func.func @relu_gconv_kernel(%arg0: i32, %arg1: memref<160x256xf32, #tpu.memory_space<vmem>>, %arg2: memref<2x80x720xf32, #tpu.memory_space<vmem>>, %arg3: memref<160x256xf32, #tpu.memory_space<vmem>>, %arg4: memref<720x256xf32, #tpu.memory_space<vmem>>) attributes {dimension_semantics = [#tpu.dimension_semantics<arbitrary>], iteration_bounds = array<i64: 1>, scalar_prefetch = 0 : i64, scratch_operands = 1 : i64, tpu.core_type = #tpu.core_type<tc>, window_params = [{pipeline_mode = #tpu.pipeline_mode<synchronous>, transform_indices = @transform_0, window_bounds = array<i64: 160, 256>}, {pipeline_mode = #tpu.pipeline_mode<synchronous>, transform_indices = @transform_1, window_bounds = array<i64: 2, 80, 720>}, {pipeline_mode = #tpu.pipeline_mode<synchronous>, transform_indices = @transform_2, window_bounds = array<i64: 160, 256>}]} {
    %c0 = arith.constant 0 : index
    %c0_0 = arith.constant 0 : index
    %0 = vector.load %arg1[%c0, %c0_0] : memref<160x256xf32, #tpu.memory_space<vmem>>, vector<80x256xf32>
    %cst = arith.constant 0.000000e+00 : f32
    %1 = vector.broadcast %cst : f32 to vector<80x256xf32>
    %2 = arith.maximumf %0, %1 : vector<80x256xf32>
    %c17_i32 = arith.constant 17 : i32
    %3 = tpu.dynamic_rotate %2 by %c17_i32 dim 1 : vector<80x256xf32>, i32 -> vector<80x256xf32>
    %c0_1 = arith.constant 0 : index
    %c0_2 = arith.constant 0 : index
    %4 = vector.load %arg4[%c0_1, %c0_2] : memref<720x256xf32, #tpu.memory_space<vmem>>, vector<80x256xf32>
    tpu.vector_store %arg4[%c0_1, %c0_2], %3 {strides = array<i32>} : memref<720x256xf32, #tpu.memory_space<vmem>>, vector<80x256xf32>,
    %c16_i32 = arith.constant 16 : i32
    %5 = tpu.dynamic_rotate %2 by %c16_i32 dim 1 : vector<80x256xf32>, i32 -> vector<80x256xf32>
    %c80 = arith.constant 80 : index
    %c0_3 = arith.constant 0 : index
    %6 = vector.load %arg4[%c80, %c0_3] : memref<720x256xf32, #tpu.memory_space<vmem>>, vector<80x256xf32>
    tpu.vector_store %arg4[%c80, %c0_3], %5 {strides = array<i32>} : memref<720x256xf32, #tpu.memory_space<vmem>>, vector<80x256xf32>,
    %c15_i32 = arith.constant 15 : i32
    %7 = tpu.dynamic_rotate %2 by %c15_i32 dim 1 : vector<80x256xf32>, i32 -> vector<80x256xf32>
    %c160 = arith.constant 160 : index
    %c0_4 = arith.constant 0 : index
    %8 = vector.load %arg4[%c160, %c0_4] : memref<720x256xf32, #tpu.memory_space<vmem>>, vector<80x256xf32>
    tpu.vector_store %arg4[%c160, %c0_4], %7 {strides = array<i32>} : memref<720x256xf32, #tpu.memory_space<vmem>>, vector<80x256xf32>,
    %c1_i32 = arith.constant 1 : i32
    %9 = tpu.dynamic_rotate %2 by %c1_i32 dim 1 : vector<80x256xf32>, i32 -> vector<80x256xf32>
    %c240 = arith.constant 240 : index
    %c0_5 = arith.constant 0 : index
    %10 = vector.load %arg4[%c240, %c0_5] : memref<720x256xf32, #tpu.memory_space<vmem>>, vector<80x256xf32>
    tpu.vector_store %arg4[%c240, %c0_5], %9 {strides = array<i32>} : memref<720x256xf32, #tpu.memory_space<vmem>>, vector<80x256xf32>,
    %c320 = arith.constant 320 : index
    %c0_6 = arith.constant 0 : index
    %11 = vector.load %arg4[%c320, %c0_6] : memref<720x256xf32, #tpu.memory_space<vmem>>, vector<80x256xf32>
    tpu.vector_store %arg4[%c320, %c0_6], %2 {strides = array<i32>} : memref<720x256xf32, #tpu.memory_space<vmem>>, vector<80x256xf32>,
    %c255_i32 = arith.constant 255 : i32
    %12 = tpu.dynamic_rotate %2 by %c255_i32 dim 1 : vector<80x256xf32>, i32 -> vector<80x256xf32>
    %c400 = arith.constant 400 : index
    %c0_7 = arith.constant 0 : index
    %13 = vector.load %arg4[%c400, %c0_7] : memref<720x256xf32, #tpu.memory_space<vmem>>, vector<80x256xf32>
    tpu.vector_store %arg4[%c400, %c0_7], %12 {strides = array<i32>} : memref<720x256xf32, #tpu.memory_space<vmem>>, vector<80x256xf32>,
    %c241_i32 = arith.constant 241 : i32
    %14 = tpu.dynamic_rotate %2 by %c241_i32 dim 1 : vector<80x256xf32>, i32 -> vector<80x256xf32>
    %c480 = arith.constant 480 : index
    %c0_8 = arith.constant 0 : index
    %15 = vector.load %arg4[%c480, %c0_8] : memref<720x256xf32, #tpu.memory_space<vmem>>, vector<80x256xf32>
    tpu.vector_store %arg4[%c480, %c0_8], %14 {strides = array<i32>} : memref<720x256xf32, #tpu.memory_space<vmem>>, vector<80x256xf32>,
    %c240_i32 = arith.constant 240 : i32
    %16 = tpu.dynamic_rotate %2 by %c240_i32 dim 1 : vector<80x256xf32>, i32 -> vector<80x256xf32>
    %c560 = arith.constant 560 : index
    %c0_9 = arith.constant 0 : index
    %17 = vector.load %arg4[%c560, %c0_9] : memref<720x256xf32, #tpu.memory_space<vmem>>, vector<80x256xf32>
    tpu.vector_store %arg4[%c560, %c0_9], %16 {strides = array<i32>} : memref<720x256xf32, #tpu.memory_space<vmem>>, vector<80x256xf32>,
    %c239_i32 = arith.constant 239 : i32
    %18 = tpu.dynamic_rotate %2 by %c239_i32 dim 1 : vector<80x256xf32>, i32 -> vector<80x256xf32>
    %c640 = arith.constant 640 : index
    %c0_10 = arith.constant 0 : index
    %19 = vector.load %arg4[%c640, %c0_10] : memref<720x256xf32, #tpu.memory_space<vmem>>, vector<80x256xf32>
    tpu.vector_store %arg4[%c640, %c0_10], %18 {strides = array<i32>} : memref<720x256xf32, #tpu.memory_space<vmem>>, vector<80x256xf32>,
    %c0_11 = arith.constant 0 : index
    %c0_12 = arith.constant 0 : index
    %c0_13 = arith.constant 0 : index
    %20 = vector.load %arg2[%c0_11, %c0_12, %c0_13] : memref<2x80x720xf32, #tpu.memory_space<vmem>>, vector<1x80x720xf32>
    %21 = vector.shape_cast %20 : vector<1x80x720xf32> to vector<80x720xf32>
    %c0_14 = arith.constant 0 : index
    %c0_15 = arith.constant 0 : index
    %22 = vector.load %arg4[%c0_14, %c0_15] : memref<720x256xf32, #tpu.memory_space<vmem>>, vector<720x256xf32>
    %cst_16 = arith.constant dense<0.000000e+00> : vector<80x256xf32>
    %23 = tpu.matmul %21, %22, %cst_16 {dimension_numbers = #tpu.dot_dimension_numbers<[1], [0], [0], [1], [0, 0, 1, 1], [], []>} : vector<80x720xf32>, vector<720x256xf32>, vector<80x256xf32> -> vector<80x256xf32>
    %c0_17 = arith.constant 0 : index
    %c0_18 = arith.constant 0 : index
    %24 = vector.load %arg3[%c0_17, %c0_18] : memref<160x256xf32, #tpu.memory_space<vmem>>, vector<80x256xf32>
    tpu.vector_store %arg3[%c0_17, %c0_18], %23 {strides = array<i32>} : memref<160x256xf32, #tpu.memory_space<vmem>>, vector<80x256xf32>,
    %c80_19 = arith.constant 80 : index
    %c0_20 = arith.constant 0 : index
    %25 = vector.load %arg1[%c80_19, %c0_20] : memref<160x256xf32, #tpu.memory_space<vmem>>, vector<80x256xf32>
    %cst_21 = arith.constant 0.000000e+00 : f32
    %26 = vector.broadcast %cst_21 : f32 to vector<80x256xf32>
    %27 = arith.maximumf %25, %26 : vector<80x256xf32>
    %c17_i32_22 = arith.constant 17 : i32
    %28 = tpu.dynamic_rotate %27 by %c17_i32_22 dim 1 : vector<80x256xf32>, i32 -> vector<80x256xf32>
    %c0_23 = arith.constant 0 : index
    %c0_24 = arith.constant 0 : index
    %29 = vector.load %arg4[%c0_23, %c0_24] : memref<720x256xf32, #tpu.memory_space<vmem>>, vector<80x256xf32>
    tpu.vector_store %arg4[%c0_23, %c0_24], %28 {strides = array<i32>} : memref<720x256xf32, #tpu.memory_space<vmem>>, vector<80x256xf32>,
    %c16_i32_25 = arith.constant 16 : i32
    %30 = tpu.dynamic_rotate %27 by %c16_i32_25 dim 1 : vector<80x256xf32>, i32 -> vector<80x256xf32>
    %c80_26 = arith.constant 80 : index
    %c0_27 = arith.constant 0 : index
    %31 = vector.load %arg4[%c80_26, %c0_27] : memref<720x256xf32, #tpu.memory_space<vmem>>, vector<80x256xf32>
    tpu.vector_store %arg4[%c80_26, %c0_27], %30 {strides = array<i32>} : memref<720x256xf32, #tpu.memory_space<vmem>>, vector<80x256xf32>,
    %c15_i32_28 = arith.constant 15 : i32
    %32 = tpu.dynamic_rotate %27 by %c15_i32_28 dim 1 : vector<80x256xf32>, i32 -> vector<80x256xf32>
    %c160_29 = arith.constant 160 : index
    %c0_30 = arith.constant 0 : index
    %33 = vector.load %arg4[%c160_29, %c0_30] : memref<720x256xf32, #tpu.memory_space<vmem>>, vector<80x256xf32>
    tpu.vector_store %arg4[%c160_29, %c0_30], %32 {strides = array<i32>} : memref<720x256xf32, #tpu.memory_space<vmem>>, vector<80x256xf32>,
    %c1_i32_31 = arith.constant 1 : i32
    %34 = tpu.dynamic_rotate %27 by %c1_i32_31 dim 1 : vector<80x256xf32>, i32 -> vector<80x256xf32>
    %c240_32 = arith.constant 240 : index
    %c0_33 = arith.constant 0 : index
    %35 = vector.load %arg4[%c240_32, %c0_33] : memref<720x256xf32, #tpu.memory_space<vmem>>, vector<80x256xf32>
    tpu.vector_store %arg4[%c240_32, %c0_33], %34 {strides = array<i32>} : memref<720x256xf32, #tpu.memory_space<vmem>>, vector<80x256xf32>,
    %c320_34 = arith.constant 320 : index
    %c0_35 = arith.constant 0 : index
    %36 = vector.load %arg4[%c320_34, %c0_35] : memref<720x256xf32, #tpu.memory_space<vmem>>, vector<80x256xf32>
    tpu.vector_store %arg4[%c320_34, %c0_35], %27 {strides = array<i32>} : memref<720x256xf32, #tpu.memory_space<vmem>>, vector<80x256xf32>,
    %c255_i32_36 = arith.constant 255 : i32
    %37 = tpu.dynamic_rotate %27 by %c255_i32_36 dim 1 : vector<80x256xf32>, i32 -> vector<80x256xf32>
    %c400_37 = arith.constant 400 : index
    %c0_38 = arith.constant 0 : index
    %38 = vector.load %arg4[%c400_37, %c0_38] : memref<720x256xf32, #tpu.memory_space<vmem>>, vector<80x256xf32>
    tpu.vector_store %arg4[%c400_37, %c0_38], %37 {strides = array<i32>} : memref<720x256xf32, #tpu.memory_space<vmem>>, vector<80x256xf32>,
    %c241_i32_39 = arith.constant 241 : i32
    %39 = tpu.dynamic_rotate %27 by %c241_i32_39 dim 1 : vector<80x256xf32>, i32 -> vector<80x256xf32>
    %c480_40 = arith.constant 480 : index
    %c0_41 = arith.constant 0 : index
    %40 = vector.load %arg4[%c480_40, %c0_41] : memref<720x256xf32, #tpu.memory_space<vmem>>, vector<80x256xf32>
    tpu.vector_store %arg4[%c480_40, %c0_41], %39 {strides = array<i32>} : memref<720x256xf32, #tpu.memory_space<vmem>>, vector<80x256xf32>,
    %c240_i32_42 = arith.constant 240 : i32
    %41 = tpu.dynamic_rotate %27 by %c240_i32_42 dim 1 : vector<80x256xf32>, i32 -> vector<80x256xf32>
    %c560_43 = arith.constant 560 : index
    %c0_44 = arith.constant 0 : index
    %42 = vector.load %arg4[%c560_43, %c0_44] : memref<720x256xf32, #tpu.memory_space<vmem>>, vector<80x256xf32>
    tpu.vector_store %arg4[%c560_43, %c0_44], %41 {strides = array<i32>} : memref<720x256xf32, #tpu.memory_space<vmem>>, vector<80x256xf32>,
    %c239_i32_45 = arith.constant 239 : i32
    %43 = tpu.dynamic_rotate %27 by %c239_i32_45 dim 1 : vector<80x256xf32>, i32 -> vector<80x256xf32>
    %c640_46 = arith.constant 640 : index
    %c0_47 = arith.constant 0 : index
    %44 = vector.load %arg4[%c640_46, %c0_47] : memref<720x256xf32, #tpu.memory_space<vmem>>, vector<80x256xf32>
    tpu.vector_store %arg4[%c640_46, %c0_47], %43 {strides = array<i32>} : memref<720x256xf32, #tpu.memory_space<vmem>>, vector<80x256xf32>,
    %c1 = arith.constant 1 : index
    %c0_48 = arith.constant 0 : index
    %c0_49 = arith.constant 0 : index
    %45 = vector.load %arg2[%c1, %c0_48, %c0_49] : memref<2x80x720xf32, #tpu.memory_space<vmem>>, vector<1x80x720xf32>
    %46 = vector.shape_cast %45 : vector<1x80x720xf32> to vector<80x720xf32>
    %c0_50 = arith.constant 0 : index
    %c0_51 = arith.constant 0 : index
    %47 = vector.load %arg4[%c0_50, %c0_51] : memref<720x256xf32, #tpu.memory_space<vmem>>, vector<720x256xf32>
    %cst_52 = arith.constant dense<0.000000e+00> : vector<80x256xf32>
    %48 = tpu.matmul %46, %47, %cst_52 {dimension_numbers = #tpu.dot_dimension_numbers<[1], [0], [0], [1], [0, 0, 1, 1], [], []>} : vector<80x720xf32>, vector<720x256xf32>, vector<80x256xf32> -> vector<80x256xf32>
    %c80_53 = arith.constant 80 : index
    %c0_54 = arith.constant 0 : index
    %49 = vector.load %arg3[%c80_53, %c0_54] : memref<160x256xf32, #tpu.memory_space<vmem>>, vector<80x256xf32>
    tpu.vector_store %arg3[%c80_53, %c0_54], %48 {strides = array<i32>} : memref<160x256xf32, #tpu.memory_space<vmem>>, vector<80x256xf32>,
    return
  }
  func.func @transform_0(%arg0: i32) -> (i32, i32) {
    %c0_i32 = arith.constant 0 : i32
    %c0_i32_0 = arith.constant 0 : i32
    %c0_i32_1 = arith.constant 0 : i32
    return %c0_i32, %c0_i32_0 : i32, i32
  }
  func.func @transform_1(%arg0: i32) -> (i32, i32, i32) {
    %c0_i32 = arith.constant 0 : i32
    %c0_i32_0 = arith.constant 0 : i32
    %c0_i32_1 = arith.constant 0 : i32
    %c0_i32_2 = arith.constant 0 : i32
    return %c0_i32, %c0_i32_0, %c0_i32_1 : i32, i32, i32
  }
  func.func @transform_2(%arg0: i32) -> (i32, i32) {
    %c0_i32 = arith.constant 0 : i32
    %c0_i32_0 = arith.constant 0 : i32
    %c0_i32_1 = arith.constant 0 : i32
    return %c0_i32, %c0_i32_0 : i32, i32
  }
}

</mosaic_0001>

<llo_original>
// kernel: relu_grouped_conv2d.1
$region0: #{relu_grouped_conv2d.1}
  #allocation0 [shape = 'u32[]', space=smem, size = 0x4, offset = 0x4, fixed_abs, tag = 'smem constant byte address 0x4 - core index']
  #allocation1 [shape = 'u32[144,128]{1,0:T(1,128)}', space=vmem, size = 0x12000, scoped, tag = 'internal scratch']
  #allocation2 [shape = 'f32[720,256]{1,0:T(8,128)}', space=vmem, size = 0xb4000, scoped, tag = 'scratch operand']
  %s0 = inlined_call_operand.vmem [shape: f32[160,256], index: 0, kind: input, shape index: {}]
  %s1 = inlined_call_operand.vmem [shape: f32[2,80,720], index: 1, kind: input, shape index: {}]
  %s2 = inlined_call_operand.vmem [shape: f32[160,256], index: 2, kind: output, shape index: {}]
  %s3 = sld [smem:[#allocation0]]
  $region18: #{relu_grouped_conv2d.1} parent=0
    _
  %s5 = ssub.s32 1, %s3
  %s6 = scalar_select 0, %s5, %s3
  // Predicated region
  $region2: #{relu_grouped_conv2d.1} parent=0 // pred_check
    _
  $region3: #{relu_grouped_conv2d.1} parent=0 // pred_check_branch
    %8 = sbr.rel (0) target = $region5
  $region4: #{relu_grouped_conv2d.1} parent=0 // pred_region
    _
  $region5: #{relu_grouped_conv2d.1} parent=0 // pred_fallthru
    _
  // Predicated region
  $region6: #{relu_grouped_conv2d.1} parent=0 // pred_check
    _
  $region7: #{relu_grouped_conv2d.1} parent=0 // pred_check_branch
    %10 = sbr.rel (0) target = $region9
  $region8: #{relu_grouped_conv2d.1} parent=0 // pred_region
    _
  $region9: #{relu_grouped_conv2d.1} parent=0 // pred_fallthru
    _
  %v11 = vld [vmem:[%s0] sm:$0xff]
  %v12 = vld [vmem:[%s0 + $0x8] sm:$0xff]
  %v13 = vld [vmem:[%s0 + $0x10] sm:$0xff]
  %v14 = vld [vmem:[%s0 + $0x18] sm:$0xff]
  %v15 = vld [vmem:[%s0 + $0x20] sm:$0xff]
  %v16 = vld [vmem:[%s0 + $0x28] sm:$0xff]
  %v17 = vld [vmem:[%s0 + $0x30] sm:$0xff]
  %v18 = vld [vmem:[%s0 + $0x38] sm:$0xff]
  %v19 = vld [vmem:[%s0 + $0x40] sm:$0xff]
  %v20 = vld [vmem:[%s0 + $0x48] sm:$0xff]
  %v21 = vld [vmem:[%s0 + $0x50] sm:$0xff]
  %v22 = vld [vmem:[%s0 + $0x58] sm:$0xff]
  %v23 = vld [vmem:[%s0 + $0x60] sm:$0xff]
  %v24 = vld [vmem:[%s0 + $0x68] sm:$0xff]
  %v25 = vld [vmem:[%s0 + $0x70] sm:$0xff]
  %v26 = vld [vmem:[%s0 + $0x78] sm:$0xff]
  %v27 = vld [vmem:[%s0 + $0x80] sm:$0xff]
  %v28 = vld [vmem:[%s0 + $0x88] sm:$0xff]
  %v29 = vld [vmem:[%s0 + $0x90] sm:$0xff]
  %v30 = vld [vmem:[%s0 + $0x98] sm:$0xff]
  %v31 = vmax.f32 %v11, 0.0
  %v32 = vmax.f32 %v12, 0.0
  %v33 = vmax.f32 %v13, 0.0
  %v34 = vmax.f32 %v14, 0.0
  %v35 = vmax.f32 %v15, 0.0
  %v36 = vmax.f32 %v16, 0.0
  %v37 = vmax.f32 %v17, 0.0
  %v38 = vmax.f32 %v18, 0.0
  %v39 = vmax.f32 %v19, 0.0
  %v40 = vmax.f32 %v20, 0.0
  %v41 = vmax.f32 %v21, 0.0
  %v42 = vmax.f32 %v22, 0.0
  %v43 = vmax.f32 %v23, 0.0
  %v44 = vmax.f32 %v24, 0.0
  %v45 = vmax.f32 %v25, 0.0
  %v46 = vmax.f32 %v26, 0.0
  %v47 = vmax.f32 %v27, 0.0
  %v48 = vmax.f32 %v28, 0.0
  %v49 = vmax.f32 %v29, 0.0
  %v50 = vmax.f32 %v30, 0.0
  %51 = vrot.lane.b32.xlu0 %v31, 17
  %v52 = vpop.permute.xlu0 %51
  %53 = vrot.lane.b32.xlu0 %v33, 17
  %v54 = vpop.permute.xlu0 %53
  %55 = vrot.lane.b32.xlu0 %v35, 17
  %v56 = vpop.permute.xlu0 %55
  %57 = vrot.lane.b32.xlu0 %v37, 17
  %v58 = vpop.permute.xlu0 %57
  %59 = vrot.lane.b32.xlu0 %v39, 17
  %v60 = vpop.permute.xlu0 %59
  %61 = vrot.lane.b32.xlu0 %v41, 17
  %v62 = vpop.permute.xlu0 %61
  %63 = vrot.lane.b32.xlu0 %v43, 17
  %v64 = vpop.permute.xlu0 %63
  %65 = vrot.lane.b32.xlu0 %v45, 17
  %v66 = vpop.permute.xlu0 %65
  %67 = vrot.lane.b32.xlu0 %v47, 17
  %v68 = vpop.permute.xlu0 %67
  %69 = vrot.lane.b32.xlu0 %v49, 17
  %v70 = vpop.permute.xlu0 %69
  %71 = vrot.lane.b32.xlu0 %v32, 17
  %v72 = vpop.permute.xlu0 %71
  %73 = vrot.lane.b32.xlu0 %v34, 17
  %v74 = vpop.permute.xlu0 %73
  %75 = vrot.lane.b32.xlu0 %v36, 17
  %v76 = vpop.permute.xlu0 %75
  %77 = vrot.lane.b32.xlu0 %v38, 17
  %v78 = vpop.permute.xlu0 %77
  %79 = vrot.lane.b32.xlu0 %v40, 17
  %v80 = vpop.permute.xlu0 %79
  %81 = vrot.lane.b32.xlu0 %v42, 17
  %v82 = vpop.permute.xlu0 %81
  %83 = vrot.lane.b32.xlu0 %v44, 17
  %v84 = vpop.permute.xlu0 %83
  %85 = vrot.lane.b32.xlu0 %v46, 17
  %v86 = vpop.permute.xlu0 %85
  %87 = vrot.lane.b32.xlu0 %v48, 17
  %v88 = vpop.permute.xlu0 %87
  %89 = vrot.lane.b32.xlu0 %v50, 17
  %v90 = vpop.permute.xlu0 %89
  %v91 = vlaneseq
  %v92 = vand.u32 %v91, 127
  %vm93 = vcmp.lt.s32.totalorder %v92, 17
  %v94 = vsel %vm93, %v52, %v72
  %v95 = vsel %vm93, %v54, %v74
  %v96 = vsel %vm93, %v56, %v76
  %v97 = vsel %vm93, %v58, %v78
  %v98 = vsel %vm93, %v60, %v80
  %v99 = vsel %vm93, %v62, %v82
  %v100 = vsel %vm93, %v64, %v84
  %v101 = vsel %vm93, %v66, %v86
  %v102 = vsel %vm93, %v68, %v88
  %v103 = vsel %vm93, %v70, %v90
  %v104 = vsel %vm93, %v72, %v52
  %v105 = vsel %vm93, %v74, %v54
  %v106 = vsel %vm93, %v76, %v56
  %v107 = vsel %vm93, %v78, %v58
  %v108 = vsel %vm93, %v80, %v60
  %v109 = vsel %vm93, %v82, %v62
  %v110 = vsel %vm93, %v84, %v64
  %v111 = vsel %vm93, %v86, %v66
  %v112 = vsel %vm93, %v88, %v68
  %v113 = vsel %vm93, %v90, %v70
  %114 = vst [vmem:[#allocation2] sm:$0xff] %v104
  %115 = vst [vmem:[#allocation2 + $0x8] sm:$0xff] %v94
  %116 = vst [vmem:[#allocation2 + $0x10] sm:$0xff] %v105
  %117 = vst [vmem:[#allocation2 + $0x18] sm:$0xff] %v95
  %118 = vst [vmem:[#allocation2 + $0x20] sm:$0xff] %v106
  %119 = vst [vmem:[#allocation2 + $0x28] sm:$0xff] %v96
  %120 = vst [vmem:[#allocation2 + $0x30] sm:$0xff] %v107
  %121 = vst [vmem:[#allocation2 + $0x38] sm:$0xff] %v97
  %122 = vst [vmem:[#allocation2 + $0x40] sm:$0xff] %v108
  %123 = vst [vmem:[#allocation2 + $0x48] sm:$0xff] %v98
  %124 = vst [vmem:[#allocation2 + $0x50] sm:$0xff] %v109
  %125 = vst [vmem:[#allocation2 + $0x58] sm:$0xff] %v99
  %126 = vst [vmem:[#allocation2 + $0x60] sm:$0xff] %v110
  %127 = vst [vmem:[#allocation2 + $0x68] sm:$0xff] %v100
  %128 = vst [vmem:[#allocation2 + $0x70] sm:$0xff] %v111
  %129 = vst [vmem:[#allocation2 + $0x78] sm:$0xff] %v101
  %130 = vst [vmem:[#allocation2 + $0x80] sm:$0xff] %v112
  %131 = vst [vmem:[#allocation2 + $0x88] sm:$0xff] %v102
  %132 = vst [vmem:[#allocation2 + $0x90] sm:$0xff] %v113
  %133 = vst [vmem:[#allocation2 + $0x98] sm:$0xff] %v103
  %134 = vrot.lane.b32.xlu0 %v31, 16
  %v135 = vpop.permute.xlu0 %134
  %136 = vrot.lane.b32.xlu0 %v33, 16
  %v137 = vpop.permute.xlu0 %136
  %138 = vrot.lane.b32.xlu0 %v35, 16
  %v139 = vpop.permute.xlu0 %138
  %140 = vrot.lane.b32.xlu0 %v37, 16
  %v141 = vpop.permute.xlu0 %140
  %142 = vrot.lane.b32.xlu0 %v39, 16
  %v143 = vpop.permute.xlu0 %142
  %144 = vrot.lane.b32.xlu0 %v41, 16
  %v145 = vpop.permute.xlu0 %144
  %146 = vrot.lane.b32.xlu0 %v43, 16
  %v147 = vpop.permute.xlu0 %146
  %148 = vrot.lane.b32.xlu0 %v45, 16
  %v149 = vpop.permute.xlu0 %148
  %150 = vrot.lane.b32.xlu0 %v47, 16
  %v151 = vpop.permute.xlu0 %150
  %152 = vrot.lane.b32.xlu0 %v49, 16
  %v153 = vpop.permute.xlu0 %152
  %154 = vrot.lane.b32.xlu0 %v32, 16
  %v155 = vpop.permute.xlu0 %154
  %156 = vrot.lane.b32.xlu0 %v34, 16
  %v157 = vpop.permute.xlu0 %156
  %158 = vrot.lane.b32.xlu0 %v36, 16
  %v159 = vpop.permute.xlu0 %158
  %160 = vrot.lane.b32.xlu0 %v38, 16
  %v161 = vpop.permute.xlu0 %160
  %162 = vrot.lane.b32.xlu0 %v40, 16
  %v163 = vpop.permute.xlu0 %162
  %164 = vrot.lane.b32.xlu0 %v42, 16
  %v165 = vpop.permute.xlu0 %164
  %166 = vrot.lane.b32.xlu0 %v44, 16
  %v167 = vpop.permute.xlu0 %166
  %168 = vrot.lane.b32.xlu0 %v46, 16
  %v169 = vpop.permute.xlu0 %168
  %170 = vrot.lane.b32.xlu0 %v48, 16
  %v171 = vpop.permute.xlu0 %170
  %172 = vrot.lane.b32.xlu0 %v50, 16
  %v173 = vpop.permute.xlu0 %172
  %vm174 = vcmp.lt.s32.totalorder %v92, 16
  %v175 = vsel %vm174, %v135, %v155
  %v176 = vsel %vm174, %v137, %v157
  %v177 = vsel %vm174, %v139, %v159
  %v178 = vsel %vm174, %v141, %v161
  %v179 = vsel %vm174, %v143, %v163
  %v180 = vsel %vm174, %v145, %v165
  %v181 = vsel %vm174, %v147, %v167
  %v182 = vsel %vm174, %v149, %v169
  %v183 = vsel %vm174, %v151, %v171
  %v184 = vsel %vm174, %v153, %v173
  %v185 = vsel %vm174, %v155, %v135
  %v186 = vsel %vm174, %v157, %v137
  %v187 = vsel %vm174, %v159, %v139
  %v188 = vsel %vm174, %v161, %v141
  %v189 = vsel %vm174, %v163, %v143
  %v190 = vsel %vm174, %v165, %v145
  %v191 = vsel %vm174, %v167, %v147
  %v192 = vsel %vm174, %v169, %v149
  %v193 = vsel %vm174, %v171, %v151
  %v194 = vsel %vm174, %v173, %v153
  %195 = vst [vmem:[#allocation2 + $0xa0] sm:$0xff] %v185
  %196 = vst [vmem:[#allocation2 + $0xa8] sm:$0xff] %v175
  %197 = vst [vmem:[#allocation2 + $0xb0] sm:$0xff] %v186
  %198 = vst [vmem:[#allocation2 + $0xb8] sm:$0xff] %v176
  %199 = vst [vmem:[#allocation2 + $0xc0] sm:$0xff] %v187
  %200 = vst [vmem:[#allocation2 + $0xc8] sm:$0xff] %v177
  %201 = vst [vmem:[#allocation2 + $0xd0] sm:$0xff] %v188
  %202 = vst [vmem:[#allocation2 + $0xd8] sm:$0xff] %v178
  %203 = vst [vmem:[#allocation2 + $0xe0] sm:$0xff] %v189
  %204 = vst [vmem:[#allocation2 + $0xe8] sm:$0xff] %v179
  %205 = vst [vmem:[#allocation2 + $0xf0] sm:$0xff] %v190
  %206 = vst [vmem:[#allocation2 + $0xf8] sm:$0xff] %v180
  %207 = vst [vmem:[#allocation2 + $0x100] sm:$0xff] %v191
  %208 = vst [vmem:[#allocation2 + $0x108] sm:$0xff] %v181
  %209 = vst [vmem:[#allocation2 + $0x110] sm:$0xff] %v192
  %210 = vst [vmem:[#allocation2 + $0x118] sm:$0xff] %v182
  %211 = vst [vmem:[#allocation2 + $0x120] sm:$0xff] %v193
  %212 = vst [vmem:[#allocation2 + $0x128] sm:$0xff] %v183
  %213 = vst [vmem:[#allocation2 + $0x130] sm:$0xff] %v194
  %214 = vst [vmem:[#allocation2 + $0x138] sm:$0xff] %v184
  %215 = vrot.lane.b32.xlu0 %v31, 15
  %v216 = vpop.permute.xlu0 %215
  %217 = vrot.lane.b32.xlu0 %v33, 15
  %v218 = vpop.permute.xlu0 %217
  %219 = vrot.lane.b32.xlu0 %v35, 15
  %v220 = vpop.permute.xlu0 %219
  %221 = vrot.lane.b32.xlu0 %v37, 15
  %v222 = vpop.permute.xlu0 %221
  %223 = vrot.lane.b32.xlu0 %v39, 15
  %v224 = vpop.permute.xlu0 %223
  %225 = vrot.lane.b32.xlu0 %v41, 15
  %v226 = vpop.permute.xlu0 %225
  %227 = vrot.lane.b32.xlu0 %v43, 15
  %v228 = vpop.permute.xlu0 %227
  %229 = vrot.lane.b32.xlu0 %v45, 15
  %v230 = vpop.permute.xlu0 %229
  %231 = vrot.lane.b32.xlu0 %v47, 15
  %v232 = vpop.permute.xlu0 %231
  %233 = vrot.lane.b32.xlu0 %v49, 15
  %v234 = vpop.permute.xlu0 %233
  %235 = vrot.lane.b32.xlu0 %v32, 15
  %v236 = vpop.permute.xlu0 %235
  %237 = vrot.lane.b32.xlu0 %v34, 15
  %v238 = vpop.permute.xlu0 %237
  %239 = vrot.lane.b32.xlu0 %v36, 15
  %v240 = vpop.permute.xlu0 %239
  %241 = vrot.lane.b32.xlu0 %v38, 15
  %v242 = vpop.permute.xlu0 %241
  %243 = vrot.lane.b32.xlu0 %v40, 15
  %v244 = vpop.permute.xlu0 %243
  %245 = vrot.lane.b32.xlu0 %v42, 15
  %v246 = vpop.permute.xlu0 %245
  %247 = vrot.lane.b32.xlu0 %v44, 15
  %v248 = vpop.permute.xlu0 %247
  %249 = vrot.lane.b32.xlu0 %v46, 15
  %v250 = vpop.permute.xlu0 %249
  %251 = vrot.lane.b32.xlu0 %v48, 15
  %v252 = vpop.permute.xlu0 %251
  %253 = vrot.lane.b32.xlu0 %v50, 15
  %v254 = vpop.permute.xlu0 %253
  %vm255 = vcmp.lt.s32.totalorder %v92, 15
  %v256 = vsel %vm255, %v216, %v236
  %v257 = vsel %vm255, %v218, %v238
  %v258 = vsel %vm255, %v220, %v240
  %v259 = vsel %vm255, %v222, %v242
  %v260 = vsel %vm255, %v224, %v244
  %v261 = vsel %vm255, %v226, %v246
  %v262 = vsel %vm255, %v228, %v248
  %v263 = vsel %vm255, %v230, %v250
  %v264 = vsel %vm255, %v232, %v252
  %v265 = vsel %vm255, %v234, %v254
  %v266 = vsel %vm255, %v236, %v216
  %v267 = vsel %vm255, %v238, %v218
  %v268 = vsel %vm255, %v240, %v220
  %v269 = vsel %vm255, %v242, %v222
  %v270 = vsel %vm255, %v244, %v224
  %v271 = vsel %vm255, %v246, %v226
  %v272 = vsel %vm255, %v248, %v228
  %v273 = vsel %vm255, %v250, %v230
  %v274 = vsel %vm255, %v252, %v232
  %v275 = vsel %vm255, %v254, %v234
  %276 = vst [vmem:[#allocation2 + $0x140] sm:$0xff] %v266
  %277 = vst [vmem:[#allocation2 + $0x148] sm:$0xff] %v256
  %278 = vst [vmem:[#allocation2 + $0x150] sm:$0xff] %v267
  %279 = vst [vmem:[#allocation2 + $0x158] sm:$0xff] %v257
  %280 = vst [vmem:[#allocation2 + $0x160] sm:$0xff] %v268
  %281 = vst [vmem:[#allocation2 + $0x168] sm:$0xff] %v258
  %282 = vst [vmem:[#allocation2 + $0x170] sm:$0xff] %v269
  %283 = vst [vmem:[#allocation2 + $0x178] sm:$0xff] %v259
  %284 = vst [vmem:[#allocation2 + $0x180] sm:$0xff] %v270
  %285 = vst [vmem:[#allocation2 + $0x188] sm:$0xff] %v260
  %286 = vst [vmem:[#allocation2 + $0x190] sm:$0xff] %v271
  %287 = vst [vmem:[#allocation2 + $0x198] sm:$0xff] %v261
  %288 = vst [vmem:[#allocation2 + $0x1a0] sm:$0xff] %v272
  %289 = vst [vmem:[#allocation2 + $0x1a8] sm:$0xff] %v262
  %290 = vst [vmem:[#allocation2 + $0x1b0] sm:$0xff] %v273
  %291 = vst [vmem:[#allocation2 + $0x1b8] sm:$0xff] %v263
  %292 = vst [vmem:[#allocation2 + $0x1c0] sm:$0xff] %v274
  %293 = vst [vmem:[#allocation2 + $0x1c8] sm:$0xff] %v264
  %294 = vst [vmem:[#allocation2 + $0x1d0] sm:$0xff] %v275
  %295 = vst [vmem:[#allocation2 + $0x1d8] sm:$0xff] %v265
  %296 = vrot.lane.b32.xlu0 %v31, 1
  %v297 = vpop.permute.xlu0 %296
  %298 = vrot.lane.b32.xlu0 %v33, 1
  %v299 = vpop.permute.xlu0 %298
  %300 = vrot.lane.b32.xlu0 %v35, 1
  %v301 = vpop.permute.xlu0 %300
  %302 = vrot.lane.b32.xlu0 %v37, 1
  %v303 = vpop.permute.xlu0 %302
  %304 = vrot.lane.b32.xlu0 %v39, 1
  %v305 = vpop.permute.xlu0 %304
  %306 = vrot.lane.b32.xlu0 %v41, 1
  %v307 = vpop.permute.xlu0 %306
  %308 = vrot.lane.b32.xlu0 %v43, 1
  %v309 = vpop.permute.xlu0 %308
  %310 = vrot.lane.b32.xlu0 %v45, 1
  %v311 = vpop.permute.xlu0 %310
  %312 = vrot.lane.b32.xlu0 %v47, 1
  %v313 = vpop.permute.xlu0 %312
  %314 = vrot.lane.b32.xlu0 %v49, 1
  %v315 = vpop.permute.xlu0 %314
  %316 = vrot.lane.b32.xlu0 %v32, 1
  %v317 = vpop.permute.xlu0 %316
  %318 = vrot.lane.b32.xlu0 %v34, 1
  %v319 = vpop.permute.xlu0 %318
  %320 = vrot.lane.b32.xlu0 %v36, 1
  %v321 = vpop.permute.xlu0 %320
  %322 = vrot.lane.b32.xlu0 %v38, 1
  %v323 = vpop.permute.xlu0 %322
  %324 = vrot.lane.b32.xlu0 %v40, 1
  %v325 = vpop.permute.xlu0 %324
  %326 = vrot.lane.b32.xlu0 %v42, 1
  %v327 = vpop.permute.xlu0 %326
  %328 = vrot.lane.b32.xlu0 %v44, 1
  %v329 = vpop.permute.xlu0 %328
  %330 = vrot.lane.b32.xlu0 %v46, 1
  %v331 = vpop.permute.xlu0 %330
  %332 = vrot.lane.b32.xlu0 %v48, 1
  %v333 = vpop.permute.xlu0 %332
  %334 = vrot.lane.b32.xlu0 %v50, 1
  %v335 = vpop.permute.xlu0 %334
  %vm336 = vcmp.lt.s32.totalorder %v92, 1
  %v337 = vsel %vm336, %v297, %v317
  %v338 = vsel %vm336, %v299, %v319
  %v339 = vsel %vm336, %v301, %v321
  %v340 = vsel %vm336, %v303, %v323
  %v341 = vsel %vm336, %v305, %v325
  %v342 = vsel %vm336, %v307, %v327
  %v343 = vsel %vm336, %v309, %v329
  %v344 = vsel %vm336, %v311, %v331
  %v345 = vsel %vm336, %v313, %v333
  %v346 = vsel %vm336, %v315, %v335
  %v347 = vsel %vm336, %v317, %v297
  %v348 = vsel %vm336, %v319, %v299
  %v349 = vsel %vm336, %v321, %v301
  %v350 = vsel %vm336, %v323, %v303
  %v351 = vsel %vm336, %v325, %v305
  %v352 = vsel %vm336, %v327, %v307
  %v353 = vsel %vm336, %v329, %v309
  %v354 = vsel %vm336, %v331, %v311
  %v355 = vsel %vm336, %v333, %v313
  %v356 = vsel %vm336, %v335, %v315
  %357 = vst [vmem:[#allocation2 + $0x1e0] sm:$0xff] %v347
  %358 = vst [vmem:[#allocation2 + $0x1e8] sm:$0xff] %v337
  %359 = vst [vmem:[#allocation2 + $0x1f0] sm:$0xff] %v348
  %360 = vst [vmem:[#allocation2 + $0x1f8] sm:$0xff] %v338
  %361 = vst [vmem:[#allocation2 + $0x200] sm:$0xff] %v349
  %362 = vst [vmem:[#allocation2 + $0x208] sm:$0xff] %v339
  %363 = vst [vmem:[#allocation2 + $0x210] sm:$0xff] %v350
  %364 = vst [vmem:[#allocation2 + $0x218] sm:$0xff] %v340
  %365 = vst [vmem:[#allocation2 + $0x220] sm:$0xff] %v351
  %366 = vst [vmem:[#allocation2 + $0x228] sm:$0xff] %v341
  %367 = vst [vmem:[#allocation2 + $0x230] sm:$0xff] %v352
  %368 = vst [vmem:[#allocation2 + $0x238] sm:$0xff] %v342
  %369 = vst [vmem:[#allocation2 + $0x240] sm:$0xff] %v353
  %370 = vst [vmem:[#allocation2 + $0x248] sm:$0xff] %v343
  %371 = vst [vmem:[#allocation2 + $0x250] sm:$0xff] %v354
  %372 = vst [vmem:[#allocation2 + $0x258] sm:$0xff] %v344
  %373 = vst [vmem:[#allocation2 + $0x260] sm:$0xff] %v355
  %374 = vst [vmem:[#allocation2 + $0x268] sm:$0xff] %v345
  %375 = vst [vmem:[#allocation2 + $0x270] sm:$0xff] %v356
  %376 = vst [vmem:[#allocation2 + $0x278] sm:$0xff] %v346
  %377 = vst [vmem:[#allocation2 + $0x280] sm:$0xff] %v31
  %378 = vst [vmem:[#allocation2 + $0x288] sm:$0xff] %v32
  %379 = vst [vmem:[#allocation2 + $0x290] sm:$0xff] %v33
  %380 = vst [vmem:[#allocation2 + $0x298] sm:$0xff] %v34
  %381 = vst [vmem:[#allocation2 + $0x2a0] sm:$0xff] %v35
  %382 = vst [vmem:[#allocation2 + $0x2a8] sm:$0xff] %v36
  %383 = vst [vmem:[#allocation2 + $0x2b0] sm:$0xff] %v37
  %384 = vst [vmem:[#allocation2 + $0x2b8] sm:$0xff] %v38
  %385 = vst [vmem:[#allocation2 + $0x2c0] sm:$0xff] %v39
  %386 = vst [vmem:[#allocation2 + $0x2c8] sm:$0xff] %v40
  %387 = vst [vmem:[#allocation2 + $0x2d0] sm:$0xff] %v41
  %388 = vst [vmem:[#allocation2 + $0x2d8] sm:$0xff] %v42
  %389 = vst [vmem:[#allocation2 + $0x2e0] sm:$0xff] %v43
  %390 = vst [vmem:[#allocation2 + $0x2e8] sm:$0xff] %v44
  %391 = vst [vmem:[#allocation2 + $0x2f0] sm:$0xff] %v45
  %392 = vst [vmem:[#allocation2 + $0x2f8] sm:$0xff] %v46
  %393 = vst [vmem:[#allocation2 + $0x300] sm:$0xff] %v47
  %394 = vst [vmem:[#allocation2 + $0x308] sm:$0xff] %v48
  %395 = vst [vmem:[#allocation2 + $0x310] sm:$0xff] %v49
  %396 = vst [vmem:[#allocation2 + $0x318] sm:$0xff] %v50
  %397 = vrot.lane.b32.xlu0 %v31, 127
  %v398 = vpop.permute.xlu0 %397
  %399 = vrot.lane.b32.xlu0 %v33, 127
  %v400 = vpop.permute.xlu0 %399
  %401 = vrot.lane.b32.xlu0 %v35, 127
  %v402 = vpop.permute.xlu0 %401
  %403 = vrot.lane.b32.xlu0 %v37, 127
  %v404 = vpop.permute.xlu0 %403
  %405 = vrot.lane.b32.xlu0 %v39, 127
  %v406 = vpop.permute.xlu0 %405
  %407 = vrot.lane.b32.xlu0 %v41, 127
  %v408 = vpop.permute.xlu0 %407
  %409 = vrot.lane.b32.xlu0 %v43, 127
  %v410 = vpop.permute.xlu0 %409
  %411 = vrot.lane.b32.xlu0 %v45, 127
  %v412 = vpop.permute.xlu0 %411
  %413 = vrot.lane.b32.xlu0 %v47, 127
  %v414 = vpop.permute.xlu0 %413
  %415 = vrot.lane.b32.xlu0 %v49, 127
  %v416 = vpop.permute.xlu0 %415
  %417 = vrot.lane.b32.xlu0 %v32, 127
  %v418 = vpop.permute.xlu0 %417
  %419 = vrot.lane.b32.xlu0 %v34, 127
  %v420 = vpop.permute.xlu0 %419
  %421 = vrot.lane.b32.xlu0 %v36, 127
  %v422 = vpop.permute.xlu0 %421
  %423 = vrot.lane.b32.xlu0 %v38, 127
  %v424 = vpop.permute.xlu0 %423
  %425 = vrot.lane.b32.xlu0 %v40, 127
  %v426 = vpop.permute.xlu0 %425
  %427 = vrot.lane.b32.xlu0 %v42, 127
  %v428 = vpop.permute.xlu0 %427
  %429 = vrot.lane.b32.xlu0 %v44, 127
  %v430 = vpop.permute.xlu0 %429
  %431 = vrot.lane.b32.xlu0 %v46, 127
  %v432 = vpop.permute.xlu0 %431
  %433 = vrot.lane.b32.xlu0 %v48, 127
  %v434 = vpop.permute.xlu0 %433
  %435 = vrot.lane.b32.xlu0 %v50, 127
  %v436 = vpop.permute.xlu0 %435
  %vm437 = vcmp.lt.s32.totalorder %v92, 127
  %v438 = vsel %vm437, %v398, %v418
  %v439 = vsel %vm437, %v400, %v420
  %v440 = vsel %vm437, %v402, %v422
  %v441 = vsel %vm437, %v404, %v424
  %v442 = vsel %vm437, %v406, %v426
  %v443 = vsel %vm437, %v408, %v428
  %v444 = vsel %vm437, %v410, %v430
  %v445 = vsel %vm437, %v412, %v432
  %v446 = vsel %vm437, %v414, %v434
  %v447 = vsel %vm437, %v416, %v436
  %v448 = vsel %vm437, %v418, %v398
  %v449 = vsel %vm437, %v420, %v400
  %v450 = vsel %vm437, %v422, %v402
  %v451 = vsel %vm437, %v424, %v404
  %v452 = vsel %vm437, %v426, %v406
  %v453 = vsel %vm437, %v428, %v408
  %v454 = vsel %vm437, %v430, %v410
  %v455 = vsel %vm437, %v432, %v412
  %v456 = vsel %vm437, %v434, %v414
  %v457 = vsel %vm437, %v436, %v416
  %458 = vst [vmem:[#allocation2 + $0x320] sm:$0xff] %v438
  %459 = vst [vmem:[#allocation2 + $0x328] sm:$0xff] %v448
  %460 = vst [vmem:[#allocation2 + $0x330] sm:$0xff] %v439
  %461 = vst [vmem:[#allocation2 + $0x338] sm:$0xff] %v449
  %462 = vst [vmem:[#allocation2 + $0x340] sm:$0xff] %v440
  %463 = vst [vmem:[#allocation2 + $0x348] sm:$0xff] %v450
  %464 = vst [vmem:[#allocation2 + $0x350] sm:$0xff] %v441
  %465 = vst [vmem:[#allocation2 + $0x358] sm:$0xff] %v451
  %466 = vst [vmem:[#allocation2 + $0x360] sm:$0xff] %v442
  %467 = vst [vmem:[#allocation2 + $0x368] sm:$0xff] %v452
  %468 = vst [vmem:[#allocation2 + $0x370] sm:$0xff] %v443
  %469 = vst [vmem:[#allocation2 + $0x378] sm:$0xff] %v453
  %470 = vst [vmem:[#allocation2 + $0x380] sm:$0xff] %v444
  %471 = vst [vmem:[#allocation2 + $0x388] sm:$0xff] %v454
  %472 = vst [vmem:[#allocation2 + $0x390] sm:$0xff] %v445
  %473 = vst [vmem:[#allocation2 + $0x398] sm:$0xff] %v455
  %474 = vst [vmem:[#allocation2 + $0x3a0] sm:$0xff] %v446
  %475 = vst [vmem:[#allocation2 + $0x3a8] sm:$0xff] %v456
  %476 = vst [vmem:[#allocation2 + $0x3b0] sm:$0xff] %v447
  %477 = vst [vmem:[#allocation2 + $0x3b8] sm:$0xff] %v457
  %478 = vrot.lane.b32.xlu0 %v31, 113
  %v479 = vpop.permute.xlu0 %478
  %480 = vrot.lane.b32.xlu0 %v33, 113
  %v481 = vpop.permute.xlu0 %480
  %482 = vrot.lane.b32.xlu0 %v35, 113
  %v483 = vpop.permute.xlu0 %482
  %484 = vrot.lane.b32.xlu0 %v37, 113
  %v485 = vpop.permute.xlu0 %484
  %486 = vrot.lane.b32.xlu0 %v39, 113
  %v487 = vpop.permute.xlu0 %486
  %488 = vrot.lane.b32.xlu0 %v41, 113
  %v489 = vpop.permute.xlu0 %488
  %490 = vrot.lane.b32.xlu0 %v43, 113
  %v491 = vpop.permute.xlu0 %490
  %492 = vrot.lane.b32.xlu0 %v45, 113
  %v493 = vpop.permute.xlu0 %492
  %494 = vrot.lane.b32.xlu0 %v47, 113
  %v495 = vpop.permute.xlu0 %494
  %496 = vrot.lane.b32.xlu0 %v49, 113
  %v497 = vpop.permute.xlu0 %496
  %498 = vrot.lane.b32.xlu0 %v32, 113
  %v499 = vpop.permute.xlu0 %498
  %500 = vrot.lane.b32.xlu0 %v34, 113
  %v501 = vpop.permute.xlu0 %500
  %502 = vrot.lane.b32.xlu0 %v36, 113
  %v503 = vpop.permute.xlu0 %502
  %504 = vrot.lane.b32.xlu0 %v38, 113
  %v505 = vpop.permute.xlu0 %504
  %506 = vrot.lane.b32.xlu0 %v40, 113
  %v507 = vpop.permute.xlu0 %506
  %508 = vrot.lane.b32.xlu0 %v42, 113
  %v509 = vpop.permute.xlu0 %508
  %510 = vrot.lane.b32.xlu0 %v44, 113
  %v511 = vpop.permute.xlu0 %510
  %512 = vrot.lane.b32.xlu0 %v46, 113
  %v513 = vpop.permute.xlu0 %512
  %514 = vrot.lane.b32.xlu0 %v48, 113
  %v515 = vpop.permute.xlu0 %514
  %516 = vrot.lane.b32.xlu0 %v50, 113
  %v517 = vpop.permute.xlu0 %516
  %vm518 = vcmp.lt.s32.totalorder %v92, 113
  %v519 = vsel %vm518, %v479, %v499
  %v520 = vsel %vm518, %v481, %v501
  %v521 = vsel %vm518, %v483, %v503
  %v522 = vsel %vm518, %v485, %v505
  %v523 = vsel %vm518, %v487, %v507
  %v524 = vsel %vm518, %v489, %v509
  %v525 = vsel %vm518, %v491, %v511
  %v526 = vsel %vm518, %v493, %v513
  %v527 = vsel %vm518, %v495, %v515
  %v528 = vsel %vm518, %v497, %v517
  %v529 = vsel %vm518, %v499, %v479
  %v530 = vsel %vm518, %v501, %v481
  %v531 = vsel %vm518, %v503, %v483
  %v532 = vsel %vm518, %v505, %v485
  %v533 = vsel %vm518, %v507, %v487
  %v534 = vsel %vm518, %v509, %v489
  %v535 = vsel %vm518, %v511, %v491
  %v536 = vsel %vm518, %v513, %v493
  %v537 = vsel %vm518, %v515, %v495
  %v538 = vsel %vm518, %v517, %v497
  %539 = vst [vmem:[#allocation2 + $0x3c0] sm:$0xff] %v519
  %540 = vst [vmem:[#allocation2 + $0x3c8] sm:$0xff] %v529
  %541 = vst [vmem:[#allocation2 + $0x3d0] sm:$0xff] %v520
  %542 = vst [vmem:[#allocation2 + $0x3d8] sm:$0xff] %v530
  %543 = vst [vmem:[#allocation2 + $0x3e0] sm:$0xff] %v521
  %544 = vst [vmem:[#allocation2 + $0x3e8] sm:$0xff] %v531
  %545 = vst [vmem:[#allocation2 + $0x3f0] sm:$0xff] %v522
  %546 = vst [vmem:[#allocation2 + $0x3f8] sm:$0xff] %v532
  %547 = vst [vmem:[#allocation2 + $0x400] sm:$0xff] %v523
  %548 = vst [vmem:[#allocation2 + $0x408] sm:$0xff] %v533
  %549 = vst [vmem:[#allocation2 + $0x410] sm:$0xff] %v524
  %550 = vst [vmem:[#allocation2 + $0x418] sm:$0xff] %v534
  %551 = vst [vmem:[#allocation2 + $0x420] sm:$0xff] %v525
  %552 = vst [vmem:[#allocation2 + $0x428] sm:$0xff] %v535
  %553 = vst [vmem:[#allocation2 + $0x430] sm:$0xff] %v526
  %554 = vst [vmem:[#allocation2 + $0x438] sm:$0xff] %v536
  %555 = vst [vmem:[#allocation2 + $0x440] sm:$0xff] %v527
  %556 = vst [vmem:[#allocation2 + $0x448] sm:$0xff] %v537
  %557 = vst [vmem:[#allocation2 + $0x450] sm:$0xff] %v528
  %558 = vst [vmem:[#allocation2 + $0x458] sm:$0xff] %v538
  %559 = vrot.lane.b32.xlu0 %v31, 112
  %v560 = vpop.permute.xlu0 %559
  %561 = vrot.lane.b32.xlu0 %v33, 112
  %v562 = vpop.permute.xlu0 %561
  %563 = vrot.lane.b32.xlu0 %v35, 112
  %v564 = vpop.permute.xlu0 %563
  %565 = vrot.lane.b32.xlu0 %v37, 112
  %v566 = vpop.permute.xlu0 %565
  %567 = vrot.lane.b32.xlu0 %v39, 112
  %v568 = vpop.permute.xlu0 %567
  %569 = vrot.lane.b32.xlu0 %v41, 112
  %v570 = vpop.permute.xlu0 %569
  %571 = vrot.lane.b32.xlu0 %v43, 112
  %v572 = vpop.permute.xlu0 %571
  %573 = vrot.lane.b32.xlu0 %v45, 112
  %v574 = vpop.permute.xlu0 %573
  %575 = vrot.lane.b32.xlu0 %v47, 112
  %v576 = vpop.permute.xlu0 %575
  %577 = vrot.lane.b32.xlu0 %v49, 112
  %v578 = vpop.permute.xlu0 %577
  %579 = vrot.lane.b32.xlu0 %v32, 112
  %v580 = vpop.permute.xlu0 %579
  %581 = vrot.lane.b32.xlu0 %v34, 112
  %v582 = vpop.permute.xlu0 %581
  %583 = vrot.lane.b32.xlu0 %v36, 112
  %v584 = vpop.permute.xlu0 %583
  %585 = vrot.lane.b32.xlu0 %v38, 112
  %v586 = vpop.permute.xlu0 %585
  %587 = vrot.lane.b32.xlu0 %v40, 112
  %v588 = vpop.permute.xlu0 %587
  %589 = vrot.lane.b32.xlu0 %v42, 112
  %v590 = vpop.permute.xlu0 %589
  %591 = vrot.lane.b32.xlu0 %v44, 112
  %v592 = vpop.permute.xlu0 %591
  %593 = vrot.lane.b32.xlu0 %v46, 112
  %v594 = vpop.permute.xlu0 %593
  %595 = vrot.lane.b32.xlu0 %v48, 112
  %v596 = vpop.permute.xlu0 %595
  %597 = vrot.lane.b32.xlu0 %v50, 112
  %v598 = vpop.permute.xlu0 %597
  %vm599 = vcmp.lt.s32.totalorder %v92, 112
  %v600 = vsel %vm599, %v560, %v580
  %v601 = vsel %vm599, %v562, %v582
  %v602 = vsel %vm599, %v564, %v584
  %v603 = vsel %vm599, %v566, %v586
  %v604 = vsel %vm599, %v568, %v588
  %v605 = vsel %vm599, %v570, %v590
  %v606 = vsel %vm599, %v572, %v592
  %v607 = vsel %vm599, %v574, %v594
  %v608 = vsel %vm599, %v576, %v596
  %v609 = vsel %vm599, %v578, %v598
  %v610 = vsel %vm599, %v580, %v560
  %v611 = vsel %vm599, %v582, %v562
  %v612 = vsel %vm599, %v584, %v564
  %v613 = vsel %vm599, %v586, %v566
  %v614 = vsel %vm599, %v588, %v568
  %v615 = vsel %vm599, %v590, %v570
  %v616 = vsel %vm599, %v592, %v572
  %v617 = vsel %vm599, %v594, %v574
  %v618 = vsel %vm599, %v596, %v576
  %v619 = vsel %vm599, %v598, %v578
  %620 = vst [vmem:[#allocation2 + $0x460] sm:$0xff] %v600
  %621 = vst [vmem:[#allocation2 + $0x468] sm:$0xff] %v610
  %622 = vst [vmem:[#allocation2 + $0x470] sm:$0xff] %v601
  %623 = vst [vmem:[#allocation2 + $0x478] sm:$0xff] %v611
  %624 = vst [vmem:[#allocation2 + $0x480] sm:$0xff] %v602
  %625 = vst [vmem:[#allocation2 + $0x488] sm:$0xff] %v612
  %626 = vst [vmem:[#allocation2 + $0x490] sm:$0xff] %v603
  %627 = vst [vmem:[#allocation2 + $0x498] sm:$0xff] %v613
  %628 = vst [vmem:[#allocation2 + $0x4a0] sm:$0xff] %v604
  %629 = vst [vmem:[#allocation2 + $0x4a8] sm:$0xff] %v614
  %630 = vst [vmem:[#allocation2 + $0x4b0] sm:$0xff] %v605
  %631 = vst [vmem:[#allocation2 + $0x4b8] sm:$0xff] %v615
  %632 = vst [vmem:[#allocation2 + $0x4c0] sm:$0xff] %v606
  %633 = vst [vmem:[#allocation2 + $0x4c8] sm:$0xff] %v616
  %634 = vst [vmem:[#allocation2 + $0x4d0] sm:$0xff] %v607
  %635 = vst [vmem:[#allocation2 + $0x4d8] sm:$0xff] %v617
  %636 = vst [vmem:[#allocation2 + $0x4e0] sm:$0xff] %v608
  %637 = vst [vmem:[#allocation2 + $0x4e8] sm:$0xff] %v618
  %638 = vst [vmem:[#allocation2 + $0x4f0] sm:$0xff] %v609
  %639 = vst [vmem:[#allocation2 + $0x4f8] sm:$0xff] %v619
  %640 = vrot.lane.b32.xlu0 %v31, 111
  %v641 = vpop.permute.xlu0 %640
  %642 = vrot.lane.b32.xlu0 %v33, 111
  %v643 = vpop.permute.xlu0 %642
  %644 = vrot.lane.b32.xlu0 %v35, 111
  %v645 = vpop.permute.xlu0 %644
  %646 = vrot.lane.b32.xlu0 %v37, 111
  %v647 = vpop.permute.xlu0 %646
  %648 = vrot.lane.b32.xlu0 %v39, 111
  %v649 = vpop.permute.xlu0 %648
  %650 = vrot.lane.b32.xlu0 %v41, 111
  %v651 = vpop.permute.xlu0 %650
  %652 = vrot.lane.b32.xlu0 %v43, 111
  %v653 = vpop.permute.xlu0 %652
  %654 = vrot.lane.b32.xlu0 %v45, 111
  %v655 = vpop.permute.xlu0 %654
  %656 = vrot.lane.b32.xlu0 %v47, 111
  %v657 = vpop.permute.xlu0 %656
  %658 = vrot.lane.b32.xlu0 %v49, 111
  %v659 = vpop.permute.xlu0 %658
  %660 = vrot.lane.b32.xlu0 %v32, 111
  %v661 = vpop.permute.xlu0 %660
  %662 = vrot.lane.b32.xlu0 %v34, 111
  %v663 = vpop.permute.xlu0 %662
  %664 = vrot.lane.b32.xlu0 %v36, 111
  %v665 = vpop.permute.xlu0 %664
  %666 = vrot.lane.b32.xlu0 %v38, 111
  %v667 = vpop.permute.xlu0 %666
  %668 = vrot.lane.b32.xlu0 %v40, 111
  %v669 = vpop.permute.xlu0 %668
  %670 = vrot.lane.b32.xlu0 %v42, 111
  %v671 = vpop.permute.xlu0 %670
  %672 = vrot.lane.b32.xlu0 %v44, 111
  %v673 = vpop.permute.xlu0 %672
  %674 = vrot.lane.b32.xlu0 %v46, 111
  %v675 = vpop.permute.xlu0 %674
  %676 = vrot.lane.b32.xlu0 %v48, 111
  %v677 = vpop.permute.xlu0 %676
  %678 = vrot.lane.b32.xlu0 %v50, 111
  %v679 = vpop.permute.xlu0 %678
  %vm680 = vcmp.lt.s32.totalorder %v92, 111
  %v681 = vsel %vm680, %v641, %v661
  %v682 = vsel %vm680, %v643, %v663
  %v683 = vsel %vm680, %v645, %v665
  %v684 = vsel %vm680, %v647, %v667
  %v685 = vsel %vm680, %v649, %v669
  %v686 = vsel %vm680, %v651, %v671
  %v687 = vsel %vm680, %v653, %v673
  %v688 = vsel %vm680, %v655, %v675
  %v689 = vsel %vm680, %v657, %v677
  %v690 = vsel %vm680, %v659, %v679
  %v691 = vsel %vm680, %v661, %v641
  %v692 = vsel %vm680, %v663, %v643
  %v693 = vsel %vm680, %v665, %v645
  %v694 = vsel %vm680, %v667, %v647
  %v695 = vsel %vm680, %v669, %v649
  %v696 = vsel %vm680, %v671, %v651
  %v697 = vsel %vm680, %v673, %v653
  %v698 = vsel %vm680, %v675, %v655
  %v699 = vsel %vm680, %v677, %v657
  %v700 = vsel %vm680, %v679, %v659
  %701 = vst [vmem:[#allocation2 + $0x500] sm:$0xff] %v681
  %702 = vst [vmem:[#allocation2 + $0x508] sm:$0xff] %v691
  %703 = vst [vmem:[#allocation2 + $0x510] sm:$0xff] %v682
  %704 = vst [vmem:[#allocation2 + $0x518] sm:$0xff] %v692
  %705 = vst [vmem:[#allocation2 + $0x520] sm:$0xff] %v683
  %706 = vst [vmem:[#allocation2 + $0x528] sm:$0xff] %v693
  %707 = vst [vmem:[#allocation2 + $0x530] sm:$0xff] %v684
  %708 = vst [vmem:[#allocation2 + $0x538] sm:$0xff] %v694
  %709 = vst [vmem:[#allocation2 + $0x540] sm:$0xff] %v685
  %710 = vst [vmem:[#allocation2 + $0x548] sm:$0xff] %v695
  %711 = vst [vmem:[#allocation2 + $0x550] sm:$0xff] %v686
  %712 = vst [vmem:[#allocation2 + $0x558] sm:$0xff] %v696
  %713 = vst [vmem:[#allocation2 + $0x560] sm:$0xff] %v687
  %714 = vst [vmem:[#allocation2 + $0x568] sm:$0xff] %v697
  %715 = vst [vmem:[#allocation2 + $0x570] sm:$0xff] %v688
  %716 = vst [vmem:[#allocation2 + $0x578] sm:$0xff] %v698
  %717 = vst [vmem:[#allocation2 + $0x580] sm:$0xff] %v689
  %718 = vst [vmem:[#allocation2 + $0x588] sm:$0xff] %v699
  %719 = vst [vmem:[#allocation2 + $0x590] sm:$0xff] %v690
  %720 = vst [vmem:[#allocation2 + $0x598] sm:$0xff] %v700
  %v721 = vld [vmem:[%s1] sm:$0xff]
  %v722 = vld [vmem:[%s1 + $0x8] sm:$0xff]
  %v723 = vld [vmem:[%s1 + $0x10] sm:$0xff]
  %v724 = vld [vmem:[%s1 + $0x18] sm:$0xff]
  %v725 = vld [vmem:[%s1 + $0x20] sm:$0xff]
  %v726 = vld [vmem:[%s1 + $0x28] sm:$0xff]
  %v727 = vld [vmem:[%s1 + $0x30] sm:$0xff]
  %v728 = vld [vmem:[%s1 + $0x38] sm:$0xff]
  %v729 = vld [vmem:[%s1 + $0x40] sm:$0xff]
  %v730 = vld [vmem:[%s1 + $0x48] sm:$0xff]
  %v731 = vld [vmem:[%s1 + $0x50] sm:$0xff]
  %v732 = vld [vmem:[%s1 + $0x58] sm:$0xff]
  %v733 = vld [vmem:[%s1 + $0x60] sm:$0xff]
  %v734 = vld [vmem:[%s1 + $0x68] sm:$0xff]
  %v735 = vld [vmem:[%s1 + $0x70] sm:$0xff]
  %v736 = vld [vmem:[%s1 + $0x78] sm:$0xff]
  %v737 = vld [vmem:[%s1 + $0x80] sm:$0xff]
  %v738 = vld [vmem:[%s1 + $0x88] sm:$0xff]
  %v739 = vld [vmem:[%s1 + $0x90] sm:$0xff]
  %v740 = vld [vmem:[%s1 + $0x98] sm:$0xff]
  %v741 = vld [vmem:[%s1 + $0xa0] sm:$0xff]
  %v742 = vld [vmem:[%s1 + $0xa8] sm:$0xff]
  %v743 = vld [vmem:[%s1 + $0xb0] sm:$0xff]
  %v744 = vld [vmem:[%s1 + $0xb8] sm:$0xff]
  %v745 = vld [vmem:[%s1 + $0xc0] sm:$0xff]
  %v746 = vld [vmem:[%s1 + $0xc8] sm:$0xff]
  %v747 = vld [vmem:[%s1 + $0xd0] sm:$0xff]
  %v748 = vld [vmem:[%s1 + $0xd8] sm:$0xff]
  %v749 = vld [vmem:[%s1 + $0xe0] sm:$0xff]
  %v750 = vld [vmem:[%s1 + $0xe8] sm:$0xff]
  %v751 = vld [vmem:[%s1 + $0xf0] sm:$0xff]
  %v752 = vld [vmem:[%s1 + $0xf8] sm:$0xff]
  %v753 = vld [vmem:[%s1 + $0x100] sm:$0xff]
  %v754 = vld [vmem:[%s1 + $0x108] sm:$0xff]
  %v755 = vld [vmem:[%s1 + $0x110] sm:$0xff]
  %v756 = vld [vmem:[%s1 + $0x118] sm:$0xff]
  %v757 = vld [vmem:[%s1 + $0x120] sm:$0xff]
  %v758 = vld [vmem:[%s1 + $0x128] sm:$0xff]
  %v759 = vld [vmem:[%s1 + $0x130] sm:$0xff]
  %v760 = vld [vmem:[%s1 + $0x138] sm:$0xff]
  %v761 = vld [vmem:[%s1 + $0x140] sm:$0xff]
  %v762 = vld [vmem:[%s1 + $0x148] sm:$0xff]
  %v763 = vld [vmem:[%s1 + $0x150] sm:$0xff]
  %v764 = vld [vmem:[%s1 + $0x158] sm:$0xff]
  %v765 = vld [vmem:[%s1 + $0x160] sm:$0xff]
  %v766 = vld [vmem:[%s1 + $0x168] sm:$0xff]
  %v767 = vld [vmem:[%s1 + $0x170] sm:$0xff]
  %v768 = vld [vmem:[%s1 + $0x178] sm:$0xff]
  %v769 = vld [vmem:[%s1 + $0x180] sm:$0xff]
  %v770 = vld [vmem:[%s1 + $0x188] sm:$0xff]
  %v771 = vld [vmem:[%s1 + $0x190] sm:$0xff]
  %v772 = vld [vmem:[%s1 + $0x198] sm:$0xff]
  %v773 = vld [vmem:[%s1 + $0x1a0] sm:$0xff]
  %v774 = vld [vmem:[%s1 + $0x1a8] sm:$0xff]
  %v775 = vld [vmem:[%s1 + $0x1b0] sm:$0xff]
  %v776 = vld [vmem:[%s1 + $0x1b8] sm:$0xff]
  %v777 = vld [vmem:[%s1 + $0x1c0] sm:$0xff]
  %v778 = vld [vmem:[%s1 + $0x1c8] sm:$0xff]
  %v779 = vld [vmem:[%s1 + $0x1d0] sm:$0xff]
  %v780 = vld [vmem:[%s1 + $0x1d8] sm:$0xff]
  %v781 = vld [vmem:[#allocation2] sm:$0xff]
  %v782 = vld [vmem:[#allocation2 + $0x8] sm:$0xff]
  %v783 = vld [vmem:[#allocation2 + $0x10] sm:$0xff]
  %v784 = vld [vmem:[#allocation2 + $0x18] sm:$0xff]
  %v785 = vld [vmem:[#allocation2 + $0x20] sm:$0xff]
  %v786 = vld [vmem:[#allocation2 + $0x28] sm:$0xff]
  %v787 = vld [vmem:[#allocation2 + $0x30] sm:$0xff]
  %v788 = vld [vmem:[#allocation2 + $0x38] sm:$0xff]
  %v789 = vld [vmem:[#allocation2 + $0x40] sm:$0xff]
  %v790 = vld [vmem:[#allocation2 + $0x48] sm:$0xff]
  %v791 = vld [vmem:[#allocation2 + $0x50] sm:$0xff]
  %v792 = vld [vmem:[#allocation2 + $0x58] sm:$0xff]
  %v793 = vld [vmem:[#allocation2 + $0x60] sm:$0xff]
  %v794 = vld [vmem:[#allocation2 + $0x68] sm:$0xff]
  %v795 = vld [vmem:[#allocation2 + $0x70] sm:$0xff]
  %v796 = vld [vmem:[#allocation2 + $0x78] sm:$0xff]
  %v797 = vld [vmem:[#allocation2 + $0x80] sm:$0xff]
  %v798 = vld [vmem:[#allocation2 + $0x88] sm:$0xff]
  %v799 = vld [vmem:[#allocation2 + $0x90] sm:$0xff]
  %v800 = vld [vmem:[#allocation2 + $0x98] sm:$0xff]
  %v801 = vld [vmem:[#allocation2 + $0xa0] sm:$0xff]
  %v802 = vld [vmem:[#allocation2 + $0xa8] sm:$0xff]
  %v803 = vld [vmem:[#allocation2 + $0xb0] sm:$0xff]
  %v804 = vld [vmem:[#allocation2 + $0xb8] sm:$0xff]
  %v805 = vld [vmem:[#allocation2 + $0xc0] sm:$0xff]
  %v806 = vld [vmem:[#allocation2 + $0xc8] sm:$0xff]
  %v807 = vld [vmem:[#allocation2 + $0xd0] sm:$0xff]
  %v808 = vld [vmem:[#allocation2 + $0xd8] sm:$0xff]
  %v809 = vld [vmem:[#allocation2 + $0xe0] sm:$0xff]
  %v810 = vld [vmem:[#allocation2 + $0xe8] sm:$0xff]
  %v811 = vld [vmem:[#allocation2 + $0xf0] sm:$0xff]
  %v812 = vld [vmem:[#allocation2 + $0xf8] sm:$0xff]
  %v813 = vld [vmem:[#allocation2 + $0x100] sm:$0xff]
  %v814 = vld [vmem:[#allocation2 + $0x108] sm:$0xff]
  %v815 = vld [vmem:[#allocation2 + $0x110] sm:$0xff]
  %v816 = vld [vmem:[#allocation2 + $0x118] sm:$0xff]
  %v817 = vld [vmem:[#allocation2 + $0x120] sm:$0xff]
  %v818 = vld [vmem:[#allocation2 + $0x128] sm:$0xff]
  %v819 = vld [vmem:[#allocation2 + $0x130] sm:$0xff]
  %v820 = vld [vmem:[#allocation2 + $0x138] sm:$0xff]
  %v821 = vld [vmem:[#allocation2 + $0x140] sm:$0xff]
  %v822 = vld [vmem:[#allocation2 + $0x148] sm:$0xff]
  %v823 = vld [vmem:[#allocation2 + $0x150] sm:$0xff]
  %v824 = vld [vmem:[#allocation2 + $0x158] sm:$0xff]
  %v825 = vld [vmem:[#allocation2 + $0x160] sm:$0xff]
  %v826 = vld [vmem:[#allocation2 + $0x168] sm:$0xff]
  %v827 = vld [vmem:[#allocation2 + $0x170] sm:$0xff]
  %v828 = vld [vmem:[#allocation2 + $0x178] sm:$0xff]
  %v829 = vld [vmem:[#allocation2 + $0x180] sm:$0xff]
  %v830 = vld [vmem:[#allocation2 + $0x188] sm:$0xff]
  %v831 = vld [vmem:[#allocation2 + $0x190] sm:$0xff]
  %v832 = vld [vmem:[#allocation2 + $0x198] sm:$0xff]
  %v833 = vld [vmem:[#allocation2 + $0x1a0] sm:$0xff]
  %v834 = vld [vmem:[#allocation2 + $0x1a8] sm:$0xff]
  %v835 = vld [vmem:[#allocation2 + $0x1b0] sm:$0xff]
  %v836 = vld [vmem:[#allocation2 + $0x1b8] sm:$0xff]
  %v837 = vld [vmem:[#allocation2 + $0x1c0] sm:$0xff]
  %v838 = vld [vmem:[#allocation2 + $0x1c8] sm:$0xff]
  %v839 = vld [vmem:[#allocation2 + $0x1d0] sm:$0xff]
  %v840 = vld [vmem:[#allocation2 + $0x1d8] sm:$0xff]
  %v841 = vld [vmem:[#allocation2 + $0x1e0] sm:$0xff]
  %v842 = vld [vmem:[#allocation2 + $0x1e8] sm:$0xff]
  %v843 = vld [vmem:[#allocation2 + $0x1f0] sm:$0xff]
  %v844 = vld [vmem:[#allocation2 + $0x1f8] sm:$0xff]
  %v845 = vld [vmem:[#allocation2 + $0x200] sm:$0xff]
  %v846 = vld [vmem:[#allocation2 + $0x208] sm:$0xff]
  %v847 = vld [vmem:[#allocation2 + $0x210] sm:$0xff]
  %v848 = vld [vmem:[#allocation2 + $0x218] sm:$0xff]
  %v849 = vld [vmem:[#allocation2 + $0x220] sm:$0xff]
  %v850 = vld [vmem:[#allocation2 + $0x228] sm:$0xff]
  %v851 = vld [vmem:[#allocation2 + $0x230] sm:$0xff]
  %v852 = vld [vmem:[#allocation2 + $0x238] sm:$0xff]
  %v853 = vld [vmem:[#allocation2 + $0x240] sm:$0xff]
  %v854 = vld [vmem:[#allocation2 + $0x248] sm:$0xff]
  %v855 = vld [vmem:[#allocation2 + $0x250] sm:$0xff]
  %v856 = vld [vmem:[#allocation2 + $0x258] sm:$0xff]
  %v857 = vld [vmem:[#allocation2 + $0x260] sm:$0xff]
  %v858 = vld [vmem:[#allocation2 + $0x268] sm:$0xff]
  %v859 = vld [vmem:[#allocation2 + $0x270] sm:$0xff]
  %v860 = vld [vmem:[#allocation2 + $0x278] sm:$0xff]
  %v861 = vld [vmem:[#allocation2 + $0x280] sm:$0xff]
  %v862 = vld [vmem:[#allocation2 + $0x288] sm:$0xff]
  %v863 = vld [vmem:[#allocation2 + $0x290] sm:$0xff]
  %v864 = vld [vmem:[#allocation2 + $0x298] sm:$0xff]
  %v865 = vld [vmem:[#allocation2 + $0x2a0] sm:$0xff]
  %v866 = vld [vmem:[#allocation2 + $0x2a8] sm:$0xff]
  %v867 = vld [vmem:[#allocation2 + $0x2b0] sm:$0xff]
  %v868 = vld [vmem:[#allocation2 + $0x2b8] sm:$0xff]
  %v869 = vld [vmem:[#allocation2 + $0x2c0] sm:$0xff]
  %v870 = vld [vmem:[#allocation2 + $0x2c8] sm:$0xff]
  %v871 = vld [vmem:[#allocation2 + $0x2d0] sm:$0xff]
  %v872 = vld [vmem:[#allocation2 + $0x2d8] sm:$0xff]
  %v873 = vld [vmem:[#allocation2 + $0x2e0] sm:$0xff]
  %v874 = vld [vmem:[#allocation2 + $0x2e8] sm:$0xff]
  %v875 = vld [vmem:[#allocation2 + $0x2f0] sm:$0xff]
  %v876 = vld [vmem:[#allocation2 + $0x2f8] sm:$0xff]
  %v877 = vld [vmem:[#allocation2 + $0x300] sm:$0xff]
  %v878 = vld [vmem:[#allocation2 + $0x308] sm:$0xff]
  %v879 = vld [vmem:[#allocation2 + $0x310] sm:$0xff]
  %v880 = vld [vmem:[#allocation2 + $0x318] sm:$0xff]
  %v881 = vld [vmem:[#allocation2 + $0x320] sm:$0xff]
  %v882 = vld [vmem:[#allocation2 + $0x328] sm:$0xff]
  %v883 = vld [vmem:[#allocation2 + $0x330] sm:$0xff]
  %v884 = vld [vmem:[#allocation2 + $0x338] sm:$0xff]
  %v885 = vld [vmem:[#allocation2 + $0x340] sm:$0xff]
  %v886 = vld [vmem:[#allocation2 + $0x348] sm:$0xff]
  %v887 = vld [vmem:[#allocation2 + $0x350] sm:$0xff]
  %v888 = vld [vmem:[#allocation2 + $0x358] sm:$0xff]
  %v889 = vld [vmem:[#allocation2 + $0x360] sm:$0xff]
  %v890 = vld [vmem:[#allocation2 + $0x368] sm:$0xff]
  %v891 = vld [vmem:[#allocation2 + $0x370] sm:$0xff]
  %v892 = vld [vmem:[#allocation2 + $0x378] sm:$0xff]
  %v893 = vld [vmem:[#allocation2 + $0x380] sm:$0xff]
  %v894 = vld [vmem:[#allocation2 + $0x388] sm:$0xff]
  %v895 = vld [vmem:[#allocation2 + $0x390] sm:$0xff]
  %v896 = vld [vmem:[#allocation2 + $0x398] sm:$0xff]
  %v897 = vld [vmem:[#allocation2 + $0x3a0] sm:$0xff]
  %v898 = vld [vmem:[#allocation2 + $0x3a8] sm:$0xff]
  %v899 = vld [vmem:[#allocation2 + $0x3b0] sm:$0xff]
  %v900 = vld [vmem:[#allocation2 + $0x3b8] sm:$0xff]
  %v901 = vld [vmem:[#allocation2 + $0x3c0] sm:$0xff]
  %v902 = vld [vmem:[#allocation2 + $0x3c8] sm:$0xff]
  %v903 = vld [vmem:[#allocation2 + $0x3d0] sm:$0xff]
  %v904 = vld [vmem:[#allocation2 + $0x3d8] sm:$0xff]
  %v905 = vld [vmem:[#allocation2 + $0x3e0] sm:$0xff]
  %v906 = vld [vmem:[#allocation2 + $0x3e8] sm:$0xff]
  %v907 = vld [vmem:[#allocation2 + $0x3f0] sm:$0xff]
  %v908 = vld [vmem:[#allocation2 + $0x3f8] sm:$0xff]
  %v909 = vld [vmem:[#allocation2 + $0x400] sm:$0xff]
  %v910 = vld [vmem:[#allocation2 + $0x408] sm:$0xff]
  %v911 = vld [vmem:[#allocation2 + $0x410] sm:$0xff]
  %v912 = vld [vmem:[#allocation2 + $0x418] sm:$0xff]
  %v913 = vld [vmem:[#allocation2 + $0x420] sm:$0xff]
  %v914 = vld [vmem:[#allocation2 + $0x428] sm:$0xff]
  %v915 = vld [vmem:[#allocation2 + $0x430] sm:$0xff]
  %v916 = vld [vmem:[#allocation2 + $0x438] sm:$0xff]
  %v917 = vld [vmem:[#allocation2 + $0x440] sm:$0xff]
  %v918 = vld [vmem:[#allocation2 + $0x448] sm:$0xff]
  %v919 = vld [vmem:[#allocation2 + $0x450] sm:$0xff]
  %v920 = vld [vmem:[#allocation2 + $0x458] sm:$0xff]
  %v921 = vld [vmem:[#allocation2 + $0x460] sm:$0xff]
  %v922 = vld [vmem:[#allocation2 + $0x468] sm:$0xff]
  %v923 = vld [vmem:[#allocation2 + $0x470] sm:$0xff]
  %v924 = vld [vmem:[#allocation2 + $0x478] sm:$0xff]
  %v925 = vld [vmem:[#allocation2 + $0x480] sm:$0xff]
  %v926 = vld [vmem:[#allocation2 + $0x488] sm:$0xff]
  %v927 = vld [vmem:[#allocation2 + $0x490] sm:$0xff]
  %v928 = vld [vmem:[#allocation2 + $0x498] sm:$0xff]
  %v929 = vld [vmem:[#allocation2 + $0x4a0] sm:$0xff]
  %v930 = vld [vmem:[#allocation2 + $0x4a8] sm:$0xff]
  %v931 = vld [vmem:[#allocation2 + $0x4b0] sm:$0xff]
  %v932 = vld [vmem:[#allocation2 + $0x4b8] sm:$0xff]
  %v933 = vld [vmem:[#allocation2 + $0x4c0] sm:$0xff]
  %v934 = vld [vmem:[#allocation2 + $0x4c8] sm:$0xff]
  %v935 = vld [vmem:[#allocation2 + $0x4d0] sm:$0xff]
  %v936 = vld [vmem:[#allocation2 + $0x4d8] sm:$0xff]
  %v937 = vld [vmem:[#allocation2 + $0x4e0] sm:$0xff]
  %v938 = vld [vmem:[#allocation2 + $0x4e8] sm:$0xff]
  %v939 = vld [vmem:[#allocation2 + $0x4f0] sm:$0xff]
  %v940 = vld [vmem:[#allocation2 + $0x4f8] sm:$0xff]
  %v941 = vld [vmem:[#allocation2 + $0x500] sm:$0xff]
  %v942 = vld [vmem:[#allocation2 + $0x508] sm:$0xff]
  %v943 = vld [vmem:[#allocation2 + $0x510] sm:$0xff]
  %v944 = vld [vmem:[#allocation2 + $0x518] sm:$0xff]
  %v945 = vld [vmem:[#allocation2 + $0x520] sm:$0xff]
  %v946 = vld [vmem:[#allocation2 + $0x528] sm:$0xff]
  %v947 = vld [vmem:[#allocation2 + $0x530] sm:$0xff]
  %v948 = vld [vmem:[#allocation2 + $0x538] sm:$0xff]
  %v949 = vld [vmem:[#allocation2 + $0x540] sm:$0xff]
  %v950 = vld [vmem:[#allocation2 + $0x548] sm:$0xff]
  %v951 = vld [vmem:[#allocation2 + $0x550] sm:$0xff]
  %v952 = vld [vmem:[#allocation2 + $0x558] sm:$0xff]
  %v953 = vld [vmem:[#allocation2 + $0x560] sm:$0xff]
  %v954 = vld [vmem:[#allocation2 + $0x568] sm:$0xff]
  %v955 = vld [vmem:[#allocation2 + $0x570] sm:$0xff]
  %v956 = vld [vmem:[#allocation2 + $0x578] sm:$0xff]
  %v957 = vld [vmem:[#allocation2 + $0x580] sm:$0xff]
  %v958 = vld [vmem:[#allocation2 + $0x588] sm:$0xff]
  %v959 = vld [vmem:[#allocation2 + $0x590] sm:$0xff]
  %v960 = vld [vmem:[#allocation2 + $0x598] sm:$0xff]
  %vm961 = vcmask 654336
  %v963 = vsel %vm961, %v726, 0
  %v966 = vsel %vm961, %v732, 0
  %v969 = vsel %vm961, %v738, 0
  %v972 = vsel %vm961, %v744, 0
  %v975 = vsel %vm961, %v750, 0
  %v978 = vsel %vm961, %v756, 0
  %v981 = vsel %vm961, %v762, 0
  %v984 = vsel %vm961, %v768, 0
  %v987 = vsel %vm961, %v774, 0
  %v990 = vsel %vm961, %v780, 0
  %992 = vmatprep.subr.mxu0 %v782
  %993 = vmatpush1.msra.mxu0 %v781
  %994 = vmatprep.subr.mxu0 %v784
  %995 = vmatpush1.msra.mxu0 %v783
  %996 = vmatprep.subr.mxu0 %v786
  %997 = vmatpush1.msra.mxu0 %v785
  %998 = vmatprep.subr.mxu0 %v788
  %999 = vmatpush1.msra.mxu0 %v787
  %1000 = vmatprep.subr.mxu0 %v790
  %1001 = vmatpush1.msra.mxu0 %v789
  %1002 = vmatprep.subr.mxu0 %v792
  %1003 = vmatpush1.msra.mxu0 %v791
  %1004 = vmatprep.subr.mxu0 %v794
  %1005 = vmatpush1.msra.mxu0 %v793
  %1006 = vmatprep.subr.mxu0 %v796
  %1007 = vmatpush1.msra.mxu0 %v795
  %1008 = vmatprep.subr.mxu0 %v798
  %1009 = vmatpush1.msra.mxu0 %v797
  %1010 = vmatprep.subr.mxu0 %v800
  %1011 = vmatpush1.msra.mxu0 %v799
  %1012 = vmatprep.subr.mxu0 %v802
  %1013 = vmatpush1.msra.mxu0 %v801
  %1014 = vmatprep.subr.mxu0 %v804
  %1015 = vmatpush1.msra.mxu0 %v803
  %1016 = vmatprep.subr.mxu0 %v806
  %1017 = vmatpush1.msra.mxu0 %v805
  %1018 = vmatprep.subr.mxu0 %v808
  %1019 = vmatpush1.msra.mxu0 %v807
  %1020 = vmatprep.subr.mxu0 %v810
  %1021 = vmatpush1.msra.mxu0 %v809
  %1022 = vmatprep.subr.mxu0 %v812
  %1023 = vmatpush1.msra.mxu0 %v811
  %1024 = vmatprep.subr.mxu0 %v814
  %1025 = vmatpush1.msra.mxu0 %v813
  %1026 = vmatprep.subr.mxu0 %v816
  %1027 = vmatpush1.msra.mxu0 %v815
  %1028 = vmatprep.subr.mxu0 %v818
  %1029 = vmatpush1.msra.mxu0 %v817
  %1030 = vmatprep.subr.mxu0 %v820
  %1031 = vmatpush1.msra.mxu0 %v819
  %1032 = vmatprep.subr.mxu0 %v822
  %1033 = vmatpush1.msra.mxu0 %v821
  %1034 = vmatprep.subr.mxu0 %v824
  %1035 = vmatpush1.msra.mxu0 %v823
  %1036 = vmatprep.subr.mxu0 %v826
  %1037 = vmatpush1.msra.mxu0 %v825
  %1038 = vmatprep.subr.mxu0 %v828
  %1039 = vmatpush1.msra.mxu0 %v827
  %1040 = vmatprep.subr.mxu0 %v830
  %1041 = vmatpush1.msra.mxu0 %v829
  %1042 = vmatprep.subr.mxu0 %v832
  %1043 = vmatpush1.msra.mxu0 %v831
  %1044 = vmatprep.subr.mxu0 %v834
  %1045 = vmatpush1.msra.mxu0 %v833
  %1046 = vmatprep.subr.mxu0 %v836
  %1047 = vmatpush1.msra.mxu0 %v835
  %1048 = vmatprep.subr.mxu0 %v838
  %1049 = vmatpush1.msra.mxu0 %v837
  %1050 = vmatprep.subr.mxu0 %v840
  %1051 = vmatpush1.msra.mxu0 %v839
  %1052 = vmatprep.subr.mxu0 %v842
  %1053 = vmatpush1.msra.mxu0 %v841
  %1054 = vmatprep.subr.mxu0 %v844
  %1055 = vmatpush1.msra.mxu0 %v843
  %1056 = vmatprep.mubr.f32.mxu0 %v722
  %1057 = vmatmul.mubr.f32.gmra.mrb[0].mxu0 %v721
  %v1058 = vpop.f32.mrb[0].mxu0
  %v1059 = vadd.f32 0.0, %v1058
  %v1060 = vpop.f32.mrb[0].mxu0
  %v1061 = vadd.f32 0.0, %v1060
  %1062 = vmatprep.mubr.f32.mxu0 %v728
  %1063 = vmatmul.mubr.f32.gmra.mrb[0].mxu0 %v727
  %v1064 = vpop.f32.mrb[0].mxu0
  %v1065 = vadd.f32 0.0, %v1064
  %v1066 = vpop.f32.mrb[0].mxu0
  %v1067 = vadd.f32 0.0, %v1066
  %1068 = vmatprep.mubr.f32.mxu0 %v734
  %1069 = vmatmul.mubr.f32.gmra.mrb[0].mxu0 %v733
  %v1070 = vpop.f32.mrb[0].mxu0
  %v1071 = vadd.f32 0.0, %v1070
  %v1072 = vpop.f32.mrb[0].mxu0
  %v1073 = vadd.f32 0.0, %v1072
  %1074 = vmatprep.mubr.f32.mxu0 %v740
  %1075 = vmatmul.mubr.f32.gmra.mrb[0].mxu0 %v739
  %v1076 = vpop.f32.mrb[0].mxu0
  %v1077 = vadd.f32 0.0, %v1076
  %v1078 = vpop.f32.mrb[0].mxu0
  %v1079 = vadd.f32 0.0, %v1078
  %1080 = vmatprep.mubr.f32.mxu0 %v746
  %1081 = vmatmul.mubr.f32.gmra.mrb[0].mxu0 %v745
  %v1082 = vpop.f32.mrb[0].mxu0
  %v1083 = vadd.f32 0.0, %v1082
  %v1084 = vpop.f32.mrb[0].mxu0
  %v1085 = vadd.f32 0.0, %v1084
  %1086 = vmatprep.mubr.f32.mxu0 %v752
  %1087 = vmatmul.mubr.f32.gmra.mrb[0].mxu0 %v751
  %v1088 = vpop.f32.mrb[0].mxu0
  %v1089 = vadd.f32 0.0, %v1088
  %v1090 = vpop.f32.mrb[0].mxu0
  %v1091 = vadd.f32 0.0, %v1090
  %1092 = vmatprep.mubr.f32.mxu0 %v758
  %1093 = vmatmul.mubr.f32.gmra.mrb[0].mxu0 %v757
  %v1094 = vpop.f32.mrb[0].mxu0
  %v1095 = vadd.f32 0.0, %v1094
  %v1096 = vpop.f32.mrb[0].mxu0
  %v1097 = vadd.f32 0.0, %v1096
  %1098 = vmatprep.mubr.f32.mxu0 %v764
  %1099 = vmatmul.mubr.f32.gmra.mrb[0].mxu0 %v763
  %v1100 = vpop.f32.mrb[0].mxu0
  %v1101 = vadd.f32 0.0, %v1100
  %v1102 = vpop.f32.mrb[0].mxu0
  %v1103 = vadd.f32 0.0, %v1102
  %1104 = vmatprep.mubr.f32.mxu0 %v770
  %1105 = vmatmul.mubr.f32.gmra.mrb[0].mxu0 %v769
  %v1106 = vpop.f32.mrb[0].mxu0
  %v1107 = vadd.f32 0.0, %v1106
  %v1108 = vpop.f32.mrb[0].mxu0
  %v1109 = vadd.f32 0.0, %v1108
  %1110 = vmatprep.mubr.f32.mxu0 %v776
  %1111 = vmatmul.mubr.f32.gmra.mrb[0].mxu0 %v775
  %v1112 = vpop.f32.mrb[0].mxu0
  %v1113 = vadd.f32 0.0, %v1112
  %v1114 = vpop.f32.mrb[0].mxu0
  %v1115 = vadd.f32 0.0, %v1114
  %1116 = vdwg.mxu0
  %1117 = vmatprep.subr.mxu0 %v846
  %1118 = vmatpush1.msra.mxu0 %v845
  %1119 = vmatprep.subr.mxu0 %v848
  %1120 = vmatpush1.msra.mxu0 %v847
  %1121 = vmatprep.subr.mxu0 %v850
  %1122 = vmatpush1.msra.mxu0 %v849
  %1123 = vmatprep.subr.mxu0 %v852
  %1124 = vmatpush1.msra.mxu0 %v851
  %1125 = vmatprep.subr.mxu0 %v854
  %1126 = vmatpush1.msra.mxu0 %v853
  %1127 = vmatprep.subr.mxu0 %v856
  %1128 = vmatpush1.msra.mxu0 %v855
  %1129 = vmatprep.subr.mxu0 %v858
  %1130 = vmatpush1.msra.mxu0 %v857
  %1131 = vmatprep.subr.mxu0 %v860
  %1132 = vmatpush1.msra.mxu0 %v859
  %1133 = vmatprep.subr.mxu0 %v862
  %1134 = vmatpush1.msra.mxu0 %v861
  %1135 = vmatprep.subr.mxu0 %v864
  %1136 = vmatpush1.msra.mxu0 %v863
  %1137 = vmatprep.subr.mxu0 %v866
  %1138 = vmatpush1.msra.mxu0 %v865
  %1139 = vmatprep.subr.mxu0 %v868
  %1140 = vmatpush1.msra.mxu0 %v867
  %1141 = vmatprep.subr.mxu0 %v870
  %1142 = vmatpush1.msra.mxu0 %v869
  %1143 = vmatprep.subr.mxu0 %v872
  %1144 = vmatpush1.msra.mxu0 %v871
  %1145 = vmatprep.subr.mxu0 %v874
  %1146 = vmatpush1.msra.mxu0 %v873
  %1147 = vmatprep.subr.mxu0 %v876
  %1148 = vmatpush1.msra.mxu0 %v875
  %1149 = vmatprep.subr.mxu0 %v878
  %1150 = vmatpush1.msra.mxu0 %v877
  %1151 = vmatprep.subr.mxu0 %v880
  %1152 = vmatpush1.msra.mxu0 %v879
  %1153 = vmatprep.subr.mxu0 %v882
  %1154 = vmatpush1.msra.mxu0 %v881
  %1155 = vmatprep.subr.mxu0 %v884
  %1156 = vmatpush1.msra.mxu0 %v883
  %1157 = vmatprep.subr.mxu0 %v886
  %1158 = vmatpush1.msra.mxu0 %v885
  %1159 = vmatprep.subr.mxu0 %v888
  %1160 = vmatpush1.msra.mxu0 %v887
  %1161 = vmatprep.subr.mxu0 %v890
  %1162 = vmatpush1.msra.mxu0 %v889
  %1163 = vmatprep.subr.mxu0 %v892
  %1164 = vmatpush1.msra.mxu0 %v891
  %1165 = vmatprep.subr.mxu0 %v894
  %1166 = vmatpush1.msra.mxu0 %v893
  %1167 = vmatprep.subr.mxu0 %v896
  %1168 = vmatpush1.msra.mxu0 %v895
  %1169 = vmatprep.subr.mxu0 %v898
  %1170 = vmatpush1.msra.mxu0 %v897
  %1171 = vmatprep.subr.mxu0 %v900
  %1172 = vmatpush1.msra.mxu0 %v899
  %1173 = vmatprep.subr.mxu0 %v902
  %1174 = vmatpush1.msra.mxu0 %v901
  %1175 = vmatprep.subr.mxu0 %v904
  %1176 = vmatpush1.msra.mxu0 %v903
  %1177 = vmatprep.subr.mxu0 %v906
  %1178 = vmatpush1.msra.mxu0 %v905
  %1179 = vmatprep.subr.mxu0 %v908
  %1180 = vmatpush1.msra.mxu0 %v907
  %1181 = vmatprep.mubr.f32.mxu0 %v724
  %1182 = vmatmul.mubr.f32.gmra.mrb[0].mxu0 %v723
  %v1183 = vpop.f32.mrb[0].mxu0
  %v1184 = vadd.f32 %v1059, %v1183
  %v1185 = vpop.f32.mrb[0].mxu0
  %v1186 = vadd.f32 %v1061, %v1185
  %1187 = vmatprep.mubr.f32.mxu0 %v730
  %1188 = vmatmul.mubr.f32.gmra.mrb[0].mxu0 %v729
  %v1189 = vpop.f32.mrb[0].mxu0
  %v1190 = vadd.f32 %v1065, %v1189
  %v1191 = vpop.f32.mrb[0].mxu0
  %v1192 = vadd.f32 %v1067, %v1191
  %1193 = vmatprep.mubr.f32.mxu0 %v736
  %1194 = vmatmul.mubr.f32.gmra.mrb[0].mxu0 %v735
  %v1195 = vpop.f32.mrb[0].mxu0
  %v1196 = vadd.f32 %v1071, %v1195
  %v1197 = vpop.f32.mrb[0].mxu0
  %v1198 = vadd.f32 %v1073, %v1197
  %1199 = vmatprep.mubr.f32.mxu0 %v742
  %1200 = vmatmul.mubr.f32.gmra.mrb[0].mxu0 %v741
  %v1201 = vpop.f32.mrb[0].mxu0
  %v1202 = vadd.f32 %v1077, %v1201
  %v1203 = vpop.f32.mrb[0].mxu0
  %v1204 = vadd.f32 %v1079, %v1203
  %1205 = vmatprep.mubr.f32.mxu0 %v748
  %1206 = vmatmul.mubr.f32.gmra.mrb[0].mxu0 %v747
  %v1207 = vpop.f32.mrb[0].mxu0
  %v1208 = vadd.f32 %v1083, %v1207
  %v1209 = vpop.f32.mrb[0].mxu0
  %v1210 = vadd.f32 %v1085, %v1209
  %1211 = vmatprep.mubr.f32.mxu0 %v754
  %1212 = vmatmul.mubr.f32.gmra.mrb[0].mxu0 %v753
  %v1213 = vpop.f32.mrb[0].mxu0
  %v1214 = vadd.f32 %v1089, %v1213
  %v1215 = vpop.f32.mrb[0].mxu0
  %v1216 = vadd.f32 %v1091, %v1215
  %1217 = vmatprep.mubr.f32.mxu0 %v760
  %1218 = vmatmul.mubr.f32.gmra.mrb[0].mxu0 %v759
  %v1219 = vpop.f32.mrb[0].mxu0
  %v1220 = vadd.f32 %v1095, %v1219
  %v1221 = vpop.f32.mrb[0].mxu0
  %v1222 = vadd.f32 %v1097, %v1221
  %1223 = vmatprep.mubr.f32.mxu0 %v766
  %1224 = vmatmul.mubr.f32.gmra.mrb[0].mxu0 %v765
  %v1225 = vpop.f32.mrb[0].mxu0
  %v1226 = vadd.f32 %v1101, %v1225
  %v1227 = vpop.f32.mrb[0].mxu0
  %v1228 = vadd.f32 %v1103, %v1227
  %1229 = vmatprep.mubr.f32.mxu0 %v772
  %1230 = vmatmul.mubr.f32.gmra.mrb[0].mxu0 %v771
  %v1231 = vpop.f32.mrb[0].mxu0
  %v1232 = vadd.f32 %v1107, %v1231
  %v1233 = vpop.f32.mrb[0].mxu0
  %v1234 = vadd.f32 %v1109, %v1233
  %1235 = vmatprep.mubr.f32.mxu0 %v778
  %1236 = vmatmul.mubr.f32.gmra.mrb[0].mxu0 %v777
  %v1237 = vpop.f32.mrb[0].mxu0
  %v1238 = vadd.f32 %v1113, %v1237
  %v1239 = vpop.f32.mrb[0].mxu0
  %v1240 = vadd.f32 %v1115, %v1239
  %1241 = vdwg.mxu0
  %1242 = vmatprep.subr.mxu0 %v910
  %1243 = vmatpush1.msra.mxu0 %v909
  %1244 = vmatprep.subr.mxu0 %v912
  %1245 = vmatpush1.msra.mxu0 %v911
  %1246 = vmatprep.subr.mxu0 %v914
  %1247 = vmatpush1.msra.mxu0 %v913
  %1248 = vmatprep.subr.mxu0 %v916
  %1249 = vmatpush1.msra.mxu0 %v915
  %1250 = vmatprep.subr.mxu0 %v918
  %1251 = vmatpush1.msra.mxu0 %v917
  %1252 = vmatprep.subr.mxu0 %v920
  %1253 = vmatpush1.msra.mxu0 %v919
  %1254 = vmatprep.subr.mxu0 %v922
  %1255 = vmatpush1.msra.mxu0 %v921
  %1256 = vmatprep.subr.mxu0 %v924
  %1257 = vmatpush1.msra.mxu0 %v923
  %1258 = vmatprep.subr.mxu0 %v926
  %1259 = vmatpush1.msra.mxu0 %v925
  %1260 = vmatprep.subr.mxu0 %v928
  %1261 = vmatpush1.msra.mxu0 %v927
  %1262 = vmatprep.subr.mxu0 %v930
  %1263 = vmatpush1.msra.mxu0 %v929
  %1264 = vmatprep.subr.mxu0 %v932
  %1265 = vmatpush1.msra.mxu0 %v931
  %1266 = vmatprep.subr.mxu0 %v934
  %1267 = vmatpush1.msra.mxu0 %v933
  %1268 = vmatprep.subr.mxu0 %v936
  %1269 = vmatpush1.msra.mxu0 %v935
  %1270 = vmatprep.subr.mxu0 %v938
  %1271 = vmatpush1.msra.mxu0 %v937
  %1272 = vmatprep.subr.mxu0 %v940
  %1273 = vmatpush1.msra.mxu0 %v939
  %1274 = vmatprep.subr.mxu0 %v942
  %1275 = vmatpush1.msra.mxu0 %v941
  %1276 = vmatprep.subr.mxu0 %v944
  %1277 = vmatpush1.msra.mxu0 %v943
  %1278 = vmatprep.subr.mxu0 %v946
  %1279 = vmatpush1.msra.mxu0 %v945
  %1280 = vmatprep.subr.mxu0 %v948
  %1281 = vmatpush1.msra.mxu0 %v947
  %1282 = vmatprep.subr.mxu0 %v950
  %1283 = vmatpush1.msra.mxu0 %v949
  %1284 = vmatprep.subr.mxu0 %v952
  %1285 = vmatpush1.msra.mxu0 %v951
  %1286 = vmatprep.subr.mxu0 %v954
  %1287 = vmatpush1.msra.mxu0 %v953
  %1288 = vmatprep.subr.mxu0 %v956
  %1289 = vmatpush1.msra.mxu0 %v955
  %1290 = vmatprep.subr.mxu0 %v958
  %1291 = vmatpush1.msra.mxu0 %v957
  %1292 = vmatprep.subr.mxu0 %v960
  %1293 = vmatpush1.msra.mxu0 %v959
  %1294 = vmatprep.subr.mxu0 0.0
  %1295 = vmatpush1.msra.mxu0 0.0
  %1296 = vmatprep.subr.mxu0 0.0
  %1297 = vmatpush1.msra.mxu0 0.0
  %1298 = vmatprep.subr.mxu0 0.0
  %1299 = vmatpush1.msra.mxu0 0.0
  %1300 = vmatprep.subr.mxu0 0.0
  %1301 = vmatpush1.msra.mxu0 0.0
  %1302 = vmatprep.subr.mxu0 0.0
  %1303 = vmatpush1.msra.mxu0 0.0
  %1304 = vmatprep.subr.mxu0 0.0
  %1305 = vmatpush1.msra.mxu0 0.0
  %1306 = vmatprep.mubr.f32.mxu0 %v963
  %1307 = vmatmul.mubr.f32.gmra.mrb[0].mxu0 %v725
  %v1308 = vpop.f32.mrb[0].mxu0
  %v1309 = vadd.f32 %v1184, %v1308
  %v1310 = vpop.f32.mrb[0].mxu0
  %v1311 = vadd.f32 %v1186, %v1310
  %1312 = vmatprep.mubr.f32.mxu0 %v966
  %1313 = vmatmul.mubr.f32.gmra.mrb[0].mxu0 %v731
  %v1314 = vpop.f32.mrb[0].mxu0
  %v1315 = vadd.f32 %v1190, %v1314
  %v1316 = vpop.f32.mrb[0].mxu0
  %v1317 = vadd.f32 %v1192, %v1316
  %1318 = vmatprep.mubr.f32.mxu0 %v969
  %1319 = vmatmul.mubr.f32.gmra.mrb[0].mxu0 %v737
  %v1320 = vpop.f32.mrb[0].mxu0
  %v1321 = vadd.f32 %v1196, %v1320
  %v1322 = vpop.f32.mrb[0].mxu0
  %v1323 = vadd.f32 %v1198, %v1322
  %1324 = vmatprep.mubr.f32.mxu0 %v972
  %1325 = vmatmul.mubr.f32.gmra.mrb[0].mxu0 %v743
  %v1326 = vpop.f32.mrb[0].mxu0
  %v1327 = vadd.f32 %v1202, %v1326
  %v1328 = vpop.f32.mrb[0].mxu0
  %v1329 = vadd.f32 %v1204, %v1328
  %1330 = vmatprep.mubr.f32.mxu0 %v975
  %1331 = vmatmul.mubr.f32.gmra.mrb[0].mxu0 %v749
  %v1332 = vpop.f32.mrb[0].mxu0
  %v1333 = vadd.f32 %v1208, %v1332
  %v1334 = vpop.f32.mrb[0].mxu0
  %v1335 = vadd.f32 %v1210, %v1334
  %1336 = vmatprep.mubr.f32.mxu0 %v978
  %1337 = vmatmul.mubr.f32.gmra.mrb[0].mxu0 %v755
  %v1338 = vpop.f32.mrb[0].mxu0
  %v1339 = vadd.f32 %v1214, %v1338
  %v1340 = vpop.f32.mrb[0].mxu0
  %v1341 = vadd.f32 %v1216, %v1340
  %1342 = vmatprep.mubr.f32.mxu0 %v981
  %1343 = vmatmul.mubr.f32.gmra.mrb[0].mxu0 %v761
  %v1344 = vpop.f32.mrb[0].mxu0
  %v1345 = vadd.f32 %v1220, %v1344
  %v1346 = vpop.f32.mrb[0].mxu0
  %v1347 = vadd.f32 %v1222, %v1346
  %1348 = vmatprep.mubr.f32.mxu0 %v984
  %1349 = vmatmul.mubr.f32.gmra.mrb[0].mxu0 %v767
  %v1350 = vpop.f32.mrb[0].mxu0
  %v1351 = vadd.f32 %v1226, %v1350
  %v1352 = vpop.f32.mrb[0].mxu0
  %v1353 = vadd.f32 %v1228, %v1352
  %1354 = vmatprep.mubr.f32.mxu0 %v987
  %1355 = vmatmul.mubr.f32.gmra.mrb[0].mxu0 %v773
  %v1356 = vpop.f32.mrb[0].mxu0
  %v1357 = vadd.f32 %v1232, %v1356
  %v1358 = vpop.f32.mrb[0].mxu0
  %v1359 = vadd.f32 %v1234, %v1358
  %1360 = vmatprep.mubr.f32.mxu0 %v990
  %1361 = vmatmul.mubr.f32.gmra.mrb[0].mxu0 %v779
  %v1362 = vpop.f32.mrb[0].mxu0
  %v1363 = vadd.f32 %v1238, %v1362
  %v1364 = vpop.f32.mrb[0].mxu0
  %v1365 = vadd.f32 %v1240, %v1364
  %1366 = vdwg.mxu0
  %1367 = vst [vmem:[%s2] sm:$0xff] %v1309
  %1368 = vst [vmem:[%s2 + $0x8] sm:$0xff] %v1311
  %1369 = vst [vmem:[%s2 + $0x10] sm:$0xff] %v1315
  %1370 = vst [vmem:[%s2 + $0x18] sm:$0xff] %v1317
  %1371 = vst [vmem:[%s2 + $0x20] sm:$0xff] %v1321
  %1372 = vst [vmem:[%s2 + $0x28] sm:$0xff] %v1323
  %1373 = vst [vmem:[%s2 + $0x30] sm:$0xff] %v1327
  %1374 = vst [vmem:[%s2 + $0x38] sm:$0xff] %v1329
  %1375 = vst [vmem:[%s2 + $0x40] sm:$0xff] %v1333
  %1376 = vst [vmem:[%s2 + $0x48] sm:$0xff] %v1335
  %1377 = vst [vmem:[%s2 + $0x50] sm:$0xff] %v1339
  %1378 = vst [vmem:[%s2 + $0x58] sm:$0xff] %v1341
  %1379 = vst [vmem:[%s2 + $0x60] sm:$0xff] %v1345
  %1380 = vst [vmem:[%s2 + $0x68] sm:$0xff] %v1347
  %1381 = vst [vmem:[%s2 + $0x70] sm:$0xff] %v1351
  %1382 = vst [vmem:[%s2 + $0x78] sm:$0xff] %v1353
  %1383 = vst [vmem:[%s2 + $0x80] sm:$0xff] %v1357
  %1384 = vst [vmem:[%s2 + $0x88] sm:$0xff] %v1359
  %1385 = vst [vmem:[%s2 + $0x90] sm:$0xff] %v1363
  %1386 = vst [vmem:[%s2 + $0x98] sm:$0xff] %v1365
  %v1387 = vld [vmem:[%s0 + $0xa0] sm:$0xff]
  %v1388 = vld [vmem:[%s0 + $0xa8] sm:$0xff]
  %v1389 = vld [vmem:[%s0 + $0xb0] sm:$0xff]
  %v1390 = vld [vmem:[%s0 + $0xb8] sm:$0xff]
  %v1391 = vld [vmem:[%s0 + $0xc0] sm:$0xff]
  %v1392 = vld [vmem:[%s0 + $0xc8] sm:$0xff]
  %v1393 = vld [vmem:[%s0 + $0xd0] sm:$0xff]
  %v1394 = vld [vmem:[%s0 + $0xd8] sm:$0xff]
  %v1395 = vld [vmem:[%s0 + $0xe0] sm:$0xff]
  %v1396 = vld [vmem:[%s0 + $0xe8] sm:$0xff]
  %v1397 = vld [vmem:[%s0 + $0xf0] sm:$0xff]
  %v1398 = vld [vmem:[%s0 + $0xf8] sm:$0xff]
  %v1399 = vld [vmem:[%s0 + $0x100] sm:$0xff]
  %v1400 = vld [vmem:[%s0 + $0x108] sm:$0xff]
  %v1401 = vld [vmem:[%s0 + $0x110] sm:$0xff]
  %v1402 = vld [vmem:[%s0 + $0x118] sm:$0xff]
  %v1403 = vld [vmem:[%s0 + $0x120] sm:$0xff]
  %v1404 = vld [vmem:[%s0 + $0x128] sm:$0xff]
  %v1405 = vld [vmem:[%s0 + $0x130] sm:$0xff]
  %v1406 = vld [vmem:[%s0 + $0x138] sm:$0xff]
  %v1407 = vmax.f32 %v1387, 0.0
  %v1408 = vmax.f32 %v1388, 0.0
  %v1409 = vmax.f32 %v1389, 0.0
  %v1410 = vmax.f32 %v1390, 0.0
  %v1411 = vmax.f32 %v1391, 0.0
  %v1412 = vmax.f32 %v1392, 0.0
  %v1413 = vmax.f32 %v1393, 0.0
  %v1414 = vmax.f32 %v1394, 0.0
  %v1415 = vmax.f32 %v1395, 0.0
  %v1416 = vmax.f32 %v1396, 0.0
  %v1417 = vmax.f32 %v1397, 0.0
  %v1418 = vmax.f32 %v1398, 0.0
  %v1419 = vmax.f32 %v1399, 0.0
  %v1420 = vmax.f32 %v1400, 0.0
  %v1421 = vmax.f32 %v1401, 0.0
  %v1422 = vmax.f32 %v1402, 0.0
  %v1423 = vmax.f32 %v1403, 0.0
  %v1424 = vmax.f32 %v1404, 0.0
  %v1425 = vmax.f32 %v1405, 0.0
  %v1426 = vmax.f32 %v1406, 0.0
  %1427 = vrot.lane.b32.xlu0 %v1407, 17
  %v1428 = vpop.permute.xlu0 %1427
  %1429 = vrot.lane.b32.xlu0 %v1409, 17
  %v1430 = vpop.permute.xlu0 %1429
  %1431 = vrot.lane.b32.xlu0 %v1411, 17
  %v1432 = vpop.permute.xlu0 %1431
  %1433 = vrot.lane.b32.xlu0 %v1413, 17
  %v1434 = vpop.permute.xlu0 %1433
  %1435 = vrot.lane.b32.xlu0 %v1415, 17
  %v1436 = vpop.permute.xlu0 %1435
  %1437 = vrot.lane.b32.xlu0 %v1417, 17
  %v1438 = vpop.permute.xlu0 %1437
  %1439 = vrot.lane.b32.xlu0 %v1419, 17
  %v1440 = vpop.permute.xlu0 %1439
  %1441 = vrot.lane.b32.xlu0 %v1421, 17
  %v1442 = vpop.permute.xlu0 %1441
  %1443 = vrot.lane.b32.xlu0 %v1423, 17
  %v1444 = vpop.permute.xlu0 %1443
  %1445 = vrot.lane.b32.xlu0 %v1425, 17
  %v1446 = vpop.permute.xlu0 %1445
  %1447 = vrot.lane.b32.xlu0 %v1408, 17
  %v1448 = vpop.permute.xlu0 %1447
  %1449 = vrot.lane.b32.xlu0 %v1410, 17
  %v1450 = vpop.permute.xlu0 %1449
  %1451 = vrot.lane.b32.xlu0 %v1412, 17
  %v1452 = vpop.permute.xlu0 %1451
  %1453 = vrot.lane.b32.xlu0 %v1414, 17
  %v1454 = vpop.permute.xlu0 %1453
  %1455 = vrot.lane.b32.xlu0 %v1416, 17
  %v1456 = vpop.permute.xlu0 %1455
  %1457 = vrot.lane.b32.xlu0 %v1418, 17
  %v1458 = vpop.permute.xlu0 %1457
  %1459 = vrot.lane.b32.xlu0 %v1420, 17
  %v1460 = vpop.permute.xlu0 %1459
  %1461 = vrot.lane.b32.xlu0 %v1422, 17
  %v1462 = vpop.permute.xlu0 %1461
  %1463 = vrot.lane.b32.xlu0 %v1424, 17
  %v1464 = vpop.permute.xlu0 %1463
  %1465 = vrot.lane.b32.xlu0 %v1426, 17
  %v1466 = vpop.permute.xlu0 %1465
  %v1467 = vsel %vm93, %v1428, %v1448
  %v1468 = vsel %vm93, %v1430, %v1450
  %v1469 = vsel %vm93, %v1432, %v1452
  %v1470 = vsel %vm93, %v1434, %v1454
  %v1471 = vsel %vm93, %v1436, %v1456
  %v1472 = vsel %vm93, %v1438, %v1458
  %v1473 = vsel %vm93, %v1440, %v1460
  %v1474 = vsel %vm93, %v1442, %v1462
  %v1475 = vsel %vm93, %v1444, %v1464
  %v1476 = vsel %vm93, %v1446, %v1466
  %v1477 = vsel %vm93, %v1448, %v1428
  %v1478 = vsel %vm93, %v1450, %v1430
  %v1479 = vsel %vm93, %v1452, %v1432
  %v1480 = vsel %vm93, %v1454, %v1434
  %v1481 = vsel %vm93, %v1456, %v1436
  %v1482 = vsel %vm93, %v1458, %v1438
  %v1483 = vsel %vm93, %v1460, %v1440
  %v1484 = vsel %vm93, %v1462, %v1442
  %v1485 = vsel %vm93, %v1464, %v1444
  %v1486 = vsel %vm93, %v1466, %v1446
  %1487 = vst [vmem:[#allocation2] sm:$0xff] %v1477
  %1488 = vst [vmem:[#allocation2 + $0x8] sm:$0xff] %v1467
  %1489 = vst [vmem:[#allocation2 + $0x10] sm:$0xff] %v1478
  %1490 = vst [vmem:[#allocation2 + $0x18] sm:$0xff] %v1468
  %1491 = vst [vmem:[#allocation2 + $0x20] sm:$0xff] %v1479
  %1492 = vst [vmem:[#allocation2 + $0x28] sm:$0xff] %v1469
  %1493 = vst [vmem:[#allocation2 + $0x30] sm:$0xff] %v1480
  %1494 = vst [vmem:[#allocation2 + $0x38] sm:$0xff] %v1470
  %1495 = vst [vmem:[#allocation2 + $0x40] sm:$0xff] %v1481
  %1496 = vst [vmem:[#allocation2 + $0x48] sm:$0xff] %v1471
  %1497 = vst [vmem:[#allocation2 + $0x50] sm:$0xff] %v1482
  %1498 = vst [vmem:[#allocation2 + $0x58] sm:$0xff] %v1472
  %1499 = vst [vmem:[#allocation2 + $0x60] sm:$0xff] %v1483
  %1500 = vst [vmem:[#allocation2 + $0x68] sm:$0xff] %v1473
  %1501 = vst [vmem:[#allocation2 + $0x70] sm:$0xff] %v1484
  %1502 = vst [vmem:[#allocation2 + $0x78] sm:$0xff] %v1474
  %1503 = vst [vmem:[#allocation2 + $0x80] sm:$0xff] %v1485
  %1504 = vst [vmem:[#allocation2 + $0x88] sm:$0xff] %v1475
  %1505 = vst [vmem:[#allocation2 + $0x90] sm:$0xff] %v1486
  %1506 = vst [vmem:[#allocation2 + $0x98] sm:$0xff] %v1476
  %1507 = vrot.lane.b32.xlu0 %v1407, 16
  %v1508 = vpop.permute.xlu0 %1507
  %1509 = vrot.lane.b32.xlu0 %v1409, 16
  %v1510 = vpop.permute.xlu0 %1509
  %1511 = vrot.lane.b32.xlu0 %v1411, 16
  %v1512 = vpop.permute.xlu0 %1511
  %1513 = vrot.lane.b32.xlu0 %v1413, 16
  %v1514 = vpop.permute.xlu0 %1513
  %1515 = vrot.lane.b32.xlu0 %v1415, 16
  %v1516 = vpop.permute.xlu0 %1515
  %1517 = vrot.lane.b32.xlu0 %v1417, 16
  %v1518 = vpop.permute.xlu0 %1517
  %1519 = vrot.lane.b32.xlu0 %v1419, 16
  %v1520 = vpop.permute.xlu0 %1519
  %1521 = vrot.lane.b32.xlu0 %v1421, 16
  %v1522 = vpop.permute.xlu0 %1521
  %1523 = vrot.lane.b32.xlu0 %v1423, 16
  %v1524 = vpop.permute.xlu0 %1523
  %1525 = vrot.lane.b32.xlu0 %v1425, 16
  %v1526 = vpop.permute.xlu0 %1525
  %1527 = vrot.lane.b32.xlu0 %v1408, 16
  %v1528 = vpop.permute.xlu0 %1527
  %1529 = vrot.lane.b32.xlu0 %v1410, 16
  %v1530 = vpop.permute.xlu0 %1529
  %1531 = vrot.lane.b32.xlu0 %v1412, 16
  %v1532 = vpop.permute.xlu0 %1531
  %1533 = vrot.lane.b32.xlu0 %v1414, 16
  %v1534 = vpop.permute.xlu0 %1533
  %1535 = vrot.lane.b32.xlu0 %v1416, 16
  %v1536 = vpop.permute.xlu0 %1535
  %1537 = vrot.lane.b32.xlu0 %v1418, 16
  %v1538 = vpop.permute.xlu0 %1537
  %1539 = vrot.lane.b32.xlu0 %v1420, 16
  %v1540 = vpop.permute.xlu0 %1539
  %1541 = vrot.lane.b32.xlu0 %v1422, 16
  %v1542 = vpop.permute.xlu0 %1541
  %1543 = vrot.lane.b32.xlu0 %v1424, 16
  %v1544 = vpop.permute.xlu0 %1543
  %1545 = vrot.lane.b32.xlu0 %v1426, 16
  %v1546 = vpop.permute.xlu0 %1545
  %v1547 = vsel %vm174, %v1508, %v1528
  %v1548 = vsel %vm174, %v1510, %v1530
  %v1549 = vsel %vm174, %v1512, %v1532
  %v1550 = vsel %vm174, %v1514, %v1534
  %v1551 = vsel %vm174, %v1516, %v1536
  %v1552 = vsel %vm174, %v1518, %v1538
  %v1553 = vsel %vm174, %v1520, %v1540
  %v1554 = vsel %vm174, %v1522, %v1542
  %v1555 = vsel %vm174, %v1524, %v1544
  %v1556 = vsel %vm174, %v1526, %v1546
  %v1557 = vsel %vm174, %v1528, %v1508
  %v1558 = vsel %vm174, %v1530, %v1510
  %v1559 = vsel %vm174, %v1532, %v1512
  %v1560 = vsel %vm174, %v1534, %v1514
  %v1561 = vsel %vm174, %v1536, %v1516
  %v1562 = vsel %vm174, %v1538, %v1518
  %v1563 = vsel %vm174, %v1540, %v1520
  %v1564 = vsel %vm174, %v1542, %v1522
  %v1565 = vsel %vm174, %v1544, %v1524
  %v1566 = vsel %vm174, %v1546, %v1526
  %1567 = vst [vmem:[#allocation2 + $0xa0] sm:$0xff] %v1557
  %1568 = vst [vmem:[#allocation2 + $0xa8] sm:$0xff] %v1547
  %1569 = vst [vmem:[#allocation2 + $0xb0] sm:$0xff] %v1558
  %1570 = vst [vmem:[#allocation2 + $0xb8] sm:$0xff] %v1548
  %1571 = vst [vmem:[#allocation2 + $0xc0] sm:$0xff] %v1559
  %1572 = vst [vmem:[#allocation2 + $0xc8] sm:$0xff] %v1549
  %1573 = vst [vmem:[#allocation2 + $0xd0] sm:$0xff] %v1560
  %1574 = vst [vmem:[#allocation2 + $0xd8] sm:$0xff] %v1550
  %1575 = vst [vmem:[#allocation2 + $0xe0] sm:$0xff] %v1561
  %1576 = vst [vmem:[#allocation2 + $0xe8] sm:$0xff] %v1551
  %1577 = vst [vmem:[#allocation2 + $0xf0] sm:$0xff] %v1562
  %1578 = vst [vmem:[#allocation2 + $0xf8] sm:$0xff] %v1552
  %1579 = vst [vmem:[#allocation2 + $0x100] sm:$0xff] %v1563
  %1580 = vst [vmem:[#allocation2 + $0x108] sm:$0xff] %v1553
  %1581 = vst [vmem:[#allocation2 + $0x110] sm:$0xff] %v1564
  %1582 = vst [vmem:[#allocation2 + $0x118] sm:$0xff] %v1554
  %1583 = vst [vmem:[#allocation2 + $0x120] sm:$0xff] %v1565
  %1584 = vst [vmem:[#allocation2 + $0x128] sm:$0xff] %v1555
  %1585 = vst [vmem:[#allocation2 + $0x130] sm:$0xff] %v1566
  %1586 = vst [vmem:[#allocation2 + $0x138] sm:$0xff] %v1556
  %1587 = vrot.lane.b32.xlu0 %v1407, 15
  %v1588 = vpop.permute.xlu0 %1587
  %1589 = vrot.lane.b32.xlu0 %v1409, 15
  %v1590 = vpop.permute.xlu0 %1589
  %1591 = vrot.lane.b32.xlu0 %v1411, 15
  %v1592 = vpop.permute.xlu0 %1591
  %1593 = vrot.lane.b32.xlu0 %v1413, 15
  %v1594 = vpop.permute.xlu0 %1593
  %1595 = vrot.lane.b32.xlu0 %v1415, 15
  %v1596 = vpop.permute.xlu0 %1595
  %1597 = vrot.lane.b32.xlu0 %v1417, 15
  %v1598 = vpop.permute.xlu0 %1597
  %1599 = vrot.lane.b32.xlu0 %v1419, 15
  %v1600 = vpop.permute.xlu0 %1599
  %1601 = vrot.lane.b32.xlu0 %v1421, 15
  %v1602 = vpop.permute.xlu0 %1601
  %1603 = vrot.lane.b32.xlu0 %v1423, 15
  %v1604 = vpop.permute.xlu0 %1603
  %1605 = vrot.lane.b32.xlu0 %v1425, 15
  %v1606 = vpop.permute.xlu0 %1605
  %1607 = vrot.lane.b32.xlu0 %v1408, 15
  %v1608 = vpop.permute.xlu0 %1607
  %1609 = vrot.lane.b32.xlu0 %v1410, 15
  %v1610 = vpop.permute.xlu0 %1609
  %1611 = vrot.lane.b32.xlu0 %v1412, 15
  %v1612 = vpop.permute.xlu0 %1611
  %1613 = vrot.lane.b32.xlu0 %v1414, 15
  %v1614 = vpop.permute.xlu0 %1613
  %1615 = vrot.lane.b32.xlu0 %v1416, 15
  %v1616 = vpop.permute.xlu0 %1615
  %1617 = vrot.lane.b32.xlu0 %v1418, 15
  %v1618 = vpop.permute.xlu0 %1617
  %1619 = vrot.lane.b32.xlu0 %v1420, 15
  %v1620 = vpop.permute.xlu0 %1619
  %1621 = vrot.lane.b32.xlu0 %v1422, 15
  %v1622 = vpop.permute.xlu0 %1621
  %1623 = vrot.lane.b32.xlu0 %v1424, 15
  %v1624 = vpop.permute.xlu0 %1623
  %1625 = vrot.lane.b32.xlu0 %v1426, 15
  %v1626 = vpop.permute.xlu0 %1625
  %v1627 = vsel %vm255, %v1588, %v1608
  %v1628 = vsel %vm255, %v1590, %v1610
  %v1629 = vsel %vm255, %v1592, %v1612
  %v1630 = vsel %vm255, %v1594, %v1614
  %v1631 = vsel %vm255, %v1596, %v1616
  %v1632 = vsel %vm255, %v1598, %v1618
  %v1633 = vsel %vm255, %v1600, %v1620
  %v1634 = vsel %vm255, %v1602, %v1622
  %v1635 = vsel %vm255, %v1604, %v1624
  %v1636 = vsel %vm255, %v1606, %v1626
  %v1637 = vsel %vm255, %v1608, %v1588
  %v1638 = vsel %vm255, %v1610, %v1590
  %v1639 = vsel %vm255, %v1612, %v1592
  %v1640 = vsel %vm255, %v1614, %v1594
  %v1641 = vsel %vm255, %v1616, %v1596
  %v1642 = vsel %vm255, %v1618, %v1598
  %v1643 = vsel %vm255, %v1620, %v1600
  %v1644 = vsel %vm255, %v1622, %v1602
  %v1645 = vsel %vm255, %v1624, %v1604
  %v1646 = vsel %vm255, %v1626, %v1606
  %1647 = vst [vmem:[#allocation2 + $0x140] sm:$0xff] %v1637
  %1648 = vst [vmem:[#allocation2 + $0x148] sm:$0xff] %v1627
  %1649 = vst [vmem:[#allocation2 + $0x150] sm:$0xff] %v1638
  %1650 = vst [vmem:[#allocation2 + $0x158] sm:$0xff] %v1628
  %1651 = vst [vmem:[#allocation2 + $0x160] sm:$0xff] %v1639
  %1652 = vst [vmem:[#allocation2 + $0x168] sm:$0xff] %v1629
  %1653 = vst [vmem:[#allocation2 + $0x170] sm:$0xff] %v1640
  %1654 = vst [vmem:[#allocation2 + $0x178] sm:$0xff] %v1630
  %1655 = vst [vmem:[#allocation2 + $0x180] sm:$0xff] %v1641
  %1656 = vst [vmem:[#allocation2 + $0x188] sm:$0xff] %v1631
  %1657 = vst [vmem:[#allocation2 + $0x190] sm:$0xff] %v1642
  %1658 = vst [vmem:[#allocation2 + $0x198] sm:$0xff] %v1632
  %1659 = vst [vmem:[#allocation2 + $0x1a0] sm:$0xff] %v1643
  %1660 = vst [vmem:[#allocation2 + $0x1a8] sm:$0xff] %v1633
  %1661 = vst [vmem:[#allocation2 + $0x1b0] sm:$0xff] %v1644
  %1662 = vst [vmem:[#allocation2 + $0x1b8] sm:$0xff] %v1634
  %1663 = vst [vmem:[#allocation2 + $0x1c0] sm:$0xff] %v1645
  %1664 = vst [vmem:[#allocation2 + $0x1c8] sm:$0xff] %v1635
  %1665 = vst [vmem:[#allocation2 + $0x1d0] sm:$0xff] %v1646
  %1666 = vst [vmem:[#allocation2 + $0x1d8] sm:$0xff] %v1636
  %1667 = vrot.lane.b32.xlu0 %v1407, 1
  %v1668 = vpop.permute.xlu0 %1667
  %1669 = vrot.lane.b32.xlu0 %v1409, 1
  %v1670 = vpop.permute.xlu0 %1669
  %1671 = vrot.lane.b32.xlu0 %v1411, 1
  %v1672 = vpop.permute.xlu0 %1671
  %1673 = vrot.lane.b32.xlu0 %v1413, 1
  %v1674 = vpop.permute.xlu0 %1673
  %1675 = vrot.lane.b32.xlu0 %v1415, 1
  %v1676 = vpop.permute.xlu0 %1675
  %1677 = vrot.lane.b32.xlu0 %v1417, 1
  %v1678 = vpop.permute.xlu0 %1677
  %1679 = vrot.lane.b32.xlu0 %v1419, 1
  %v1680 = vpop.permute.xlu0 %1679
  %1681 = vrot.lane.b32.xlu0 %v1421, 1
  %v1682 = vpop.permute.xlu0 %1681
  %1683 = vrot.lane.b32.xlu0 %v1423, 1
  %v1684 = vpop.permute.xlu0 %1683
  %1685 = vrot.lane.b32.xlu0 %v1425, 1
  %v1686 = vpop.permute.xlu0 %1685
  %1687 = vrot.lane.b32.xlu0 %v1408, 1
  %v1688 = vpop.permute.xlu0 %1687
  %1689 = vrot.lane.b32.xlu0 %v1410, 1
  %v1690 = vpop.permute.xlu0 %1689
  %1691 = vrot.lane.b32.xlu0 %v1412, 1
  %v1692 = vpop.permute.xlu0 %1691
  %1693 = vrot.lane.b32.xlu0 %v1414, 1
  %v1694 = vpop.permute.xlu0 %1693
  %1695 = vrot.lane.b32.xlu0 %v1416, 1
  %v1696 = vpop.permute.xlu0 %1695
  %1697 = vrot.lane.b32.xlu0 %v1418, 1
  %v1698 = vpop.permute.xlu0 %1697
  %1699 = vrot.lane.b32.xlu0 %v1420, 1
  %v1700 = vpop.permute.xlu0 %1699
  %1701 = vrot.lane.b32.xlu0 %v1422, 1
  %v1702 = vpop.permute.xlu0 %1701
  %1703 = vrot.lane.b32.xlu0 %v1424, 1
  %v1704 = vpop.permute.xlu0 %1703
  %1705 = vrot.lane.b32.xlu0 %v1426, 1
  %v1706 = vpop.permute.xlu0 %1705
  %v1707 = vsel %vm336, %v1668, %v1688
  %v1708 = vsel %vm336, %v1670, %v1690
  %v1709 = vsel %vm336, %v1672, %v1692
  %v1710 = vsel %vm336, %v1674, %v1694
  %v1711 = vsel %vm336, %v1676, %v1696
  %v1712 = vsel %vm336, %v1678, %v1698
  %v1713 = vsel %vm336, %v1680, %v1700
  %v1714 = vsel %vm336, %v1682, %v1702
  %v1715 = vsel %vm336, %v1684, %v1704
  %v1716 = vsel %vm336, %v1686, %v1706
  %v1717 = vsel %vm336, %v1688, %v1668
  %v1718 = vsel %vm336, %v1690, %v1670
  %v1719 = vsel %vm336, %v1692, %v1672
  %v1720 = vsel %vm336, %v1694, %v1674
  %v1721 = vsel %vm336, %v1696, %v1676
  %v1722 = vsel %vm336, %v1698, %v1678
  %v1723 = vsel %vm336, %v1700, %v1680
  %v1724 = vsel %vm336, %v1702, %v1682
  %v1725 = vsel %vm336, %v1704, %v1684
  %v1726 = vsel %vm336, %v1706, %v1686
  %1727 = vst [vmem:[#allocation2 + $0x1e0] sm:$0xff] %v1717
  %1728 = vst [vmem:[#allocation2 + $0x1e8] sm:$0xff] %v1707
  %1729 = vst [vmem:[#allocation2 + $0x1f0] sm:$0xff] %v1718
  %1730 = vst [vmem:[#allocation2 + $0x1f8] sm:$0xff] %v1708
  %1731 = vst [vmem:[#allocation2 + $0x200] sm:$0xff] %v1719
  %1732 = vst [vmem:[#allocation2 + $0x208] sm:$0xff] %v1709
  %1733 = vst [vmem:[#allocation2 + $0x210] sm:$0xff] %v1720
  %1734 = vst [vmem:[#allocation2 + $0x218] sm:$0xff] %v1710
  %1735 = vst [vmem:[#allocation2 + $0x220] sm:$0xff] %v1721
  %1736 = vst [vmem:[#allocation2 + $0x228] sm:$0xff] %v1711
  %1737 = vst [vmem:[#allocation2 + $0x230] sm:$0xff] %v1722
  %1738 = vst [vmem:[#allocation2 + $0x238] sm:$0xff] %v1712
  %1739 = vst [vmem:[#allocation2 + $0x240] sm:$0xff] %v1723
  %1740 = vst [vmem:[#allocation2 + $0x248] sm:$0xff] %v1713
  %1741 = vst [vmem:[#allocation2 + $0x250] sm:$0xff] %v1724
  %1742 = vst [vmem:[#allocation2 + $0x258] sm:$0xff] %v1714
  %1743 = vst [vmem:[#allocation2 + $0x260] sm:$0xff] %v1725
  %1744 = vst [vmem:[#allocation2 + $0x268] sm:$0xff] %v1715
  %1745 = vst [vmem:[#allocation2 + $0x270] sm:$0xff] %v1726
  %1746 = vst [vmem:[#allocation2 + $0x278] sm:$0xff] %v1716
  %1747 = vst [vmem:[#allocation2 + $0x280] sm:$0xff] %v1407
  %1748 = vst [vmem:[#allocation2 + $0x288] sm:$0xff] %v1408
  %1749 = vst [vmem:[#allocation2 + $0x290] sm:$0xff] %v1409
  %1750 = vst [vmem:[#allocation2 + $0x298] sm:$0xff] %v1410
  %1751 = vst [vmem:[#allocation2 + $0x2a0] sm:$0xff] %v1411
  %1752 = vst [vmem:[#allocation2 + $0x2a8] sm:$0xff] %v1412
  %1753 = vst [vmem:[#allocation2 + $0x2b0] sm:$0xff] %v1413
  %1754 = vst [vmem:[#allocation2 + $0x2b8] sm:$0xff] %v1414
  %1755 = vst [vmem:[#allocation2 + $0x2c0] sm:$0xff] %v1415
  %1756 = vst [vmem:[#allocation2 + $0x2c8] sm:$0xff] %v1416
  %1757 = vst [vmem:[#allocation2 + $0x2d0] sm:$0xff] %v1417
  %1758 = vst [vmem:[#allocation2 + $0x2d8] sm:$0xff] %v1418
  %1759 = vst [vmem:[#allocation2 + $0x2e0] sm:$0xff] %v1419
  %1760 = vst [vmem:[#allocation2 + $0x2e8] sm:$0xff] %v1420
  %1761 = vst [vmem:[#allocation2 + $0x2f0] sm:$0xff] %v1421
  %1762 = vst [vmem:[#allocation2 + $0x2f8] sm:$0xff] %v1422
  %1763 = vst [vmem:[#allocation2 + $0x300] sm:$0xff] %v1423
  %1764 = vst [vmem:[#allocation2 + $0x308] sm:$0xff] %v1424
  %1765 = vst [vmem:[#allocation2 + $0x310] sm:$0xff] %v1425
  %1766 = vst [vmem:[#allocation2 + $0x318] sm:$0xff] %v1426
  %1767 = vrot.lane.b32.xlu0 %v1407, 127
  %v1768 = vpop.permute.xlu0 %1767
  %1769 = vrot.lane.b32.xlu0 %v1409, 127
  %v1770 = vpop.permute.xlu0 %1769
  %1771 = vrot.lane.b32.xlu0 %v1411, 127
  %v1772 = vpop.permute.xlu0 %1771
  %1773 = vrot.lane.b32.xlu0 %v1413, 127
  %v1774 = vpop.permute.xlu0 %1773
  %1775 = vrot.lane.b32.xlu0 %v1415, 127
  %v1776 = vpop.permute.xlu0 %1775
  %1777 = vrot.lane.b32.xlu0 %v1417, 127
  %v1778 = vpop.permute.xlu0 %1777
  %1779 = vrot.lane.b32.xlu0 %v1419, 127
  %v1780 = vpop.permute.xlu0 %1779
  %1781 = vrot.lane.b32.xlu0 %v1421, 127
  %v1782 = vpop.permute.xlu0 %1781
  %1783 = vrot.lane.b32.xlu0 %v1423, 127
  %v1784 = vpop.permute.xlu0 %1783
  %1785 = vrot.lane.b32.xlu0 %v1425, 127
  %v1786 = vpop.permute.xlu0 %1785
  %1787 = vrot.lane.b32.xlu0 %v1408, 127
  %v1788 = vpop.permute.xlu0 %1787
  %1789 = vrot.lane.b32.xlu0 %v1410, 127
  %v1790 = vpop.permute.xlu0 %1789
  %1791 = vrot.lane.b32.xlu0 %v1412, 127
  %v1792 = vpop.permute.xlu0 %1791
  %1793 = vrot.lane.b32.xlu0 %v1414, 127
  %v1794 = vpop.permute.xlu0 %1793
  %1795 = vrot.lane.b32.xlu0 %v1416, 127
  %v1796 = vpop.permute.xlu0 %1795
  %1797 = vrot.lane.b32.xlu0 %v1418, 127
  %v1798 = vpop.permute.xlu0 %1797
  %1799 = vrot.lane.b32.xlu0 %v1420, 127
  %v1800 = vpop.permute.xlu0 %1799
  %1801 = vrot.lane.b32.xlu0 %v1422, 127
  %v1802 = vpop.permute.xlu0 %1801
  %1803 = vrot.lane.b32.xlu0 %v1424, 127
  %v1804 = vpop.permute.xlu0 %1803
  %1805 = vrot.lane.b32.xlu0 %v1426, 127
  %v1806 = vpop.permute.xlu0 %1805
  %v1807 = vsel %vm437, %v1768, %v1788
  %v1808 = vsel %vm437, %v1770, %v1790
  %v1809 = vsel %vm437, %v1772, %v1792
  %v1810 = vsel %vm437, %v1774, %v1794
  %v1811 = vsel %vm437, %v1776, %v1796
  %v1812 = vsel %vm437, %v1778, %v1798
  %v1813 = vsel %vm437, %v1780, %v1800
  %v1814 = vsel %vm437, %v1782, %v1802
  %v1815 = vsel %vm437, %v1784, %v1804
  %v1816 = vsel %vm437, %v1786, %v1806
  %v1817 = vsel %vm437, %v1788, %v1768
  %v1818 = vsel %vm437, %v1790, %v1770
  %v1819 = vsel %vm437, %v1792, %v1772
  %v1820 = vsel %vm437, %v1794, %v1774
  %v1821 = vsel %vm437, %v1796, %v1776
  %v1822 = vsel %vm437, %v1798, %v1778
  %v1823 = vsel %vm437, %v1800, %v1780
  %v1824 = vsel %vm437, %v1802, %v1782
  %v1825 = vsel %vm437, %v1804, %v1784
  %v1826 = vsel %vm437, %v1806, %v1786
  %1827 = vst [vmem:[#allocation2 + $0x320] sm:$0xff] %v1807
  %1828 = vst [vmem:[#allocation2 + $0x328] sm:$0xff] %v1817
  %1829 = vst [vmem:[#allocation2 + $0x330] sm:$0xff] %v1808
  %1830 = vst [vmem:[#allocation2 + $0x338] sm:$0xff] %v1818
  %1831 = vst [vmem:[#allocation2 + $0x340] sm:$0xff] %v1809
  %1832 = vst [vmem:[#allocation2 + $0x348] sm:$0xff] %v1819
  %1833 = vst [vmem:[#allocation2 + $0x350] sm:$0xff] %v1810
  %1834 = vst [vmem:[#allocation2 + $0x358] sm:$0xff] %v1820
  %1835 = vst [vmem:[#allocation2 + $0x360] sm:$0xff] %v1811
  %1836 = vst [vmem:[#allocation2 + $0x368] sm:$0xff] %v1821
  %1837 = vst [vmem:[#allocation2 + $0x370] sm:$0xff] %v1812
  %1838 = vst [vmem:[#allocation2 + $0x378] sm:$0xff] %v1822
  %1839 = vst [vmem:[#allocation2 + $0x380] sm:$0xff] %v1813
  %1840 = vst [vmem:[#allocation2 + $0x388] sm:$0xff] %v1823
  %1841 = vst [vmem:[#allocation2 + $0x390] sm:$0xff] %v1814
  %1842 = vst [vmem:[#allocation2 + $0x398] sm:$0xff] %v1824
  %1843 = vst [vmem:[#allocation2 + $0x3a0] sm:$0xff] %v1815
  %1844 = vst [vmem:[#allocation2 + $0x3a8] sm:$0xff] %v1825
  %1845 = vst [vmem:[#allocation2 + $0x3b0] sm:$0xff] %v1816
  %1846 = vst [vmem:[#allocation2 + $0x3b8] sm:$0xff] %v1826
  %1847 = vrot.lane.b32.xlu0 %v1407, 113
  %v1848 = vpop.permute.xlu0 %1847
  %1849 = vrot.lane.b32.xlu0 %v1409, 113
  %v1850 = vpop.permute.xlu0 %1849
  %1851 = vrot.lane.b32.xlu0 %v1411, 113
  %v1852 = vpop.permute.xlu0 %1851
  %1853 = vrot.lane.b32.xlu0 %v1413, 113
  %v1854 = vpop.permute.xlu0 %1853
  %1855 = vrot.lane.b32.xlu0 %v1415, 113
  %v1856 = vpop.permute.xlu0 %1855
  %1857 = vrot.lane.b32.xlu0 %v1417, 113
  %v1858 = vpop.permute.xlu0 %1857
  %1859 = vrot.lane.b32.xlu0 %v1419, 113
  %v1860 = vpop.permute.xlu0 %1859
  %1861 = vrot.lane.b32.xlu0 %v1421, 113
  %v1862 = vpop.permute.xlu0 %1861
  %1863 = vrot.lane.b32.xlu0 %v1423, 113
  %v1864 = vpop.permute.xlu0 %1863
  %1865 = vrot.lane.b32.xlu0 %v1425, 113
  %v1866 = vpop.permute.xlu0 %1865
  %1867 = vrot.lane.b32.xlu0 %v1408, 113
  %v1868 = vpop.permute.xlu0 %1867
  %1869 = vrot.lane.b32.xlu0 %v1410, 113
  %v1870 = vpop.permute.xlu0 %1869
  %1871 = vrot.lane.b32.xlu0 %v1412, 113
  %v1872 = vpop.permute.xlu0 %1871
  %1873 = vrot.lane.b32.xlu0 %v1414, 113
  %v1874 = vpop.permute.xlu0 %1873
  %1875 = vrot.lane.b32.xlu0 %v1416, 113
  %v1876 = vpop.permute.xlu0 %1875
  %1877 = vrot.lane.b32.xlu0 %v1418, 113
  %v1878 = vpop.permute.xlu0 %1877
  %1879 = vrot.lane.b32.xlu0 %v1420, 113
  %v1880 = vpop.permute.xlu0 %1879
  %1881 = vrot.lane.b32.xlu0 %v1422, 113
  %v1882 = vpop.permute.xlu0 %1881
  %1883 = vrot.lane.b32.xlu0 %v1424, 113
  %v1884 = vpop.permute.xlu0 %1883
  %1885 = vrot.lane.b32.xlu0 %v1426, 113
  %v1886 = vpop.permute.xlu0 %1885
  %v1887 = vsel %vm518, %v1848, %v1868
  %v1888 = vsel %vm518, %v1850, %v1870
  %v1889 = vsel %vm518, %v1852, %v1872
  %v1890 = vsel %vm518, %v1854, %v1874
  %v1891 = vsel %vm518, %v1856, %v1876
  %v1892 = vsel %vm518, %v1858, %v1878
  %v1893 = vsel %vm518, %v1860, %v1880
  %v1894 = vsel %vm518, %v1862, %v1882
  %v1895 = vsel %vm518, %v1864, %v1884
  %v1896 = vsel %vm518, %v1866, %v1886
  %v1897 = vsel %vm518, %v1868, %v1848
  %v1898 = vsel %vm518, %v1870, %v1850
  %v1899 = vsel %vm518, %v1872, %v1852
  %v1900 = vsel %vm518, %v1874, %v1854
  %v1901 = vsel %vm518, %v1876, %v1856
  %v1902 = vsel %vm518, %v1878, %v1858
  %v1903 = vsel %vm518, %v1880, %v1860
  %v1904 = vsel %vm518, %v1882, %v1862
  %v1905 = vsel %vm518, %v1884, %v1864
  %v1906 = vsel %vm518, %v1886, %v1866
  %1907 = vst [vmem:[#allocation2 + $0x3c0] sm:$0xff] %v1887
  %1908 = vst [vmem:[#allocation2 + $0x3c8] sm:$0xff] %v1897
  %1909 = vst [vmem:[#allocation2 + $0x3d0] sm:$0xff] %v1888
  %1910 = vst [vmem:[#allocation2 + $0x3d8] sm:$0xff] %v1898
  %1911 = vst [vmem:[#allocation2 + $0x3e0] sm:$0xff] %v1889
  %1912 = vst [vmem:[#allocation2 + $0x3e8] sm:$0xff] %v1899
  %1913 = vst [vmem:[#allocation2 + $0x3f0] sm:$0xff] %v1890
  %1914 = vst [vmem:[#allocation2 + $0x3f8] sm:$0xff] %v1900
  %1915 = vst [vmem:[#allocation2 + $0x400] sm:$0xff] %v1891
  %1916 = vst [vmem:[#allocation2 + $0x408] sm:$0xff] %v1901
  %1917 = vst [vmem:[#allocation2 + $0x410] sm:$0xff] %v1892
  %1918 = vst [vmem:[#allocation2 + $0x418] sm:$0xff] %v1902
  %1919 = vst [vmem:[#allocation2 + $0x420] sm:$0xff] %v1893
  %1920 = vst [vmem:[#allocation2 + $0x428] sm:$0xff] %v1903
  %1921 = vst [vmem:[#allocation2 + $0x430] sm:$0xff] %v1894
  %1922 = vst [vmem:[#allocation2 + $0x438] sm:$0xff] %v1904
  %1923 = vst [vmem:[#allocation2 + $0x440] sm:$0xff] %v1895
  %1924 = vst [vmem:[#allocation2 + $0x448] sm:$0xff] %v1905
  %1925 = vst [vmem:[#allocation2 + $0x450] sm:$0xff] %v1896
  %1926 = vst [vmem:[#allocation2 + $0x458] sm:$0xff] %v1906
  %1927 = vrot.lane.b32.xlu0 %v1407, 112
  %v1928 = vpop.permute.xlu0 %1927
  %1929 = vrot.lane.b32.xlu0 %v1409, 112
  %v1930 = vpop.permute.xlu0 %1929
  %1931 = vrot.lane.b32.xlu0 %v1411, 112
  %v1932 = vpop.permute.xlu0 %1931
  %1933 = vrot.lane.b32.xlu0 %v1413, 112
  %v1934 = vpop.permute.xlu0 %1933
  %1935 = vrot.lane.b32.xlu0 %v1415, 112
  %v1936 = vpop.permute.xlu0 %1935
  %1937 = vrot.lane.b32.xlu0 %v1417, 112
  %v1938 = vpop.permute.xlu0 %1937
  %1939 = vrot.lane.b32.xlu0 %v1419, 112
  %v1940 = vpop.permute.xlu0 %1939
  %1941 = vrot.lane.b32.xlu0 %v1421, 112
  %v1942 = vpop.permute.xlu0 %1941
  %1943 = vrot.lane.b32.xlu0 %v1423, 112
  %v1944 = vpop.permute.xlu0 %1943
  %1945 = vrot.lane.b32.xlu0 %v1425, 112
  %v1946 = vpop.permute.xlu0 %1945
  %1947 = vrot.lane.b32.xlu0 %v1408, 112
  %v1948 = vpop.permute.xlu0 %1947
  %1949 = vrot.lane.b32.xlu0 %v1410, 112
  %v1950 = vpop.permute.xlu0 %1949
  %1951 = vrot.lane.b32.xlu0 %v1412, 112
  %v1952 = vpop.permute.xlu0 %1951
  %1953 = vrot.lane.b32.xlu0 %v1414, 112
  %v1954 = vpop.permute.xlu0 %1953
  %1955 = vrot.lane.b32.xlu0 %v1416, 112
  %v1956 = vpop.permute.xlu0 %1955
  %1957 = vrot.lane.b32.xlu0 %v1418, 112
  %v1958 = vpop.permute.xlu0 %1957
  %1959 = vrot.lane.b32.xlu0 %v1420, 112
  %v1960 = vpop.permute.xlu0 %1959
  %1961 = vrot.lane.b32.xlu0 %v1422, 112
  %v1962 = vpop.permute.xlu0 %1961
  %1963 = vrot.lane.b32.xlu0 %v1424, 112
  %v1964 = vpop.permute.xlu0 %1963
  %1965 = vrot.lane.b32.xlu0 %v1426, 112
  %v1966 = vpop.permute.xlu0 %1965
  %v1967 = vsel %vm599, %v1928, %v1948
  %v1968 = vsel %vm599, %v1930, %v1950
  %v1969 = vsel %vm599, %v1932, %v1952
  %v1970 = vsel %vm599, %v1934, %v1954
  %v1971 = vsel %vm599, %v1936, %v1956
  %v1972 = vsel %vm599, %v1938, %v1958
  %v1973 = vsel %vm599, %v1940, %v1960
  %v1974 = vsel %vm599, %v1942, %v1962
  %v1975 = vsel %vm599, %v1944, %v1964
  %v1976 = vsel %vm599, %v1946, %v1966
  %v1977 = vsel %vm599, %v1948, %v1928
  %v1978 = vsel %vm599, %v1950, %v1930
  %v1979 = vsel %vm599, %v1952, %v1932
  %v1980 = vsel %vm599, %v1954, %v1934
  %v1981 = vsel %vm599, %v1956, %v1936
  %v1982 = vsel %vm599, %v1958, %v1938
  %v1983 = vsel %vm599, %v1960, %v1940
  %v1984 = vsel %vm599, %v1962, %v1942
  %v1985 = vsel %vm599, %v1964, %v1944
  %v1986 = vsel %vm599, %v1966, %v1946
  %1987 = vst [vmem:[#allocation2 + $0x460] sm:$0xff] %v1967
  %1988 = vst [vmem:[#allocation2 + $0x468] sm:$0xff] %v1977
  %1989 = vst [vmem:[#allocation2 + $0x470] sm:$0xff] %v1968
  %1990 = vst [vmem:[#allocation2 + $0x478] sm:$0xff] %v1978
  %1991 = vst [vmem:[#allocation2 + $0x480] sm:$0xff] %v1969
  %1992 = vst [vmem:[#allocation2 + $0x488] sm:$0xff] %v1979
  %1993 = vst [vmem:[#allocation2 + $0x490] sm:$0xff] %v1970
  %1994 = vst [vmem:[#allocation2 + $0x498] sm:$0xff] %v1980
  %1995 = vst [vmem:[#allocation2 + $0x4a0] sm:$0xff] %v1971
  %1996 = vst [vmem:[#allocation2 + $0x4a8] sm:$0xff] %v1981
  %1997 = vst [vmem:[#allocation2 + $0x4b0] sm:$0xff] %v1972
  %1998 = vst [vmem:[#allocation2 + $0x4b8] sm:$0xff] %v1982
  %1999 = vst [vmem:[#allocation2 + $0x4c0] sm:$0xff] %v1973
  %2000 = vst [vmem:[#allocation2 + $0x4c8] sm:$0xff] %v1983
  %2001 = vst [vmem:[#allocation2 + $0x4d0] sm:$0xff] %v1974
  %2002 = vst [vmem:[#allocation2 + $0x4d8] sm:$0xff] %v1984
  %2003 = vst [vmem:[#allocation2 + $0x4e0] sm:$0xff] %v1975
  %2004 = vst [vmem:[#allocation2 + $0x4e8] sm:$0xff] %v1985
  %2005 = vst [vmem:[#allocation2 + $0x4f0] sm:$0xff] %v1976
  %2006 = vst [vmem:[#allocation2 + $0x4f8] sm:$0xff] %v1986
  %2007 = vrot.lane.b32.xlu0 %v1407, 111
  %v2008 = vpop.permute.xlu0 %2007
  %2009 = vrot.lane.b32.xlu0 %v1409, 111
  %v2010 = vpop.permute.xlu0 %2009
  %2011 = vrot.lane.b32.xlu0 %v1411, 111
  %v2012 = vpop.permute.xlu0 %2011
  %2013 = vrot.lane.b32.xlu0 %v1413, 111
  %v2014 = vpop.permute.xlu0 %2013
  %2015 = vrot.lane.b32.xlu0 %v1415, 111
  %v2016 = vpop.permute.xlu0 %2015
  %2017 = vrot.lane.b32.xlu0 %v1417, 111
  %v2018 = vpop.permute.xlu0 %2017
  %2019 = vrot.lane.b32.xlu0 %v1419, 111
  %v2020 = vpop.permute.xlu0 %2019
  %2021 = vrot.lane.b32.xlu0 %v1421, 111
  %v2022 = vpop.permute.xlu0 %2021
  %2023 = vrot.lane.b32.xlu0 %v1423, 111
  %v2024 = vpop.permute.xlu0 %2023
  %2025 = vrot.lane.b32.xlu0 %v1425, 111
  %v2026 = vpop.permute.xlu0 %2025
  %2027 = vrot.lane.b32.xlu0 %v1408, 111
  %v2028 = vpop.permute.xlu0 %2027
  %2029 = vrot.lane.b32.xlu0 %v1410, 111
  %v2030 = vpop.permute.xlu0 %2029
  %2031 = vrot.lane.b32.xlu0 %v1412, 111
  %v2032 = vpop.permute.xlu0 %2031
  %2033 = vrot.lane.b32.xlu0 %v1414, 111
  %v2034 = vpop.permute.xlu0 %2033
  %2035 = vrot.lane.b32.xlu0 %v1416, 111
  %v2036 = vpop.permute.xlu0 %2035
  %2037 = vrot.lane.b32.xlu0 %v1418, 111
  %v2038 = vpop.permute.xlu0 %2037
  %2039 = vrot.lane.b32.xlu0 %v1420, 111
  %v2040 = vpop.permute.xlu0 %2039
  %2041 = vrot.lane.b32.xlu0 %v1422, 111
  %v2042 = vpop.permute.xlu0 %2041
  %2043 = vrot.lane.b32.xlu0 %v1424, 111
  %v2044 = vpop.permute.xlu0 %2043
  %2045 = vrot.lane.b32.xlu0 %v1426, 111
  %v2046 = vpop.permute.xlu0 %2045
  %v2047 = vsel %vm680, %v2008, %v2028
  %v2048 = vsel %vm680, %v2010, %v2030
  %v2049 = vsel %vm680, %v2012, %v2032
  %v2050 = vsel %vm680, %v2014, %v2034
  %v2051 = vsel %vm680, %v2016, %v2036
  %v2052 = vsel %vm680, %v2018, %v2038
  %v2053 = vsel %vm680, %v2020, %v2040
  %v2054 = vsel %vm680, %v2022, %v2042
  %v2055 = vsel %vm680, %v2024, %v2044
  %v2056 = vsel %vm680, %v2026, %v2046
  %v2057 = vsel %vm680, %v2028, %v2008
  %v2058 = vsel %vm680, %v2030, %v2010
  %v2059 = vsel %vm680, %v2032, %v2012
  %v2060 = vsel %vm680, %v2034, %v2014
  %v2061 = vsel %vm680, %v2036, %v2016
  %v2062 = vsel %vm680, %v2038, %v2018
  %v2063 = vsel %vm680, %v2040, %v2020
  %v2064 = vsel %vm680, %v2042, %v2022
  %v2065 = vsel %vm680, %v2044, %v2024
  %v2066 = vsel %vm680, %v2046, %v2026
  %2067 = vst [vmem:[#allocation2 + $0x500] sm:$0xff] %v2047
  %2068 = vst [vmem:[#allocation2 + $0x508] sm:$0xff] %v2057
  %2069 = vst [vmem:[#allocation2 + $0x510] sm:$0xff] %v2048
  %2070 = vst [vmem:[#allocation2 + $0x518] sm:$0xff] %v2058
  %2071 = vst [vmem:[#allocation2 + $0x520] sm:$0xff] %v2049
  %2072 = vst [vmem:[#allocation2 + $0x528] sm:$0xff] %v2059
  %2073 = vst [vmem:[#allocation2 + $0x530] sm:$0xff] %v2050
  %2074 = vst [vmem:[#allocation2 + $0x538] sm:$0xff] %v2060
  %2075 = vst [vmem:[#allocation2 + $0x540] sm:$0xff] %v2051
  %2076 = vst [vmem:[#allocation2 + $0x548] sm:$0xff] %v2061
  %2077 = vst [vmem:[#allocation2 + $0x550] sm:$0xff] %v2052
  %2078 = vst [vmem:[#allocation2 + $0x558] sm:$0xff] %v2062
  %2079 = vst [vmem:[#allocation2 + $0x560] sm:$0xff] %v2053
  %2080 = vst [vmem:[#allocation2 + $0x568] sm:$0xff] %v2063
  %2081 = vst [vmem:[#allocation2 + $0x570] sm:$0xff] %v2054
  %2082 = vst [vmem:[#allocation2 + $0x578] sm:$0xff] %v2064
  %2083 = vst [vmem:[#allocation2 + $0x580] sm:$0xff] %v2055
  %2084 = vst [vmem:[#allocation2 + $0x588] sm:$0xff] %v2065
  %2085 = vst [vmem:[#allocation2 + $0x590] sm:$0xff] %v2056
  %2086 = vst [vmem:[#allocation2 + $0x598] sm:$0xff] %v2066
  %s2087 = scalar_lea.vmem %s1, 480
  %v2088 = vld [vmem:[%s2087] sm:$0xff]
  %v2089 = vld [vmem:[%s2087 + $0x8] sm:$0xff]
  %v2090 = vld [vmem:[%s2087 + $0x10] sm:$0xff]
  %v2091 = vld [vmem:[%s2087 + $0x18] sm:$0xff]
  %v2092 = vld [vmem:[%s2087 + $0x20] sm:$0xff]
  %v2093 = vld [vmem:[%s2087 + $0x28] sm:$0xff]
  %v2094 = vld [vmem:[%s2087 + $0x30] sm:$0xff]
  %v2095 = vld [vmem:[%s2087 + $0x38] sm:$0xff]
  %v2096 = vld [vmem:[%s2087 + $0x40] sm:$0xff]
  %v2097 = vld [vmem:[%s2087 + $0x48] sm:$0xff]
  %v2098 = vld [vmem:[%s2087 + $0x50] sm:$0xff]
  %v2099 = vld [vmem:[%s2087 + $0x58] sm:$0xff]
  %v2100 = vld [vmem:[%s2087 + $0x60] sm:$0xff]
  %v2101 = vld [vmem:[%s2087 + $0x68] sm:$0xff]
  %v2102 = vld [vmem:[%s2087 + $0x70] sm:$0xff]
  %v2103 = vld [vmem:[%s2087 + $0x78] sm:$0xff]
  %v2104 = vld [vmem:[%s2087 + $0x80] sm:$0xff]
  %v2105 = vld [vmem:[%s2087 + $0x88] sm:$0xff]
  %v2106 = vld [vmem:[%s2087 + $0x90] sm:$0xff]
  %v2107 = vld [vmem:[%s2087 + $0x98] sm:$0xff]
  %v2108 = vld [vmem:[%s2087 + $0xa0] sm:$0xff]
  %v2109 = vld [vmem:[%s2087 + $0xa8] sm:$0xff]
  %v2110 = vld [vmem:[%s2087 + $0xb0] sm:$0xff]
  %v2111 = vld [vmem:[%s2087 + $0xb8] sm:$0xff]
  %v2112 = vld [vmem:[%s2087 + $0xc0] sm:$0xff]
  %v2113 = vld [vmem:[%s2087 + $0xc8] sm:$0xff]
  %v2114 = vld [vmem:[%s2087 + $0xd0] sm:$0xff]
  %v2115 = vld [vmem:[%s2087 + $0xd8] sm:$0xff]
  %v2116 = vld [vmem:[%s2087 + $0xe0] sm:$0xff]
  %v2117 = vld [vmem:[%s2087 + $0xe8] sm:$0xff]
  %v2118 = vld [vmem:[%s2087 + $0xf0] sm:$0xff]
  %v2119 = vld [vmem:[%s2087 + $0xf8] sm:$0xff]
  %v2120 = vld [vmem:[%s2087 + $0x100] sm:$0xff]
  %v2121 = vld [vmem:[%s2087 + $0x108] sm:$0xff]
  %v2122 = vld [vmem:[%s2087 + $0x110] sm:$0xff]
  %v2123 = vld [vmem:[%s2087 + $0x118] sm:$0xff]
  %v2124 = vld [vmem:[%s2087 + $0x120] sm:$0xff]
  %v2125 = vld [vmem:[%s2087 + $0x128] sm:$0xff]
  %v2126 = vld [vmem:[%s2087 + $0x130] sm:$0xff]
  %v2127 = vld [vmem:[%s2087 + $0x138] sm:$0xff]
  %v2128 = vld [vmem:[%s2087 + $0x140] sm:$0xff]
  %v2129 = vld [vmem:[%s2087 + $0x148] sm:$0xff]
  %v2130 = vld [vmem:[%s2087 + $0x150] sm:$0xff]
  %v2131 = vld [vmem:[%s2087 + $0x158] sm:$0xff]
  %v2132 = vld [vmem:[%s2087 + $0x160] sm:$0xff]
  %v2133 = vld [vmem:[%s2087 + $0x168] sm:$0xff]
  %v2134 = vld [vmem:[%s2087 + $0x170] sm:$0xff]
  %v2135 = vld [vmem:[%s2087 + $0x178] sm:$0xff]
  %v2136 = vld [vmem:[%s2087 + $0x180] sm:$0xff]
  %v2137 = vld [vmem:[%s2087 + $0x188] sm:$0xff]
  %v2138 = vld [vmem:[%s2087 + $0x190] sm:$0xff]
  %v2139 = vld [vmem:[%s2087 + $0x198] sm:$0xff]
  %v2140 = vld [vmem:[%s2087 + $0x1a0] sm:$0xff]
  %v2141 = vld [vmem:[%s2087 + $0x1a8] sm:$0xff]
  %v2142 = vld [vmem:[%s2087 + $0x1b0] sm:$0xff]
  %v2143 = vld [vmem:[%s2087 + $0x1b8] sm:$0xff]
  %v2144 = vld [vmem:[%s2087 + $0x1c0] sm:$0xff]
  %v2145 = vld [vmem:[%s2087 + $0x1c8] sm:$0xff]
  %v2146 = vld [vmem:[%s2087 + $0x1d0] sm:$0xff]
  %v2147 = vld [vmem:[%s2087 + $0x1d8] sm:$0xff]
  %v2148 = vld [vmem:[#allocation2] sm:$0xff]
  %v2149 = vld [vmem:[#allocation2 + $0x8] sm:$0xff]
  %v2150 = vld [vmem:[#allocation2 + $0x10] sm:$0xff]
  %v2151 = vld [vmem:[#allocation2 + $0x18] sm:$0xff]
  %v2152 = vld [vmem:[#allocation2 + $0x20] sm:$0xff]
  %v2153 = vld [vmem:[#allocation2 + $0x28] sm:$0xff]
  %v2154 = vld [vmem:[#allocation2 + $0x30] sm:$0xff]
  %v2155 = vld [vmem:[#allocation2 + $0x38] sm:$0xff]
  %v2156 = vld [vmem:[#allocation2 + $0x40] sm:$0xff]
  %v2157 = vld [vmem:[#allocation2 + $0x48] sm:$0xff]
  %v2158 = vld [vmem:[#allocation2 + $0x50] sm:$0xff]
  %v2159 = vld [vmem:[#allocation2 + $0x58] sm:$0xff]
  %v2160 = vld [vmem:[#allocation2 + $0x60] sm:$0xff]
  %v2161 = vld [vmem:[#allocation2 + $0x68] sm:$0xff]
  %v2162 = vld [vmem:[#allocation2 + $0x70] sm:$0xff]
  %v2163 = vld [vmem:[#allocation2 + $0x78] sm:$0xff]
  %v2164 = vld [vmem:[#allocation2 + $0x80] sm:$0xff]
  %v2165 = vld [vmem:[#allocation2 + $0x88] sm:$0xff]
  %v2166 = vld [vmem:[#allocation2 + $0x90] sm:$0xff]
  %v2167 = vld [vmem:[#allocation2 + $0x98] sm:$0xff]
  %v2168 = vld [vmem:[#allocation2 + $0xa0] sm:$0xff]
  %v2169 = vld [vmem:[#allocation2 + $0xa8] sm:$0xff]
  %v2170 = vld [vmem:[#allocation2 + $0xb0] sm:$0xff]
  %v2171 = vld [vmem:[#allocation2 + $0xb8] sm:$0xff]
  %v2172 = vld [vmem:[#allocation2 + $0xc0] sm:$0xff]
  %v2173 = vld [vmem:[#allocation2 + $0xc8] sm:$0xff]
  %v2174 = vld [vmem:[#allocation2 + $0xd0] sm:$0xff]
  %v2175 = vld [vmem:[#allocation2 + $0xd8] sm:$0xff]
  %v2176 = vld [vmem:[#allocation2 + $0xe0] sm:$0xff]
  %v2177 = vld [vmem:[#allocation2 + $0xe8] sm:$0xff]
  %v2178 = vld [vmem:[#allocation2 + $0xf0] sm:$0xff]
  %v2179 = vld [vmem:[#allocation2 + $0xf8] sm:$0xff]
  %v2180 = vld [vmem:[#allocation2 + $0x100] sm:$0xff]
  %v2181 = vld [vmem:[#allocation2 + $0x108] sm:$0xff]
  %v2182 = vld [vmem:[#allocation2 + $0x110] sm:$0xff]
  %v2183 = vld [vmem:[#allocation2 + $0x118] sm:$0xff]
  %v2184 = vld [vmem:[#allocation2 + $0x120] sm:$0xff]
  %v2185 = vld [vmem:[#allocation2 + $0x128] sm:$0xff]
  %v2186 = vld [vmem:[#allocation2 + $0x130] sm:$0xff]
  %v2187 = vld [vmem:[#allocation2 + $0x138] sm:$0xff]
  %v2188 = vld [vmem:[#allocation2 + $0x140] sm:$0xff]
  %v2189 = vld [vmem:[#allocation2 + $0x148] sm:$0xff]
  %v2190 = vld [vmem:[#allocation2 + $0x150] sm:$0xff]
  %v2191 = vld [vmem:[#allocation2 + $0x158] sm:$0xff]
  %v2192 = vld [vmem:[#allocation2 + $0x160] sm:$0xff]
  %v2193 = vld [vmem:[#allocation2 + $0x168] sm:$0xff]
  %v2194 = vld [vmem:[#allocation2 + $0x170] sm:$0xff]
  %v2195 = vld [vmem:[#allocation2 + $0x178] sm:$0xff]
  %v2196 = vld [vmem:[#allocation2 + $0x180] sm:$0xff]
  %v2197 = vld [vmem:[#allocation2 + $0x188] sm:$0xff]
  %v2198 = vld [vmem:[#allocation2 + $0x190] sm:$0xff]
  %v2199 = vld [vmem:[#allocation2 + $0x198] sm:$0xff]
  %v2200 = vld [vmem:[#allocation2 + $0x1a0] sm:$0xff]
  %v2201 = vld [vmem:[#allocation2 + $0x1a8] sm:$0xff]
  %v2202 = vld [vmem:[#allocation2 + $0x1b0] sm:$0xff]
  %v2203 = vld [vmem:[#allocation2 + $0x1b8] sm:$0xff]
  %v2204 = vld [vmem:[#allocation2 + $0x1c0] sm:$0xff]
  %v2205 = vld [vmem:[#allocation2 + $0x1c8] sm:$0xff]
  %v2206 = vld [vmem:[#allocation2 + $0x1d0] sm:$0xff]
  %v2207 = vld [vmem:[#allocation2 + $0x1d8] sm:$0xff]
  %v2208 = vld [vmem:[#allocation2 + $0x1e0] sm:$0xff]
  %v2209 = vld [vmem:[#allocation2 + $0x1e8] sm:$0xff]
  %v2210 = vld [vmem:[#allocation2 + $0x1f0] sm:$0xff]
  %v2211 = vld [vmem:[#allocation2 + $0x1f8] sm:$0xff]
  %v2212 = vld [vmem:[#allocation2 + $0x200] sm:$0xff]
  %v2213 = vld [vmem:[#allocation2 + $0x208] sm:$0xff]
  %v2214 = vld [vmem:[#allocation2 + $0x210] sm:$0xff]
  %v2215 = vld [vmem:[#allocation2 + $0x218] sm:$0xff]
  %v2216 = vld [vmem:[#allocation2 + $0x220] sm:$0xff]
  %v2217 = vld [vmem:[#allocation2 + $0x228] sm:$0xff]
  %v2218 = vld [vmem:[#allocation2 + $0x230] sm:$0xff]
  %v2219 = vld [vmem:[#allocation2 + $0x238] sm:$0xff]
  %v2220 = vld [vmem:[#allocation2 + $0x240] sm:$0xff]
  %v2221 = vld [vmem:[#allocation2 + $0x248] sm:$0xff]
  %v2222 = vld [vmem:[#allocation2 + $0x250] sm:$0xff]
  %v2223 = vld [vmem:[#allocation2 + $0x258] sm:$0xff]
  %v2224 = vld [vmem:[#allocation2 + $0x260] sm:$0xff]
  %v2225 = vld [vmem:[#allocation2 + $0x268] sm:$0xff]
  %v2226 = vld [vmem:[#allocation2 + $0x270] sm:$0xff]
  %v2227 = vld [vmem:[#allocation2 + $0x278] sm:$0xff]
  %v2228 = vld [vmem:[#allocation2 + $0x280] sm:$0xff]
  %v2229 = vld [vmem:[#allocation2 + $0x288] sm:$0xff]
  %v2230 = vld [vmem:[#allocation2 + $0x290] sm:$0xff]
  %v2231 = vld [vmem:[#allocation2 + $0x298] sm:$0xff]
  %v2232 = vld [vmem:[#allocation2 + $0x2a0] sm:$0xff]
  %v2233 = vld [vmem:[#allocation2 + $0x2a8] sm:$0xff]
  %v2234 = vld [vmem:[#allocation2 + $0x2b0] sm:$0xff]
  %v2235 = vld [vmem:[#allocation2 + $0x2b8] sm:$0xff]
  %v2236 = vld [vmem:[#allocation2 + $0x2c0] sm:$0xff]
  %v2237 = vld [vmem:[#allocation2 + $0x2c8] sm:$0xff]
  %v2238 = vld [vmem:[#allocation2 + $0x2d0] sm:$0xff]
  %v2239 = vld [vmem:[#allocation2 + $0x2d8] sm:$0xff]
  %v2240 = vld [vmem:[#allocation2 + $0x2e0] sm:$0xff]
  %v2241 = vld [vmem:[#allocation2 + $0x2e8] sm:$0xff]
  %v2242 = vld [vmem:[#allocation2 + $0x2f0] sm:$0xff]
  %v2243 = vld [vmem:[#allocation2 + $0x2f8] sm:$0xff]
  %v2244 = vld [vmem:[#allocation2 + $0x300] sm:$0xff]
  %v2245 = vld [vmem:[#allocation2 + $0x308] sm:$0xff]
  %v2246 = vld [vmem:[#allocation2 + $0x310] sm:$0xff]
  %v2247 = vld [vmem:[#allocation2 + $0x318] sm:$0xff]
  %v2248 = vld [vmem:[#allocation2 + $0x320] sm:$0xff]
  %v2249 = vld [vmem:[#allocation2 + $0x328] sm:$0xff]
  %v2250 = vld [vmem:[#allocation2 + $0x330] sm:$0xff]
  %v2251 = vld [vmem:[#allocation2 + $0x338] sm:$0xff]
  %v2252 = vld [vmem:[#allocation2 + $0x340] sm:$0xff]
  %v2253 = vld [vmem:[#allocation2 + $0x348] sm:$0xff]
  %v2254 = vld [vmem:[#allocation2 + $0x350] sm:$0xff]
  %v2255 = vld [vmem:[#allocation2 + $0x358] sm:$0xff]
  %v2256 = vld [vmem:[#allocation2 + $0x360] sm:$0xff]
  %v2257 = vld [vmem:[#allocation2 + $0x368] sm:$0xff]
  %v2258 = vld [vmem:[#allocation2 + $0x370] sm:$0xff]
  %v2259 = vld [vmem:[#allocation2 + $0x378] sm:$0xff]
  %v2260 = vld [vmem:[#allocation2 + $0x380] sm:$0xff]
  %v2261 = vld [vmem:[#allocation2 + $0x388] sm:$0xff]
  %v2262 = vld [vmem:[#allocation2 + $0x390] sm:$0xff]
  %v2263 = vld [vmem:[#allocation2 + $0x398] sm:$0xff]
  %v2264 = vld [vmem:[#allocation2 + $0x3a0] sm:$0xff]
  %v2265 = vld [vmem:[#allocation2 + $0x3a8] sm:$0xff]
  %v2266 = vld [vmem:[#allocation2 + $0x3b0] sm:$0xff]
  %v2267 = vld [vmem:[#allocation2 + $0x3b8] sm:$0xff]
  %v2268 = vld [vmem:[#allocation2 + $0x3c0] sm:$0xff]
  %v2269 = vld [vmem:[#allocation2 + $0x3c8] sm:$0xff]
  %v2270 = vld [vmem:[#allocation2 + $0x3d0] sm:$0xff]
  %v2271 = vld [vmem:[#allocation2 + $0x3d8] sm:$0xff]
  %v2272 = vld [vmem:[#allocation2 + $0x3e0] sm:$0xff]
  %v2273 = vld [vmem:[#allocation2 + $0x3e8] sm:$0xff]
  %v2274 = vld [vmem:[#allocation2 + $0x3f0] sm:$0xff]
  %v2275 = vld [vmem:[#allocation2 + $0x3f8] sm:$0xff]
  %v2276 = vld [vmem:[#allocation2 + $0x400] sm:$0xff]
  %v2277 = vld [vmem:[#allocation2 + $0x408] sm:$0xff]
  %v2278 = vld [vmem:[#allocation2 + $0x410] sm:$0xff]
  %v2279 = vld [vmem:[#allocation2 + $0x418] sm:$0xff]
  %v2280 = vld [vmem:[#allocation2 + $0x420] sm:$0xff]
  %v2281 = vld [vmem:[#allocation2 + $0x428] sm:$0xff]
  %v2282 = vld [vmem:[#allocation2 + $0x430] sm:$0xff]
  %v2283 = vld [vmem:[#allocation2 + $0x438] sm:$0xff]
  %v2284 = vld [vmem:[#allocation2 + $0x440] sm:$0xff]
  %v2285 = vld [vmem:[#allocation2 + $0x448] sm:$0xff]
  %v2286 = vld [vmem:[#allocation2 + $0x450] sm:$0xff]
  %v2287 = vld [vmem:[#allocation2 + $0x458] sm:$0xff]
  %v2288 = vld [vmem:[#allocation2 + $0x460] sm:$0xff]
  %v2289 = vld [vmem:[#allocation2 + $0x468] sm:$0xff]
  %v2290 = vld [vmem:[#allocation2 + $0x470] sm:$0xff]
  %v2291 = vld [vmem:[#allocation2 + $0x478] sm:$0xff]
  %v2292 = vld [vmem:[#allocation2 + $0x480] sm:$0xff]
  %v2293 = vld [vmem:[#allocation2 + $0x488] sm:$0xff]
  %v2294 = vld [vmem:[#allocation2 + $0x490] sm:$0xff]
  %v2295 = vld [vmem:[#allocation2 + $0x498] sm:$0xff]
  %v2296 = vld [vmem:[#allocation2 + $0x4a0] sm:$0xff]
  %v2297 = vld [vmem:[#allocation2 + $0x4a8] sm:$0xff]
  %v2298 = vld [vmem:[#allocation2 + $0x4b0] sm:$0xff]
  %v2299 = vld [vmem:[#allocation2 + $0x4b8] sm:$0xff]
  %v2300 = vld [vmem:[#allocation2 + $0x4c0] sm:$0xff]
  %v2301 = vld [vmem:[#allocation2 + $0x4c8] sm:$0xff]
  %v2302 = vld [vmem:[#allocation2 + $0x4d0] sm:$0xff]
  %v2303 = vld [vmem:[#allocation2 + $0x4d8] sm:$0xff]
  %v2304 = vld [vmem:[#allocation2 + $0x4e0] sm:$0xff]
  %v2305 = vld [vmem:[#allocation2 + $0x4e8] sm:$0xff]
  %v2306 = vld [vmem:[#allocation2 + $0x4f0] sm:$0xff]
  %v2307 = vld [vmem:[#allocation2 + $0x4f8] sm:$0xff]
  %v2308 = vld [vmem:[#allocation2 + $0x500] sm:$0xff]
  %v2309 = vld [vmem:[#allocation2 + $0x508] sm:$0xff]
  %v2310 = vld [vmem:[#allocation2 + $0x510] sm:$0xff]
  %v2311 = vld [vmem:[#allocation2 + $0x518] sm:$0xff]
  %v2312 = vld [vmem:[#allocation2 + $0x520] sm:$0xff]
  %v2313 = vld [vmem:[#allocation2 + $0x528] sm:$0xff]
  %v2314 = vld [vmem:[#allocation2 + $0x530] sm:$0xff]
  %v2315 = vld [vmem:[#allocation2 + $0x538] sm:$0xff]
  %v2316 = vld [vmem:[#allocation2 + $0x540] sm:$0xff]
  %v2317 = vld [vmem:[#allocation2 + $0x548] sm:$0xff]
  %v2318 = vld [vmem:[#allocation2 + $0x550] sm:$0xff]
  %v2319 = vld [vmem:[#allocation2 + $0x558] sm:$0xff]
  %v2320 = vld [vmem:[#allocation2 + $0x560] sm:$0xff]
  %v2321 = vld [vmem:[#allocation2 + $0x568] sm:$0xff]
  %v2322 = vld [vmem:[#allocation2 + $0x570] sm:$0xff]
  %v2323 = vld [vmem:[#allocation2 + $0x578] sm:$0xff]
  %v2324 = vld [vmem:[#allocation2 + $0x580] sm:$0xff]
  %v2325 = vld [vmem:[#allocation2 + $0x588] sm:$0xff]
  %v2326 = vld [vmem:[#allocation2 + $0x590] sm:$0xff]
  %v2327 = vld [vmem:[#allocation2 + $0x598] sm:$0xff]
  %v2329 = vsel %vm961, %v2093, 0
  %v2332 = vsel %vm961, %v2099, 0
  %v2335 = vsel %vm961, %v2105, 0
  %v2338 = vsel %vm961, %v2111, 0
  %v2341 = vsel %vm961, %v2117, 0
  %v2344 = vsel %vm961, %v2123, 0
  %v2347 = vsel %vm961, %v2129, 0
  %v2350 = vsel %vm961, %v2135, 0
  %v2353 = vsel %vm961, %v2141, 0
  %v2356 = vsel %vm961, %v2147, 0
  %2358 = vmatprep.subr.mxu0 %v2149
  %2359 = vmatpush1.msra.mxu0 %v2148
  %2360 = vmatprep.subr.mxu0 %v2151
  %2361 = vmatpush1.msra.mxu0 %v2150
  %2362 = vmatprep.subr.mxu0 %v2153
  %2363 = vmatpush1.msra.mxu0 %v2152
  %2364 = vmatprep.subr.mxu0 %v2155
  %2365 = vmatpush1.msra.mxu0 %v2154
  %2366 = vmatprep.subr.mxu0 %v2157
  %2367 = vmatpush1.msra.mxu0 %v2156
  %2368 = vmatprep.subr.mxu0 %v2159
  %2369 = vmatpush1.msra.mxu0 %v2158
  %2370 = vmatprep.subr.mxu0 %v2161
  %2371 = vmatpush1.msra.mxu0 %v2160
  %2372 = vmatprep.subr.mxu0 %v2163
  %2373 = vmatpush1.msra.mxu0 %v2162
  %2374 = vmatprep.subr.mxu0 %v2165
  %2375 = vmatpush1.msra.mxu0 %v2164
  %2376 = vmatprep.subr.mxu0 %v2167
  %2377 = vmatpush1.msra.mxu0 %v2166
  %2378 = vmatprep.subr.mxu0 %v2169
  %2379 = vmatpush1.msra.mxu0 %v2168
  %2380 = vmatprep.subr.mxu0 %v2171
  %2381 = vmatpush1.msra.mxu0 %v2170
  %2382 = vmatprep.subr.mxu0 %v2173
  %2383 = vmatpush1.msra.mxu0 %v2172
  %2384 = vmatprep.subr.mxu0 %v2175
  %2385 = vmatpush1.msra.mxu0 %v2174
  %2386 = vmatprep.subr.mxu0 %v2177
  %2387 = vmatpush1.msra.mxu0 %v2176
  %2388 = vmatprep.subr.mxu0 %v2179
  %2389 = vmatpush1.msra.mxu0 %v2178
  %2390 = vmatprep.subr.mxu0 %v2181
  %2391 = vmatpush1.msra.mxu0 %v2180
  %2392 = vmatprep.subr.mxu0 %v2183
  %2393 = vmatpush1.msra.mxu0 %v2182
  %2394 = vmatprep.subr.mxu0 %v2185
  %2395 = vmatpush1.msra.mxu0 %v2184
  %2396 = vmatprep.subr.mxu0 %v2187
  %2397 = vmatpush1.msra.mxu0 %v2186
  %2398 = vmatprep.subr.mxu0 %v2189
  %2399 = vmatpush1.msra.mxu0 %v2188
  %2400 = vmatprep.subr.mxu0 %v2191
  %2401 = vmatpush1.msra.mxu0 %v2190
  %2402 = vmatprep.subr.mxu0 %v2193
  %2403 = vmatpush1.msra.mxu0 %v2192
  %2404 = vmatprep.subr.mxu0 %v2195
  %2405 = vmatpush1.msra.mxu0 %v2194
  %2406 = vmatprep.subr.mxu0 %v2197
  %2407 = vmatpush1.msra.mxu0 %v2196
  %2408 = vmatprep.subr.mxu0 %v2199
  %2409 = vmatpush1.msra.mxu0 %v2198
  %2410 = vmatprep.subr.mxu0 %v2201
  %2411 = vmatpush1.msra.mxu0 %v2200
  %2412 = vmatprep.subr.mxu0 %v2203
  %2413 = vmatpush1.msra.mxu0 %v2202
  %2414 = vmatprep.subr.mxu0 %v2205
  %2415 = vmatpush1.msra.mxu0 %v2204
  %2416 = vmatprep.subr.mxu0 %v2207
  %2417 = vmatpush1.msra.mxu0 %v2206
  %2418 = vmatprep.subr.mxu0 %v2209
  %2419 = vmatpush1.msra.mxu0 %v2208
  %2420 = vmatprep.subr.mxu0 %v2211
  %2421 = vmatpush1.msra.mxu0 %v2210
  %2422 = vmatprep.mubr.f32.mxu0 %v2089
  %2423 = vmatmul.mubr.f32.gmra.mrb[0].mxu0 %v2088
  %v2424 = vpop.f32.mrb[0].mxu0
  %v2425 = vadd.f32 0.0, %v2424
  %v2426 = vpop.f32.mrb[0].mxu0
  %v2427 = vadd.f32 0.0, %v2426
  %2428 = vmatprep.mubr.f32.mxu0 %v2095
  %2429 = vmatmul.mubr.f32.gmra.mrb[0].mxu0 %v2094
  %v2430 = vpop.f32.mrb[0].mxu0
  %v2431 = vadd.f32 0.0, %v2430
  %v2432 = vpop.f32.mrb[0].mxu0
  %v2433 = vadd.f32 0.0, %v2432
  %2434 = vmatprep.mubr.f32.mxu0 %v2101
  %2435 = vmatmul.mubr.f32.gmra.mrb[0].mxu0 %v2100
  %v2436 = vpop.f32.mrb[0].mxu0
  %v2437 = vadd.f32 0.0, %v2436
  %v2438 = vpop.f32.mrb[0].mxu0
  %v2439 = vadd.f32 0.0, %v2438
  %2440 = vmatprep.mubr.f32.mxu0 %v2107
  %2441 = vmatmul.mubr.f32.gmra.mrb[0].mxu0 %v2106
  %v2442 = vpop.f32.mrb[0].mxu0
  %v2443 = vadd.f32 0.0, %v2442
  %v2444 = vpop.f32.mrb[0].mxu0
  %v2445 = vadd.f32 0.0, %v2444
  %2446 = vmatprep.mubr.f32.mxu0 %v2113
  %2447 = vmatmul.mubr.f32.gmra.mrb[0].mxu0 %v2112
  %v2448 = vpop.f32.mrb[0].mxu0
  %v2449 = vadd.f32 0.0, %v2448
  %v2450 = vpop.f32.mrb[0].mxu0
  %v2451 = vadd.f32 0.0, %v2450
  %2452 = vmatprep.mubr.f32.mxu0 %v2119
  %2453 = vmatmul.mubr.f32.gmra.mrb[0].mxu0 %v2118
  %v2454 = vpop.f32.mrb[0].mxu0
  %v2455 = vadd.f32 0.0, %v2454
  %v2456 = vpop.f32.mrb[0].mxu0
  %v2457 = vadd.f32 0.0, %v2456
  %2458 = vmatprep.mubr.f32.mxu0 %v2125
  %2459 = vmatmul.mubr.f32.gmra.mrb[0].mxu0 %v2124
  %v2460 = vpop.f32.mrb[0].mxu0
  %v2461 = vadd.f32 0.0, %v2460
  %v2462 = vpop.f32.mrb[0].mxu0
  %v2463 = vadd.f32 0.0, %v2462
  %2464 = vmatprep.mubr.f32.mxu0 %v2131
  %2465 = vmatmul.mubr.f32.gmra.mrb[0].mxu0 %v2130
  %v2466 = vpop.f32.mrb[0].mxu0
  %v2467 = vadd.f32 0.0, %v2466
  %v2468 = vpop.f32.mrb[0].mxu0
  %v2469 = vadd.f32 0.0, %v2468
  %2470 = vmatprep.mubr.f32.mxu0 %v2137
  %2471 = vmatmul.mubr.f32.gmra.mrb[0].mxu0 %v2136
  %v2472 = vpop.f32.mrb[0].mxu0
  %v2473 = vadd.f32 0.0, %v2472
  %v2474 = vpop.f32.mrb[0].mxu0
  %v2475 = vadd.f32 0.0, %v2474
  %2476 = vmatprep.mubr.f32.mxu0 %v2143
  %2477 = vmatmul.mubr.f32.gmra.mrb[0].mxu0 %v2142
  %v2478 = vpop.f32.mrb[0].mxu0
  %v2479 = vadd.f32 0.0, %v2478
  %v2480 = vpop.f32.mrb[0].mxu0
  %v2481 = vadd.f32 0.0, %v2480
  %2482 = vdwg.mxu0
  %2483 = vmatprep.subr.mxu0 %v2213
  %2484 = vmatpush1.msra.mxu0 %v2212
  %2485 = vmatprep.subr.mxu0 %v2215
  %2486 = vmatpush1.msra.mxu0 %v2214
  %2487 = vmatprep.subr.mxu0 %v2217
  %2488 = vmatpush1.msra.mxu0 %v2216
  %2489 = vmatprep.subr.mxu0 %v2219
  %2490 = vmatpush1.msra.mxu0 %v2218
  %2491 = vmatprep.subr.mxu0 %v2221
  %2492 = vmatpush1.msra.mxu0 %v2220
  %2493 = vmatprep.subr.mxu0 %v2223
  %2494 = vmatpush1.msra.mxu0 %v2222
  %2495 = vmatprep.subr.mxu0 %v2225
  %2496 = vmatpush1.msra.mxu0 %v2224
  %2497 = vmatprep.subr.mxu0 %v2227
  %2498 = vmatpush1.msra.mxu0 %v2226
  %2499 = vmatprep.subr.mxu0 %v2229
  %2500 = vmatpush1.msra.mxu0 %v2228
  %2501 = vmatprep.subr.mxu0 %v2231
  %2502 = vmatpush1.msra.mxu0 %v2230
  %2503 = vmatprep.subr.mxu0 %v2233
  %2504 = vmatpush1.msra.mxu0 %v2232
  %2505 = vmatprep.subr.mxu0 %v2235
  %2506 = vmatpush1.msra.mxu0 %v2234
  %2507 = vmatprep.subr.mxu0 %v2237
  %2508 = vmatpush1.msra.mxu0 %v2236
  %2509 = vmatprep.subr.mxu0 %v2239
  %2510 = vmatpush1.msra.mxu0 %v2238
  %2511 = vmatprep.subr.mxu0 %v2241
  %2512 = vmatpush1.msra.mxu0 %v2240
  %2513 = vmatprep.subr.mxu0 %v2243
  %2514 = vmatpush1.msra.mxu0 %v2242
  %2515 = vmatprep.subr.mxu0 %v2245
  %2516 = vmatpush1.msra.mxu0 %v2244
  %2517 = vmatprep.subr.mxu0 %v2247
  %2518 = vmatpush1.msra.mxu0 %v2246
  %2519 = vmatprep.subr.mxu0 %v2249
  %2520 = vmatpush1.msra.mxu0 %v2248
  %2521 = vmatprep.subr.mxu0 %v2251
  %2522 = vmatpush1.msra.mxu0 %v2250
  %2523 = vmatprep.subr.mxu0 %v2253
  %2524 = vmatpush1.msra.mxu0 %v2252
  %2525 = vmatprep.subr.mxu0 %v2255
  %2526 = vmatpush1.msra.mxu0 %v2254
  %2527 = vmatprep.subr.mxu0 %v2257
  %2528 = vmatpush1.msra.mxu0 %v2256
  %2529 = vmatprep.subr.mxu0 %v2259
  %2530 = vmatpush1.msra.mxu0 %v2258
  %2531 = vmatprep.subr.mxu0 %v2261
  %2532 = vmatpush1.msra.mxu0 %v2260
  %2533 = vmatprep.subr.mxu0 %v2263
  %2534 = vmatpush1.msra.mxu0 %v2262
  %2535 = vmatprep.subr.mxu0 %v2265
  %2536 = vmatpush1.msra.mxu0 %v2264
  %2537 = vmatprep.subr.mxu0 %v2267
  %2538 = vmatpush1.msra.mxu0 %v2266
  %2539 = vmatprep.subr.mxu0 %v2269
  %2540 = vmatpush1.msra.mxu0 %v2268
  %2541 = vmatprep.subr.mxu0 %v2271
  %2542 = vmatpush1.msra.mxu0 %v2270
  %2543 = vmatprep.subr.mxu0 %v2273
  %2544 = vmatpush1.msra.mxu0 %v2272
  %2545 = vmatprep.subr.mxu0 %v2275
  %2546 = vmatpush1.msra.mxu0 %v2274
  %2547 = vmatprep.mubr.f32.mxu0 %v2091
  %2548 = vmatmul.mubr.f32.gmra.mrb[0].mxu0 %v2090
  %v2549 = vpop.f32.mrb[0].mxu0
  %v2550 = vadd.f32 %v2425, %v2549
  %v2551 = vpop.f32.mrb[0].mxu0
  %v2552 = vadd.f32 %v2427, %v2551
  %2553 = vmatprep.mubr.f32.mxu0 %v2097
  %2554 = vmatmul.mubr.f32.gmra.mrb[0].mxu0 %v2096
  %v2555 = vpop.f32.mrb[0].mxu0
  %v2556 = vadd.f32 %v2431, %v2555
  %v2557 = vpop.f32.mrb[0].mxu0
  %v2558 = vadd.f32 %v2433, %v2557
  %2559 = vmatprep.mubr.f32.mxu0 %v2103
  %2560 = vmatmul.mubr.f32.gmra.mrb[0].mxu0 %v2102
  %v2561 = vpop.f32.mrb[0].mxu0
  %v2562 = vadd.f32 %v2437, %v2561
  %v2563 = vpop.f32.mrb[0].mxu0
  %v2564 = vadd.f32 %v2439, %v2563
  %2565 = vmatprep.mubr.f32.mxu0 %v2109
  %2566 = vmatmul.mubr.f32.gmra.mrb[0].mxu0 %v2108
  %v2567 = vpop.f32.mrb[0].mxu0
  %v2568 = vadd.f32 %v2443, %v2567
  %v2569 = vpop.f32.mrb[0].mxu0
  %v2570 = vadd.f32 %v2445, %v2569
  %2571 = vmatprep.mubr.f32.mxu0 %v2115
  %2572 = vmatmul.mubr.f32.gmra.mrb[0].mxu0 %v2114
  %v2573 = vpop.f32.mrb[0].mxu0
  %v2574 = vadd.f32 %v2449, %v2573
  %v2575 = vpop.f32.mrb[0].mxu0
  %v2576 = vadd.f32 %v2451, %v2575
  %2577 = vmatprep.mubr.f32.mxu0 %v2121
  %2578 = vmatmul.mubr.f32.gmra.mrb[0].mxu0 %v2120
  %v2579 = vpop.f32.mrb[0].mxu0
  %v2580 = vadd.f32 %v2455, %v2579
  %v2581 = vpop.f32.mrb[0].mxu0
  %v2582 = vadd.f32 %v2457, %v2581
  %2583 = vmatprep.mubr.f32.mxu0 %v2127
  %2584 = vmatmul.mubr.f32.gmra.mrb[0].mxu0 %v2126
  %v2585 = vpop.f32.mrb[0].mxu0
  %v2586 = vadd.f32 %v2461, %v2585
  %v2587 = vpop.f32.mrb[0].mxu0
  %v2588 = vadd.f32 %v2463, %v2587
  %2589 = vmatprep.mubr.f32.mxu0 %v2133
  %2590 = vmatmul.mubr.f32.gmra.mrb[0].mxu0 %v2132
  %v2591 = vpop.f32.mrb[0].mxu0
  %v2592 = vadd.f32 %v2467, %v2591
  %v2593 = vpop.f32.mrb[0].mxu0
  %v2594 = vadd.f32 %v2469, %v2593
  %2595 = vmatprep.mubr.f32.mxu0 %v2139
  %2596 = vmatmul.mubr.f32.gmra.mrb[0].mxu0 %v2138
  %v2597 = vpop.f32.mrb[0].mxu0
  %v2598 = vadd.f32 %v2473, %v2597
  %v2599 = vpop.f32.mrb[0].mxu0
  %v2600 = vadd.f32 %v2475, %v2599
  %2601 = vmatprep.mubr.f32.mxu0 %v2145
  %2602 = vmatmul.mubr.f32.gmra.mrb[0].mxu0 %v2144
  %v2603 = vpop.f32.mrb[0].mxu0
  %v2604 = vadd.f32 %v2479, %v2603
  %v2605 = vpop.f32.mrb[0].mxu0
  %v2606 = vadd.f32 %v2481, %v2605
  %2607 = vdwg.mxu0
  %2608 = vmatprep.subr.mxu0 %v2277
  %2609 = vmatpush1.msra.mxu0 %v2276
  %2610 = vmatprep.subr.mxu0 %v2279
  %2611 = vmatpush1.msra.mxu0 %v2278
  %2612 = vmatprep.subr.mxu0 %v2281
  %2613 = vmatpush1.msra.mxu0 %v2280
  %2614 = vmatprep.subr.mxu0 %v2283
  %2615 = vmatpush1.msra.mxu0 %v2282
  %2616 = vmatprep.subr.mxu0 %v2285
  %2617 = vmatpush1.msra.mxu0 %v2284
  %2618 = vmatprep.subr.mxu0 %v2287
  %2619 = vmatpush1.msra.mxu0 %v2286
  %2620 = vmatprep.subr.mxu0 %v2289
  %2621 = vmatpush1.msra.mxu0 %v2288
  %2622 = vmatprep.subr.mxu0 %v2291
  %2623 = vmatpush1.msra.mxu0 %v2290
  %2624 = vmatprep.subr.mxu0 %v2293
  %2625 = vmatpush1.msra.mxu0 %v2292
  %2626 = vmatprep.subr.mxu0 %v2295
  %2627 = vmatpush1.msra.mxu0 %v2294
  %2628 = vmatprep.subr.mxu0 %v2297
  %2629 = vmatpush1.msra.mxu0 %v2296
  %2630 = vmatprep.subr.mxu0 %v2299
  %2631 = vmatpush1.msra.mxu0 %v2298
  %2632 = vmatprep.subr.mxu0 %v2301
  %2633 = vmatpush1.msra.mxu0 %v2300
  %2634 = vmatprep.subr.mxu0 %v2303
  %2635 = vmatpush1.msra.mxu0 %v2302
  %2636 = vmatprep.subr.mxu0 %v2305
  %2637 = vmatpush1.msra.mxu0 %v2304
  %2638 = vmatprep.subr.mxu0 %v2307
  %2639 = vmatpush1.msra.mxu0 %v2306
  %2640 = vmatprep.subr.mxu0 %v2309
  %2641 = vmatpush1.msra.mxu0 %v2308
  %2642 = vmatprep.subr.mxu0 %v2311
  %2643 = vmatpush1.msra.mxu0 %v2310
  %2644 = vmatprep.subr.mxu0 %v2313
  %2645 = vmatpush1.msra.mxu0 %v2312
  %2646 = vmatprep.subr.mxu0 %v2315
  %2647 = vmatpush1.msra.mxu0 %v2314
  %2648 = vmatprep.subr.mxu0 %v2317
  %2649 = vmatpush1.msra.mxu0 %v2316
  %2650 = vmatprep.subr.mxu0 %v2319
  %2651 = vmatpush1.msra.mxu0 %v2318
  %2652 = vmatprep.subr.mxu0 %v2321
  %2653 = vmatpush1.msra.mxu0 %v2320
  %2654 = vmatprep.subr.mxu0 %v2323
  %2655 = vmatpush1.msra.mxu0 %v2322
  %2656 = vmatprep.subr.mxu0 %v2325
  %2657 = vmatpush1.msra.mxu0 %v2324
  %2658 = vmatprep.subr.mxu0 %v2327
  %2659 = vmatpush1.msra.mxu0 %v2326
  %2660 = vmatprep.subr.mxu0 0.0
  %2661 = vmatpush1.msra.mxu0 0.0
  %2662 = vmatprep.subr.mxu0 0.0
  %2663 = vmatpush1.msra.mxu0 0.0
  %2664 = vmatprep.subr.mxu0 0.0
  %2665 = vmatpush1.msra.mxu0 0.0
  %2666 = vmatprep.subr.mxu0 0.0
  %2667 = vmatpush1.msra.mxu0 0.0
  %2668 = vmatprep.subr.mxu0 0.0
  %2669 = vmatpush1.msra.mxu0 0.0
  %2670 = vmatprep.subr.mxu0 0.0
  %2671 = vmatpush1.msra.mxu0 0.0
  %2672 = vmatprep.mubr.f32.mxu0 %v2329
  %2673 = vmatmul.mubr.f32.gmra.mrb[0].mxu0 %v2092
  %v2674 = vpop.f32.mrb[0].mxu0
  %v2675 = vadd.f32 %v2550, %v2674
  %v2676 = vpop.f32.mrb[0].mxu0
  %v2677 = vadd.f32 %v2552, %v2676
  %2678 = vmatprep.mubr.f32.mxu0 %v2332
  %2679 = vmatmul.mubr.f32.gmra.mrb[0].mxu0 %v2098
  %v2680 = vpop.f32.mrb[0].mxu0
  %v2681 = vadd.f32 %v2556, %v2680
  %v2682 = vpop.f32.mrb[0].mxu0
  %v2683 = vadd.f32 %v2558, %v2682
  %2684 = vmatprep.mubr.f32.mxu0 %v2335
  %2685 = vmatmul.mubr.f32.gmra.mrb[0].mxu0 %v2104
  %v2686 = vpop.f32.mrb[0].mxu0
  %v2687 = vadd.f32 %v2562, %v2686
  %v2688 = vpop.f32.mrb[0].mxu0
  %v2689 = vadd.f32 %v2564, %v2688
  %2690 = vmatprep.mubr.f32.mxu0 %v2338
  %2691 = vmatmul.mubr.f32.gmra.mrb[0].mxu0 %v2110
  %v2692 = vpop.f32.mrb[0].mxu0
  %v2693 = vadd.f32 %v2568, %v2692
  %v2694 = vpop.f32.mrb[0].mxu0
  %v2695 = vadd.f32 %v2570, %v2694
  %2696 = vmatprep.mubr.f32.mxu0 %v2341
  %2697 = vmatmul.mubr.f32.gmra.mrb[0].mxu0 %v2116
  %v2698 = vpop.f32.mrb[0].mxu0
  %v2699 = vadd.f32 %v2574, %v2698
  %v2700 = vpop.f32.mrb[0].mxu0
  %v2701 = vadd.f32 %v2576, %v2700
  %2702 = vmatprep.mubr.f32.mxu0 %v2344
  %2703 = vmatmul.mubr.f32.gmra.mrb[0].mxu0 %v2122
  %v2704 = vpop.f32.mrb[0].mxu0
  %v2705 = vadd.f32 %v2580, %v2704
  %v2706 = vpop.f32.mrb[0].mxu0
  %v2707 = vadd.f32 %v2582, %v2706
  %2708 = vmatprep.mubr.f32.mxu0 %v2347
  %2709 = vmatmul.mubr.f32.gmra.mrb[0].mxu0 %v2128
  %v2710 = vpop.f32.mrb[0].mxu0
  %v2711 = vadd.f32 %v2586, %v2710
  %v2712 = vpop.f32.mrb[0].mxu0
  %v2713 = vadd.f32 %v2588, %v2712
  %2714 = vmatprep.mubr.f32.mxu0 %v2350
  %2715 = vmatmul.mubr.f32.gmra.mrb[0].mxu0 %v2134
  %v2716 = vpop.f32.mrb[0].mxu0
  %v2717 = vadd.f32 %v2592, %v2716
  %v2718 = vpop.f32.mrb[0].mxu0
  %v2719 = vadd.f32 %v2594, %v2718
  %2720 = vmatprep.mubr.f32.mxu0 %v2353
  %2721 = vmatmul.mubr.f32.gmra.mrb[0].mxu0 %v2140
  %v2722 = vpop.f32.mrb[0].mxu0
  %v2723 = vadd.f32 %v2598, %v2722
  %v2724 = vpop.f32.mrb[0].mxu0
  %v2725 = vadd.f32 %v2600, %v2724
  %2726 = vmatprep.mubr.f32.mxu0 %v2356
  %2727 = vmatmul.mubr.f32.gmra.mrb[0].mxu0 %v2146
  %v2728 = vpop.f32.mrb[0].mxu0
  %v2729 = vadd.f32 %v2604, %v2728
  %v2730 = vpop.f32.mrb[0].mxu0
  %v2731 = vadd.f32 %v2606, %v2730
  %2732 = vdwg.mxu0
  %2733 = vst [vmem:[%s2 + $0xa0] sm:$0xff] %v2675
  %2734 = vst [vmem:[%s2 + $0xa8] sm:$0xff] %v2677
  %2735 = vst [vmem:[%s2 + $0xb0] sm:$0xff] %v2681
  %2736 = vst [vmem:[%s2 + $0xb8] sm:$0xff] %v2683
  %2737 = vst [vmem:[%s2 + $0xc0] sm:$0xff] %v2687
  %2738 = vst [vmem:[%s2 + $0xc8] sm:$0xff] %v2689
  %2739 = vst [vmem:[%s2 + $0xd0] sm:$0xff] %v2693
  %2740 = vst [vmem:[%s2 + $0xd8] sm:$0xff] %v2695
  %2741 = vst [vmem:[%s2 + $0xe0] sm:$0xff] %v2699
  %2742 = vst [vmem:[%s2 + $0xe8] sm:$0xff] %v2701
  %2743 = vst [vmem:[%s2 + $0xf0] sm:$0xff] %v2705
  %2744 = vst [vmem:[%s2 + $0xf8] sm:$0xff] %v2707
  %2745 = vst [vmem:[%s2 + $0x100] sm:$0xff] %v2711
  %2746 = vst [vmem:[%s2 + $0x108] sm:$0xff] %v2713
  %2747 = vst [vmem:[%s2 + $0x110] sm:$0xff] %v2717
  %2748 = vst [vmem:[%s2 + $0x118] sm:$0xff] %v2719
  %2749 = vst [vmem:[%s2 + $0x120] sm:$0xff] %v2723
  %2750 = vst [vmem:[%s2 + $0x128] sm:$0xff] %v2725
  %2751 = vst [vmem:[%s2 + $0x130] sm:$0xff] %v2729
  %2752 = vst [vmem:[%s2 + $0x138] sm:$0xff] %v2731
  // Predicated region
  $region10: #{relu_grouped_conv2d.1} parent=0 // pred_check
    _
  $region11: #{relu_grouped_conv2d.1} parent=0 // pred_check_branch
    %2754 = sbr.rel (0) target = $region13
  $region12: #{relu_grouped_conv2d.1} parent=0 // pred_region
    _
  $region13: #{relu_grouped_conv2d.1} parent=0 // pred_fallthru
    _
  // Predicated region
  $region14: #{relu_grouped_conv2d.1} parent=0 // pred_check
    _
  $region15: #{relu_grouped_conv2d.1} parent=0 // pred_check_branch
    %2756 = sbr.rel (0) target = $region17
  $region16: #{relu_grouped_conv2d.1} parent=0 // pred_region
    _
  $region17: #{relu_grouped_conv2d.1} parent=0 // pred_fallthru
    _

</llo_original>
